<compile_context>
chip_gen: v5e
topology: v5e:2x2
jax: 0.10.0
libtpu: 0.0.40
codegen_flags: <defaults>
</compile_context>

<pallas_src>
import functools

import jax
import jax.numpy as jnp
from jax import lax
from jax.experimental import pallas as pl
from jax.experimental.pallas import tpu as pltpu

LANE = 128


def _round_up(x, m):
    return (x + m - 1) // m * m


def _bottleneck_kernel(x_ref, w1_ref, b1_ref, w2_ref, b2_ref, w3_ref, b3_ref,
                       out_ref, pad_ref, col_ref, *, atrous):
    """Fused conv1x1+bn+relu -> conv3x3+bn+relu -> conv1x1+bn -> add -> relu.

    One grid step == one batch element (stride==1 specialization).  All channel
    contractions run on the MXU with bf16 inputs / f32 accumulation; the 3x3
    conv is a single matmul over an im2col scratch built from a zero-halo
    VMEM pad buffer.  BN scales are pre-folded into the weights.
    """
    _, H, W, Cin = x_ref.shape
    P = w1_ref.shape[1]
    a = atrous
    Hp, Wp = H + 2 * a, W + 2 * a

    x2d = x_ref[0].reshape(H * W, Cin)                           # (H*W, Cin) f32

    # --- conv1 (1x1, bn1 scale folded) + bias + relu : channel matmul ---
    h1 = jnp.dot(x2d.astype(jnp.bfloat16), w1_ref[...],
                 preferred_element_type=jnp.float32)
    h1 = jnp.maximum(h1 + b1_ref[...], 0.0)                      # (H*W, P) f32

    # --- conv2 (3x3, stride=1, dilation=padding=atrous) + bias + relu ---
    # Zero only the halo border; the interior is fully overwritten each step.
    pad_ref[0:a, :, :] = jnp.zeros((a, Wp, P), pad_ref.dtype)
    pad_ref[H + a:Hp, :, :] = jnp.zeros((a, Wp, P), pad_ref.dtype)
    pad_ref[:, 0:a, :] = jnp.zeros((Hp, a, P), pad_ref.dtype)
    pad_ref[:, W + a:Wp, :] = jnp.zeros((Hp, a, P), pad_ref.dtype)
    # Write the conv1 result (bf16) straight into the scratch interior.
    pad_ref[a:a + H, a:a + W, :] = h1.astype(jnp.bfloat16).reshape(H, W, P)

    # im2col: pack the 9 shifted taps along the contraction dim (lane-aligned
    # 128-multiple column offsets, contiguous ref-slice reads from the pad).
    for ky in range(3):
        for kx in range(3):
            k = ky * 3 + kx
            ro, co = ky * a, kx * a
            col_ref[:, k * P:(k + 1) * P] = (
                pad_ref[ro:ro + H, co:co + W, :].reshape(H * W, P))

    # One MXU matmul with K = 9*P (bn2 scale folded into w2).
    h2 = jnp.dot(col_ref[...], w2_ref[...], preferred_element_type=jnp.float32)
    h2 = jnp.maximum(h2 + b2_ref[...], 0.0)                      # (H*W, P) f32

    # --- conv3 (1x1, bn3 scale folded) + bias ---
    h3 = jnp.dot(h2.astype(jnp.bfloat16), w3_ref[...],
                 preferred_element_type=jnp.float32)
    h3 = h3 + b3_ref[...]                                        # (H*W, Cout)

    # --- residual add (downsample=None -> identity, kept in f32) + relu ---
    out = jnp.maximum(h3 + x2d.astype(jnp.float32), 0.0)
    out_ref[0] = out.reshape(H, W, -1).astype(out_ref.dtype)


def bottleneck_forward(x_nchw, params, *, stride=1, atrous=1):
    w1, s1, b1, w2, s2, b2, w3, s3, b3 = params
    N, Cin, H, W = x_nchw.shape
    P = w1.shape[1]
    Cout = w3.shape[1]
    # downsample=None in the PyTorch module => identity add requires these:
    assert stride == 1 and Cin == Cout, "identity residual requires stride=1, Cin==Cout"

    # Pad channels to lane-dense multiples of 128.  Padded weight rows/cols and
    # padded biases are zero, so padded channels stay exactly zero through every
    # stage and are sliced away at the end.
    Cin_p = _round_up(Cin, LANE)
    P_p = _round_up(P, LANE)
    Cout_p = _round_up(Cout, LANE)   # == Cin_p since Cin == Cout

    # NCHW -> NHWC.  TODO(synk): keep activations NHWC across the whole network
    # so these full-activation HBM transposes amortize away.
    x = jnp.transpose(x_nchw, (0, 2, 3, 1))
    x = jnp.pad(x, ((0, 0), (0, 0), (0, 0), (0, Cin_p - Cin)))

    # Fold eval-mode BN scales into the conv weights (per output channel).
    w1f = w1 * s1                     # (Cin, P)  * (1, P)
    w2f = w2 * s2[0]                  # (3,3,P,P) * (P,)  on last dim
    w3f = w3 * s3                     # (P, Cout) * (1, Cout)

    w1p = jnp.pad(w1f, ((0, Cin_p - Cin), (0, P_p - P))).astype(jnp.bfloat16)
    w2p = jnp.pad(w2f, ((0, 0), (0, 0), (0, P_p - P), (0, P_p - P))).astype(jnp.bfloat16)
    w2p = w2p.reshape(9 * P_p, P_p)   # row index = (ky*3+kx)*P_p + cin  (matches im2col)
    w3p = jnp.pad(w3f, ((0, P_p - P), (0, Cout_p - Cout))).astype(jnp.bfloat16)

    pad1 = lambda v, c: jnp.pad(v, ((0, 0), (0, c - v.shape[1])))
    b1p, b2p, b3p = pad1(b1, P_p), pad1(b2, P_p), pad1(b3, Cout_p)

    Hp, Wp = H + 2 * atrous, W + 2 * atrous
    kernel = functools.partial(_bottleneck_kernel, atrous=atrous)

    out = pl.pallas_call(
        kernel,
        out_shape=jax.ShapeDtypeStruct((N, H, W, Cout_p), x.dtype),
        grid_spec=pltpu.PrefetchScalarGridSpec(
            num_scalar_prefetch=0,
            grid=(N,),
            in_specs=[
                pl.BlockSpec((1, H, W, Cin_p), lambda n: (n, 0, 0, 0)),
                pl.BlockSpec(w1p.shape, lambda n: (0, 0)),
                pl.BlockSpec(b1p.shape, lambda n: (0, 0)),
                pl.BlockSpec(w2p.shape, lambda n: (0, 0)),
                pl.BlockSpec(b2p.shape, lambda n: (0, 0)),
                pl.BlockSpec(w3p.shape, lambda n: (0, 0)),
                pl.BlockSpec(b3p.shape, lambda n: (0, 0)),
            ],
            out_specs=pl.BlockSpec((1, H, W, Cout_p), lambda n: (n, 0, 0, 0)),
            scratch_shapes=[
                pltpu.VMEM((Hp, Wp, P_p), jnp.bfloat16),          # zero-halo conv1 output
                pltpu.VMEM((H * W, 9 * P_p), jnp.bfloat16),       # im2col for the 3x3
            ],
        ),
        compiler_params=pltpu.CompilerParams(
            dimension_semantics=("parallel",),
            vmem_limit_bytes=48 * 1024 * 1024,
        ),
    )(x, w1p, b1p, w2p, b2p, w3p, b3p)

    out = out[..., :Cout]
    return jnp.transpose(out, (0, 3, 1, 2))                      # back to NCHW


def init_params(key, in_plane, plane, eps=1e-5):
    """Deterministic synthetic parameters matching the module's shapes.

    conv weights are stored channels-last friendly:
      w1: (in_plane, plane)        -- 1x1 conv
      w2: (3, 3, plane, plane)     -- 3x3 conv, HWIO
      w3: (plane, 4*plane)         -- 1x1 conv
    BN folded to per-channel (scale, bias), stored as (1, C) for broadcasting.
    """
    expansion = 4
    cout = expansion * plane
    keys = jax.random.split(key, 15)

    def bn(kg, kb, km, kv, c):
        gamma = jax.random.uniform(kg, (c,), jnp.float32, 0.5, 1.5)
        beta = 0.1 * jax.random.normal(kb, (c,), jnp.float32)
        mean = 0.1 * jax.random.normal(km, (c,), jnp.float32)
        var = jax.random.uniform(kv, (c,), jnp.float32, 0.5, 1.5)
        scale = gamma / jnp.sqrt(var + eps)
        bias = beta - mean * scale
        return scale.reshape(1, c), bias.reshape(1, c)

    w1 = 0.1 * jax.random.normal(keys[0], (in_plane, plane), jnp.float32)
    w2 = 0.1 * jax.random.normal(keys[1], (3, 3, plane, plane), jnp.float32)
    w3 = 0.1 * jax.random.normal(keys[2], (plane, cout), jnp.float32)
    s1, b1 = bn(keys[3], keys[4], keys[5], keys[6], plane)
    s2, b2 = bn(keys[7], keys[8], keys[9], keys[10], plane)
    s3, b3 = bn(keys[11], keys[12], keys[13], keys[14], cout)
    return (w1, s1, b1, w2, s2, b2, w3, s3, b3)


def ref_forward(x_nchw, params, *, stride=1, atrous=1):
    """Pure-JAX f32 reference (lax.conv) mirroring the PyTorch forward (eval BN)."""
    w1, s1, b1, w2, s2, b2, w3, s3, b3 = params
    x = jnp.transpose(x_nchw, (0, 2, 3, 1))
    dn = ('NHWC', 'HWIO', 'NHWC')
    h = lax.conv_general_dilated(x, w1.reshape(1, 1, *w1.shape), (1, 1),
                                 'VALID', dimension_numbers=dn)
    h = jnp.maximum(h * s1[0] + b1[0], 0.0)
    h = lax.conv_general_dilated(h, w2, (stride, stride),
                                 [(atrous, atrous), (atrous, atrous)],
                                 rhs_dilation=(atrous, atrous),
                                 dimension_numbers=dn)
    h = jnp.maximum(h * s2[0] + b2[0], 0.0)
    h = lax.conv_general_dilated(h, w3.reshape(1, 1, *w3.shape), (1, 1),
                                 'VALID', dimension_numbers=dn)
    h = h * s3[0] + b3[0]
    out = jnp.maximum(h + x, 0.0)
    return jnp.transpose(out, (0, 3, 1, 2))


if __name__ == "__main__":
    # Small shapes consistent with BottleNeck(in_plane=4*plane, plane, downsample=None)
    N, plane = 2, 8
    in_plane = 4 * plane          # 32, so the identity residual is shape-compatible
    H = W = 16

    key = jax.random.PRNGKey(0)
    kx, kp = jax.random.split(key)
    x = jax.random.normal(kx, (N, in_plane, H, W), jnp.float32)   # NCHW like PyTorch
    params = init_params(kp, in_plane, plane)

    out = jax.block_until_ready(bottleneck_forward(x, params, stride=1, atrous=1))
    ref = jax.block_until_ready(ref_forward(x, params, stride=1, atrous=1))

    assert out.shape == (N, 4 * plane, H, W)
    # bf16 matmul inputs with f32 accumulation -> relaxed tolerance vs f32 reference.
    assert jnp.allclose(out, ref, atol=2e-2, rtol=2e-2), "mismatch vs JAX reference"

    print("KERNEL_OK")
</pallas_src>

<mosaic_0001>
module attributes {stable_mosaic.version = 11 : i64} {
  func.func @_bottleneck_kernel(%arg0: i32, %arg1: memref<1x16x16x128xf32, #tpu.memory_space<vmem>>, %arg2: memref<128x128xbf16, #tpu.memory_space<vmem>>, %arg3: memref<1x128xf32, #tpu.memory_space<vmem>>, %arg4: memref<1152x128xbf16, #tpu.memory_space<vmem>>, %arg5: memref<1x128xf32, #tpu.memory_space<vmem>>, %arg6: memref<128x128xbf16, #tpu.memory_space<vmem>>, %arg7: memref<1x128xf32, #tpu.memory_space<vmem>>, %arg8: memref<1x16x16x128xf32, #tpu.memory_space<vmem>>, %arg9: memref<18x18x128xbf16, #tpu.memory_space<vmem>>, %arg10: memref<256x1152xbf16, #tpu.memory_space<vmem>>) attributes {dimension_semantics = [#tpu.dimension_semantics<parallel>], iteration_bounds = array<i64: 2>, scalar_prefetch = 0 : i64, scratch_operands = 2 : i64, tpu.core_type = #tpu.core_type<tc>, window_params = [{transform_indices = @transform_0, window_bounds = array<i64: 1, 16, 16, 128>}, {pipeline_mode = #tpu.pipeline_mode<synchronous>, transform_indices = @transform_1, window_bounds = array<i64: 128, 128>}, {pipeline_mode = #tpu.pipeline_mode<synchronous>, transform_indices = @transform_2, window_bounds = array<i64: 1, 128>}, {pipeline_mode = #tpu.pipeline_mode<synchronous>, transform_indices = @transform_3, window_bounds = array<i64: 1152, 128>}, {pipeline_mode = #tpu.pipeline_mode<synchronous>, transform_indices = @transform_4, window_bounds = array<i64: 1, 128>}, {pipeline_mode = #tpu.pipeline_mode<synchronous>, transform_indices = @transform_5, window_bounds = array<i64: 128, 128>}, {pipeline_mode = #tpu.pipeline_mode<synchronous>, transform_indices = @transform_6, window_bounds = array<i64: 1, 128>}, {transform_indices = @transform_7, window_bounds = array<i64: 1, 16, 16, 128>}]} {
    %c0 = arith.constant 0 : index
    %c0_0 = arith.constant 0 : index
    %c0_1 = arith.constant 0 : index
    %c0_2 = arith.constant 0 : index
    %0 = vector.load %arg1[%c0, %c0_0, %c0_1, %c0_2] : memref<1x16x16x128xf32, #tpu.memory_space<vmem>>, vector<1x16x16x128xf32>
    %1 = vector.shape_cast %0 : vector<1x16x16x128xf32> to vector<16x16x128xf32>
    %2 = vector.shape_cast %1 : vector<16x16x128xf32> to vector<256x128xf32>
    %3 = arith.truncf %2 : vector<256x128xf32> to vector<256x128xbf16>
    %c0_3 = arith.constant 0 : index
    %c0_4 = arith.constant 0 : index
    %4 = vector.load %arg2[%c0_3, %c0_4] : memref<128x128xbf16, #tpu.memory_space<vmem>>, vector<128x128xbf16>
    %cst = arith.constant dense<0.000000e+00> : vector<256x128xf32>
    %5 = tpu.matmul %3, %4, %cst {dimension_numbers = #tpu.dot_dimension_numbers<[1], [0], [0], [1], [0, 0, 1, 1], [], []>} : vector<256x128xbf16>, vector<128x128xbf16>, vector<256x128xf32> -> vector<256x128xf32>
    %c0_5 = arith.constant 0 : index
    %c0_6 = arith.constant 0 : index
    %6 = vector.load %arg3[%c0_5, %c0_6] : memref<1x128xf32, #tpu.memory_space<vmem>>, vector<1x128xf32>
    %7 = vector.broadcast %6 : vector<1x128xf32> to vector<256x128xf32>
    %8 = arith.addf %5, %7 : vector<256x128xf32>
    %cst_7 = arith.constant 0.000000e+00 : f32
    %9 = vector.broadcast %cst_7 : f32 to vector<256x128xf32>
    %10 = arith.maximumf %8, %9 : vector<256x128xf32>
    %cst_8 = arith.constant 0.000000e+00 : bf16
    %11 = vector.broadcast %cst_8 : bf16 to vector<1x18x128xbf16>
    %c0_9 = arith.constant 0 : index
    %c0_10 = arith.constant 0 : index
    %c0_11 = arith.constant 0 : index
    %12 = vector.load %arg9[%c0_9, %c0_10, %c0_11] : memref<18x18x128xbf16, #tpu.memory_space<vmem>>, vector<1x18x128xbf16>
    tpu.vector_store %arg9[%c0_9, %c0_10, %c0_11], %11 {strides = array<i32>} : memref<18x18x128xbf16, #tpu.memory_space<vmem>>, vector<1x18x128xbf16>,
    %cst_12 = arith.constant 0.000000e+00 : bf16
    %13 = vector.broadcast %cst_12 : bf16 to vector<1x18x128xbf16>
    %c17 = arith.constant 17 : index
    %c0_13 = arith.constant 0 : index
    %c0_14 = arith.constant 0 : index
    %14 = vector.load %arg9[%c17, %c0_13, %c0_14] : memref<18x18x128xbf16, #tpu.memory_space<vmem>>, vector<1x18x128xbf16>
    tpu.vector_store %arg9[%c17, %c0_13, %c0_14], %13 {strides = array<i32>} : memref<18x18x128xbf16, #tpu.memory_space<vmem>>, vector<1x18x128xbf16>,
    %cst_15 = arith.constant 0.000000e+00 : bf16
    %15 = vector.broadcast %cst_15 : bf16 to vector<18x1x128xbf16>
    %c0_16 = arith.constant 0 : index
    %c0_17 = arith.constant 0 : index
    %c0_18 = arith.constant 0 : index
    %16 = vector.load %arg9[%c0_16, %c0_17, %c0_18] : memref<18x18x128xbf16, #tpu.memory_space<vmem>>, vector<18x1x128xbf16>
    tpu.vector_store %arg9[%c0_16, %c0_17, %c0_18], %15 {strides = array<i32>} : memref<18x18x128xbf16, #tpu.memory_space<vmem>>, vector<18x1x128xbf16>,
    %cst_19 = arith.constant 0.000000e+00 : bf16
    %17 = vector.broadcast %cst_19 : bf16 to vector<18x1x128xbf16>
    %c0_20 = arith.constant 0 : index
    %c17_21 = arith.constant 17 : index
    %c0_22 = arith.constant 0 : index
    %18 = vector.load %arg9[%c0_20, %c17_21, %c0_22] : memref<18x18x128xbf16, #tpu.memory_space<vmem>>, vector<18x1x128xbf16>
    tpu.vector_store %arg9[%c0_20, %c17_21, %c0_22], %17 {strides = array<i32>} : memref<18x18x128xbf16, #tpu.memory_space<vmem>>, vector<18x1x128xbf16>,
    %19 = arith.truncf %10 : vector<256x128xf32> to vector<256x128xbf16>
    %20 = vector.shape_cast %19 : vector<256x128xbf16> to vector<16x16x128xbf16>
    %c1 = arith.constant 1 : index
    %c1_23 = arith.constant 1 : index
    %c0_24 = arith.constant 0 : index
    %21 = vector.load %arg9[%c1, %c1_23, %c0_24] : memref<18x18x128xbf16, #tpu.memory_space<vmem>>, vector<16x16x128xbf16>
    tpu.vector_store %arg9[%c1, %c1_23, %c0_24], %20 {strides = array<i32>} : memref<18x18x128xbf16, #tpu.memory_space<vmem>>, vector<16x16x128xbf16>,
    %c0_25 = arith.constant 0 : index
    %c0_26 = arith.constant 0 : index
    %c0_27 = arith.constant 0 : index
    %22 = vector.load %arg9[%c0_25, %c0_26, %c0_27] : memref<18x18x128xbf16, #tpu.memory_space<vmem>>, vector<16x16x128xbf16>
    %23 = vector.shape_cast %22 : vector<16x16x128xbf16> to vector<256x128xbf16>
    %c0_28 = arith.constant 0 : index
    %c0_29 = arith.constant 0 : index
    %24 = vector.load %arg10[%c0_28, %c0_29] : memref<256x1152xbf16, #tpu.memory_space<vmem>>, vector<256x128xbf16>
    tpu.vector_store %arg10[%c0_28, %c0_29], %23 {strides = array<i32>} : memref<256x1152xbf16, #tpu.memory_space<vmem>>, vector<256x128xbf16>,
    %c0_30 = arith.constant 0 : index
    %c1_31 = arith.constant 1 : index
    %c0_32 = arith.constant 0 : index
    %25 = vector.load %arg9[%c0_30, %c1_31, %c0_32] : memref<18x18x128xbf16, #tpu.memory_space<vmem>>, vector<16x16x128xbf16>
    %26 = vector.shape_cast %25 : vector<16x16x128xbf16> to vector<256x128xbf16>
    %c0_33 = arith.constant 0 : index
    %c128 = arith.constant 128 : index
    %27 = vector.load %arg10[%c0_33, %c128] : memref<256x1152xbf16, #tpu.memory_space<vmem>>, vector<256x128xbf16>
    tpu.vector_store %arg10[%c0_33, %c128], %26 {strides = array<i32>} : memref<256x1152xbf16, #tpu.memory_space<vmem>>, vector<256x128xbf16>,
    %c0_34 = arith.constant 0 : index
    %c2 = arith.constant 2 : index
    %c0_35 = arith.constant 0 : index
    %28 = vector.load %arg9[%c0_34, %c2, %c0_35] : memref<18x18x128xbf16, #tpu.memory_space<vmem>>, vector<16x16x128xbf16>
    %29 = vector.shape_cast %28 : vector<16x16x128xbf16> to vector<256x128xbf16>
    %c0_36 = arith.constant 0 : index
    %c256 = arith.constant 256 : index
    %30 = vector.load %arg10[%c0_36, %c256] : memref<256x1152xbf16, #tpu.memory_space<vmem>>, vector<256x128xbf16>
    tpu.vector_store %arg10[%c0_36, %c256], %29 {strides = array<i32>} : memref<256x1152xbf16, #tpu.memory_space<vmem>>, vector<256x128xbf16>,
    %c1_37 = arith.constant 1 : index
    %c0_38 = arith.constant 0 : index
    %c0_39 = arith.constant 0 : index
    %31 = vector.load %arg9[%c1_37, %c0_38, %c0_39] : memref<18x18x128xbf16, #tpu.memory_space<vmem>>, vector<16x16x128xbf16>
    %32 = vector.shape_cast %31 : vector<16x16x128xbf16> to vector<256x128xbf16>
    %c0_40 = arith.constant 0 : index
    %c384 = arith.constant 384 : index
    %33 = vector.load %arg10[%c0_40, %c384] : memref<256x1152xbf16, #tpu.memory_space<vmem>>, vector<256x128xbf16>
    tpu.vector_store %arg10[%c0_40, %c384], %32 {strides = array<i32>} : memref<256x1152xbf16, #tpu.memory_space<vmem>>, vector<256x128xbf16>,
    %c1_41 = arith.constant 1 : index
    %c1_42 = arith.constant 1 : index
    %c0_43 = arith.constant 0 : index
    %34 = vector.load %arg9[%c1_41, %c1_42, %c0_43] : memref<18x18x128xbf16, #tpu.memory_space<vmem>>, vector<16x16x128xbf16>
    %35 = vector.shape_cast %34 : vector<16x16x128xbf16> to vector<256x128xbf16>
    %c0_44 = arith.constant 0 : index
    %c512 = arith.constant 512 : index
    %36 = vector.load %arg10[%c0_44, %c512] : memref<256x1152xbf16, #tpu.memory_space<vmem>>, vector<256x128xbf16>
    tpu.vector_store %arg10[%c0_44, %c512], %35 {strides = array<i32>} : memref<256x1152xbf16, #tpu.memory_space<vmem>>, vector<256x128xbf16>,
    %c1_45 = arith.constant 1 : index
    %c2_46 = arith.constant 2 : index
    %c0_47 = arith.constant 0 : index
    %37 = vector.load %arg9[%c1_45, %c2_46, %c0_47] : memref<18x18x128xbf16, #tpu.memory_space<vmem>>, vector<16x16x128xbf16>
    %38 = vector.shape_cast %37 : vector<16x16x128xbf16> to vector<256x128xbf16>
    %c0_48 = arith.constant 0 : index
    %c640 = arith.constant 640 : index
    %39 = vector.load %arg10[%c0_48, %c640] : memref<256x1152xbf16, #tpu.memory_space<vmem>>, vector<256x128xbf16>
    tpu.vector_store %arg10[%c0_48, %c640], %38 {strides = array<i32>} : memref<256x1152xbf16, #tpu.memory_space<vmem>>, vector<256x128xbf16>,
    %c2_49 = arith.constant 2 : index
    %c0_50 = arith.constant 0 : index
    %c0_51 = arith.constant 0 : index
    %40 = vector.load %arg9[%c2_49, %c0_50, %c0_51] : memref<18x18x128xbf16, #tpu.memory_space<vmem>>, vector<16x16x128xbf16>
    %41 = vector.shape_cast %40 : vector<16x16x128xbf16> to vector<256x128xbf16>
    %c0_52 = arith.constant 0 : index
    %c768 = arith.constant 768 : index
    %42 = vector.load %arg10[%c0_52, %c768] : memref<256x1152xbf16, #tpu.memory_space<vmem>>, vector<256x128xbf16>
    tpu.vector_store %arg10[%c0_52, %c768], %41 {strides = array<i32>} : memref<256x1152xbf16, #tpu.memory_space<vmem>>, vector<256x128xbf16>,
    %c2_53 = arith.constant 2 : index
    %c1_54 = arith.constant 1 : index
    %c0_55 = arith.constant 0 : index
    %43 = vector.load %arg9[%c2_53, %c1_54, %c0_55] : memref<18x18x128xbf16, #tpu.memory_space<vmem>>, vector<16x16x128xbf16>
    %44 = vector.shape_cast %43 : vector<16x16x128xbf16> to vector<256x128xbf16>
    %c0_56 = arith.constant 0 : index
    %c896 = arith.constant 896 : index
    %45 = vector.load %arg10[%c0_56, %c896] : memref<256x1152xbf16, #tpu.memory_space<vmem>>, vector<256x128xbf16>
    tpu.vector_store %arg10[%c0_56, %c896], %44 {strides = array<i32>} : memref<256x1152xbf16, #tpu.memory_space<vmem>>, vector<256x128xbf16>,
    %c2_57 = arith.constant 2 : index
    %c2_58 = arith.constant 2 : index
    %c0_59 = arith.constant 0 : index
    %46 = vector.load %arg9[%c2_57, %c2_58, %c0_59] : memref<18x18x128xbf16, #tpu.memory_space<vmem>>, vector<16x16x128xbf16>
    %47 = vector.shape_cast %46 : vector<16x16x128xbf16> to vector<256x128xbf16>
    %c0_60 = arith.constant 0 : index
    %c1024 = arith.constant 1024 : index
    %48 = vector.load %arg10[%c0_60, %c1024] : memref<256x1152xbf16, #tpu.memory_space<vmem>>, vector<256x128xbf16>
    tpu.vector_store %arg10[%c0_60, %c1024], %47 {strides = array<i32>} : memref<256x1152xbf16, #tpu.memory_space<vmem>>, vector<256x128xbf16>,
    %c0_61 = arith.constant 0 : index
    %c0_62 = arith.constant 0 : index
    %49 = vector.load %arg10[%c0_61, %c0_62] : memref<256x1152xbf16, #tpu.memory_space<vmem>>, vector<256x1152xbf16>
    %c0_63 = arith.constant 0 : index
    %c0_64 = arith.constant 0 : index
    %50 = vector.load %arg4[%c0_63, %c0_64] : memref<1152x128xbf16, #tpu.memory_space<vmem>>, vector<1152x128xbf16>
    %cst_65 = arith.constant dense<0.000000e+00> : vector<256x128xf32>
    %51 = tpu.matmul %49, %50, %cst_65 {dimension_numbers = #tpu.dot_dimension_numbers<[1], [0], [0], [1], [0, 0, 1, 1], [], []>} : vector<256x1152xbf16>, vector<1152x128xbf16>, vector<256x128xf32> -> vector<256x128xf32>
    %c0_66 = arith.constant 0 : index
    %c0_67 = arith.constant 0 : index
    %52 = vector.load %arg5[%c0_66, %c0_67] : memref<1x128xf32, #tpu.memory_space<vmem>>, vector<1x128xf32>
    %53 = vector.broadcast %52 : vector<1x128xf32> to vector<256x128xf32>
    %54 = arith.addf %51, %53 : vector<256x128xf32>
    %cst_68 = arith.constant 0.000000e+00 : f32
    %55 = vector.broadcast %cst_68 : f32 to vector<256x128xf32>
    %56 = arith.maximumf %54, %55 : vector<256x128xf32>
    %57 = arith.truncf %56 : vector<256x128xf32> to vector<256x128xbf16>
    %c0_69 = arith.constant 0 : index
    %c0_70 = arith.constant 0 : index
    %58 = vector.load %arg6[%c0_69, %c0_70] : memref<128x128xbf16, #tpu.memory_space<vmem>>, vector<128x128xbf16>
    %cst_71 = arith.constant dense<0.000000e+00> : vector<256x128xf32>
    %59 = tpu.matmul %57, %58, %cst_71 {dimension_numbers = #tpu.dot_dimension_numbers<[1], [0], [0], [1], [0, 0, 1, 1], [], []>} : vector<256x128xbf16>, vector<128x128xbf16>, vector<256x128xf32> -> vector<256x128xf32>
    %c0_72 = arith.constant 0 : index
    %c0_73 = arith.constant 0 : index
    %60 = vector.load %arg7[%c0_72, %c0_73] : memref<1x128xf32, #tpu.memory_space<vmem>>, vector<1x128xf32>
    %61 = vector.broadcast %60 : vector<1x128xf32> to vector<256x128xf32>
    %62 = arith.addf %59, %61 : vector<256x128xf32>
    %63 = arith.addf %62, %2 : vector<256x128xf32>
    %cst_74 = arith.constant 0.000000e+00 : f32
    %64 = vector.broadcast %cst_74 : f32 to vector<256x128xf32>
    %65 = arith.maximumf %63, %64 : vector<256x128xf32>
    %66 = vector.shape_cast %65 : vector<256x128xf32> to vector<16x16x128xf32>
    %c0_75 = arith.constant 0 : index
    %c0_76 = arith.constant 0 : index
    %c0_77 = arith.constant 0 : index
    %c0_78 = arith.constant 0 : index
    %67 = vector.load %arg8[%c0_75, %c0_76, %c0_77, %c0_78] : memref<1x16x16x128xf32, #tpu.memory_space<vmem>>, vector<1x16x16x128xf32>
    %68 = vector.shape_cast %67 : vector<1x16x16x128xf32> to vector<16x16x128xf32>
    %69 = vector.shape_cast %66 : vector<16x16x128xf32> to vector<1x16x16x128xf32>
    tpu.vector_store %arg8[%c0_75, %c0_76, %c0_77, %c0_78], %69 {strides = array<i32>} : memref<1x16x16x128xf32, #tpu.memory_space<vmem>>, vector<1x16x16x128xf32>,
    return
  }
  func.func @transform_0(%arg0: i32) -> (i32, i32, i32, i32) {
    %c0_i32 = arith.constant 0 : i32
    %c0_i32_0 = arith.constant 0 : i32
    %c0_i32_1 = arith.constant 0 : i32
    %c0_i32_2 = arith.constant 0 : i32
    return %arg0, %c0_i32, %c0_i32_0, %c0_i32_1 : i32, i32, i32, i32
  }
  func.func @transform_1(%arg0: i32) -> (i32, i32) {
    %c0_i32 = arith.constant 0 : i32
    %c0_i32_0 = arith.constant 0 : i32
    %c0_i32_1 = arith.constant 0 : i32
    return %c0_i32, %c0_i32_0 : i32, i32
  }
  func.func @transform_2(%arg0: i32) -> (i32, i32) {
    %c0_i32 = arith.constant 0 : i32
    %c0_i32_0 = arith.constant 0 : i32
    %c0_i32_1 = arith.constant 0 : i32
    return %c0_i32, %c0_i32_0 : i32, i32
  }
  func.func @transform_3(%arg0: i32) -> (i32, i32) {
    %c0_i32 = arith.constant 0 : i32
    %c0_i32_0 = arith.constant 0 : i32
    %c0_i32_1 = arith.constant 0 : i32
    return %c0_i32, %c0_i32_0 : i32, i32
  }
  func.func @transform_4(%arg0: i32) -> (i32, i32) {
    %c0_i32 = arith.constant 0 : i32
    %c0_i32_0 = arith.constant 0 : i32
    %c0_i32_1 = arith.constant 0 : i32
    return %c0_i32, %c0_i32_0 : i32, i32
  }
  func.func @transform_5(%arg0: i32) -> (i32, i32) {
    %c0_i32 = arith.constant 0 : i32
    %c0_i32_0 = arith.constant 0 : i32
    %c0_i32_1 = arith.constant 0 : i32
    return %c0_i32, %c0_i32_0 : i32, i32
  }
  func.func @transform_6(%arg0: i32) -> (i32, i32) {
    %c0_i32 = arith.constant 0 : i32
    %c0_i32_0 = arith.constant 0 : i32
    %c0_i32_1 = arith.constant 0 : i32
    return %c0_i32, %c0_i32_0 : i32, i32
  }
  func.func @transform_7(%arg0: i32) -> (i32, i32, i32, i32) {
    %c0_i32 = arith.constant 0 : i32
    %c0_i32_0 = arith.constant 0 : i32
    %c0_i32_1 = arith.constant 0 : i32
    %c0_i32_2 = arith.constant 0 : i32
    return %arg0, %c0_i32, %c0_i32_0, %c0_i32_1 : i32, i32, i32, i32
  }
}

</mosaic_0001>

<llo_original>
// kernel: tpu_custom_call.1
$region0: #{tpu_custom_call.1}
  #allocation0 [shape = 'u32[]', space=smem, size = 0x4, offset = 0x4, fixed_abs, tag = 'smem constant byte address 0x4 - core index']
  #allocation1 [shape = 'u32[72,128]{1,0:T(1,128)}', space=vmem, size = 0x9000, scoped, tag = 'internal scratch']
  #allocation2 [shape = 'bf16[18,18,128]{2,1,0:T(8,128)(2,1)}', space=vmem, size = 0x1b000, scoped, tag = 'scratch operand']
  #allocation3 [shape = 'bf16[256,1152]{1,0:T(8,128)(2,1)}', space=vmem, size = 0x90000, scoped, tag = 'scratch operand']
  %s0 = inlined_call_operand.hbm [shape: f32[2,16,16,128], index: 0, kind: input, shape index: {}]
  %s1 = inlined_call_operand.hbm [shape: bf16[128,128], index: 1, kind: input, shape index: {}]
  %s2 = inlined_call_operand.vmem [shape: f32[1,128], index: 2, kind: input, shape index: {}]
  %s3 = inlined_call_operand.hbm [shape: bf16[1152,128], index: 3, kind: input, shape index: {}]
  %s4 = inlined_call_operand.vmem [shape: f32[1,128], index: 4, kind: input, shape index: {}]
  %s5 = inlined_call_operand.hbm [shape: bf16[128,128], index: 5, kind: input, shape index: {}]
  %s6 = inlined_call_operand.vmem [shape: f32[1,128], index: 6, kind: input, shape index: {}]
  %s7 = inlined_call_operand.hbm [shape: f32[2,16,16,128], index: 7, kind: output, shape index: {}]
  %s8 = sld [smem:[#allocation0]]
  $region77: #{tpu_custom_call.1} parent=0
    _
  %s10 = ssub.s32 1, %s8
  %s11 = scalar_select 0, %s10, %s8
  $region1: #{tpu_custom_call.1} parent=0
    #allocation4 [shape = 'u8[262144]{0}', space=vmem, size = 0x40000, scoped, tag = 'input window, operand 0']
    #allocation5 [shape = 's32[2]{0}', space=sflag, size = 0x8, scoped, tag = 'scoped memory for tpu_custom_call.1']
    #allocation6 [shape = 's32[2]{0}', space=sflag, size = 0x8, scoped, tag = 'scoped memory for tpu_custom_call.1']
    #allocation7 [shape = 'u8[32768]{0}', space=vmem, size = 0x8000, scoped, tag = 'input window, operand 1, single buffered']
    #allocation8 [shape = 's32[1]{0}', space=sflag, size = 0x4, scoped, tag = 'scoped memory for tpu_custom_call.1']
    #allocation9 [shape = 'u8[294912]{0}', space=vmem, size = 0x48000, scoped, tag = 'input window, operand 3, single buffered']
    #allocation10 [shape = 'u8[32768]{0}', space=vmem, size = 0x8000, scoped, tag = 'input window, operand 5, single buffered']
    #allocation11 [shape = 's32[1]{0}', space=sflag, size = 0x4, scoped, tag = 'scoped memory for tpu_custom_call.1']
    #allocation12 [shape = 'u8[262144]{0}', space=vmem, size = 0x40000, scoped, tag = 'output window, operand 0']
    %12 = vsyncpa [#allocation5], 0
    %s13 = scalar_lea.sflag [#allocation5], 1
    %14 = vsyncpa %s13, 0
    %15 = vsyncpa [#allocation8], 0
    %16 = vsyncpa [#allocation11], 0
    %17 = vsyncpa [#allocation6], 0
    %s18 = scalar_lea.sflag [#allocation6], 1
    %19 = vsyncpa %s18, 0
    loop: start=0, step=1, limit=4
    $region2: #{tpu_custom_call.1} parent=1 // loop_pre_header
      _
    $region3: #{tpu_custom_call.1} parent=1 // loop_header
      %s21 = sphi 0, %s25
      %p22 = scmp.ge.s32.totalorder %s21, 4
      %s31 = sphi 0, %s33
      %s34 = sphi 0, %s31
      %s35 = sphi 0, %s34
      %s51 = sphi 0, %s35
      %s55 = sphi 0, %s55
      %s57 = sphi 0, %s55
      %s58 = sphi 0, %s57
      %s72 = sphi 0, %s58
      %s76 = sphi 0, %s76
      %s78 = sphi 0, %s76
      %s79 = sphi 0, %s78
      %s93 = sphi 0, %s79
      %s97 = sphi 0, %s97
      %s99 = sphi 0, %s97
      %s100 = sphi 0, %s99
      %s114 = sphi 0, %s100
      %s118 = sphi 0, %s118
      %s120 = sphi 0, %s118
      %s121 = sphi 0, %s120
      %s135 = sphi 0, %s121
      %s139 = sphi 0, %s139
      %s141 = sphi 0, %s139
      %s142 = sphi 0, %s141
      %s156 = sphi 0, %s142
      %s160 = sphi 0, %s160
      %s162 = sphi 0, %s160
      %s163 = sphi 0, %s162
      %s177 = sphi 0, %s163
      %s183 = sphi 0, %s185
      %s186 = sphi 0, %s183
      %s187 = sphi 0, %s186
      %s203 = sphi 0, %s187
    $region4: #{tpu_custom_call.1} parent=1 // loop_header_branch
      %24 = sbr.rel (%p22) target = $region8
    $region5: #{tpu_custom_call.1} parent=1 // loop_body
      %s26 = ssub.s32 %s21, 1
      %s27 = ssub.s32 %s21, 2
      %s28 = sadd.s32 %s21, 1
      %s29 = ssub.s32 %s21, %s28
      %p30 = scmp.eq.s32.totalorder %s29, 0
      %s32 = sadd.s32 %s31, 1
      %s33 = scalar_select %p30, %s31, %s32
      %p36 = pneg %p30
      %p37 = scmp.eq.s32.totalorder %s21, 1
      %p38 = por %p36, %p37
      %p39 = scmp.ne.s32.totalorder %s31, %s34
      %p40 = scmp.eq.s32.totalorder %s21, 0
      %p41 = por %p39, %p40
      %p42 = scmp.ne.s32.totalorder %s31, %s34
      %p43 = scmp.eq.s32.totalorder %s26, 1
      %p44 = por %p42, %p43
      %p45 = scmp.ne.s32.totalorder %s34, %s35
      %p46 = scmp.eq.s32.totalorder %s26, 0
      %p47 = por %p45, %p46
      %p48 = scmp.ne.s32.totalorder %s34, %s35
      %p49 = scmp.eq.s32.totalorder %s27, 1
      %p50 = por %p48, %p49
      %p52 = scmp.ne.s32.totalorder %s35, %s51
      %p53 = scmp.eq.s32.totalorder %s27, 0
      %p54 = por %p52, %p53
      %s56 = sadd.s32 %s55, 1
      %p59 = scmp.eq.s32.totalorder %s21, 1
      %p60 = scmp.ne.s32.totalorder %s55, %s57
      %p61 = scmp.eq.s32.totalorder %s21, 0
      %p62 = por %p60, %p61
      %p63 = scmp.ne.s32.totalorder %s55, %s57
      %p64 = scmp.eq.s32.totalorder %s26, 1
      %p65 = por %p63, %p64
      %p66 = scmp.ne.s32.totalorder %s57, %s58
      %p67 = scmp.eq.s32.totalorder %s26, 0
      %p68 = por %p66, %p67
      %p69 = scmp.ne.s32.totalorder %s57, %s58
      %p70 = scmp.eq.s32.totalorder %s27, 1
      %p71 = por %p69, %p70
      %p73 = scmp.ne.s32.totalorder %s58, %s72
      %p74 = scmp.eq.s32.totalorder %s27, 0
      %p75 = por %p73, %p74
      %s77 = sadd.s32 %s76, 1
      %p80 = scmp.eq.s32.totalorder %s21, 1
      %p81 = scmp.ne.s32.totalorder %s76, %s78
      %p82 = scmp.eq.s32.totalorder %s21, 0
      %p83 = por %p81, %p82
      %p84 = scmp.ne.s32.totalorder %s76, %s78
      %p85 = scmp.eq.s32.totalorder %s26, 1
      %p86 = por %p84, %p85
      %p87 = scmp.ne.s32.totalorder %s78, %s79
      %p88 = scmp.eq.s32.totalorder %s26, 0
      %p89 = por %p87, %p88
      %p90 = scmp.ne.s32.totalorder %s78, %s79
      %p91 = scmp.eq.s32.totalorder %s27, 1
      %p92 = por %p90, %p91
      %p94 = scmp.ne.s32.totalorder %s79, %s93
      %p95 = scmp.eq.s32.totalorder %s27, 0
      %p96 = por %p94, %p95
      %s98 = sadd.s32 %s97, 1
      %p101 = scmp.eq.s32.totalorder %s21, 1
      %p102 = scmp.ne.s32.totalorder %s97, %s99
      %p103 = scmp.eq.s32.totalorder %s21, 0
      %p104 = por %p102, %p103
      %p105 = scmp.ne.s32.totalorder %s97, %s99
      %p106 = scmp.eq.s32.totalorder %s26, 1
      %p107 = por %p105, %p106
      %p108 = scmp.ne.s32.totalorder %s99, %s100
      %p109 = scmp.eq.s32.totalorder %s26, 0
      %p110 = por %p108, %p109
      %p111 = scmp.ne.s32.totalorder %s99, %s100
      %p112 = scmp.eq.s32.totalorder %s27, 1
      %p113 = por %p111, %p112
      %p115 = scmp.ne.s32.totalorder %s100, %s114
      %p116 = scmp.eq.s32.totalorder %s27, 0
      %p117 = por %p115, %p116
      %s119 = sadd.s32 %s118, 1
      %p122 = scmp.eq.s32.totalorder %s21, 1
      %p123 = scmp.ne.s32.totalorder %s118, %s120
      %p124 = scmp.eq.s32.totalorder %s21, 0
      %p125 = por %p123, %p124
      %p126 = scmp.ne.s32.totalorder %s118, %s120
      %p127 = scmp.eq.s32.totalorder %s26, 1
      %p128 = por %p126, %p127
      %p129 = scmp.ne.s32.totalorder %s120, %s121
      %p130 = scmp.eq.s32.totalorder %s26, 0
      %p131 = por %p129, %p130
      %p132 = scmp.ne.s32.totalorder %s120, %s121
      %p133 = scmp.eq.s32.totalorder %s27, 1
      %p134 = por %p132, %p133
      %p136 = scmp.ne.s32.totalorder %s121, %s135
      %p137 = scmp.eq.s32.totalorder %s27, 0
      %p138 = por %p136, %p137
      %s140 = sadd.s32 %s139, 1
      %p143 = scmp.eq.s32.totalorder %s21, 1
      %p144 = scmp.ne.s32.totalorder %s139, %s141
      %p145 = scmp.eq.s32.totalorder %s21, 0
      %p146 = por %p144, %p145
      %p147 = scmp.ne.s32.totalorder %s139, %s141
      %p148 = scmp.eq.s32.totalorder %s26, 1
      %p149 = por %p147, %p148
      %p150 = scmp.ne.s32.totalorder %s141, %s142
      %p151 = scmp.eq.s32.totalorder %s26, 0
      %p152 = por %p150, %p151
      %p153 = scmp.ne.s32.totalorder %s141, %s142
      %p154 = scmp.eq.s32.totalorder %s27, 1
      %p155 = por %p153, %p154
      %p157 = scmp.ne.s32.totalorder %s142, %s156
      %p158 = scmp.eq.s32.totalorder %s27, 0
      %p159 = por %p157, %p158
      %s161 = sadd.s32 %s160, 1
      %p164 = scmp.eq.s32.totalorder %s21, 1
      %p165 = scmp.ne.s32.totalorder %s160, %s162
      %p166 = scmp.eq.s32.totalorder %s21, 0
      %p167 = por %p165, %p166
      %p168 = scmp.ne.s32.totalorder %s160, %s162
      %p169 = scmp.eq.s32.totalorder %s26, 1
      %p170 = por %p168, %p169
      %p171 = scmp.ne.s32.totalorder %s162, %s163
      %p172 = scmp.eq.s32.totalorder %s26, 0
      %p173 = por %p171, %p172
      %p174 = scmp.ne.s32.totalorder %s162, %s163
      %p175 = scmp.eq.s32.totalorder %s27, 1
      %p176 = por %p174, %p175
      %p178 = scmp.ne.s32.totalorder %s163, %s177
      %p179 = scmp.eq.s32.totalorder %s27, 0
      %p180 = por %p178, %p179
      %s181 = ssub.s32 %s21, %s28
      %p182 = scmp.eq.s32.totalorder %s181, 0
      %s184 = sadd.s32 %s183, 1
      %s185 = scalar_select %p182, %s183, %s184
      %p188 = pneg %p182
      %p189 = scmp.eq.s32.totalorder %s21, 1
      %p190 = por %p188, %p189
      %p191 = scmp.ne.s32.totalorder %s183, %s186
      %p192 = scmp.eq.s32.totalorder %s21, 0
      %p193 = por %p191, %p192
      %p194 = scmp.ne.s32.totalorder %s183, %s186
      %p195 = scmp.eq.s32.totalorder %s26, 1
      %p196 = por %p194, %p195
      %p197 = scmp.ne.s32.totalorder %s186, %s187
      %p198 = scmp.eq.s32.totalorder %s26, 0
      %p199 = por %p197, %p198
      %p200 = scmp.ne.s32.totalorder %s186, %s187
      %p201 = scmp.eq.s32.totalorder %s27, 1
      %p202 = por %p200, %p201
      %p204 = scmp.ne.s32.totalorder %s187, %s203
      %p205 = scmp.eq.s32.totalorder %s27, 0
      %p206 = por %p204, %p205
      %p207 = scmp.le.s32.totalorder 1, %s21
      %p208 = scmp.lt.s32.totalorder %s21, 3
      %p209 = pnand %p207, %p208
      %p210 = pneg %p209
      // Predicated region
      $region9: #{tpu_custom_call.1} parent=5 // pred_check
        _
      $region10: #{tpu_custom_call.1} parent=5 // pred_check_branch
        %212 = sbr.rel (%p209) target = $region12
      $region11: #{tpu_custom_call.1} parent=5 // pred_region
        %s213 = ssub.s32 %s21, 1
        // Predicated region
        $region13: #{tpu_custom_call.1} parent=11 // pred_check
          %p214 = pneg %p68
        $region14: #{tpu_custom_call.1} parent=11 // pred_check_branch
          %216 = sbr.rel (%p214) target = $region16
        $region15: #{tpu_custom_call.1} parent=11 // pred_region
          %218 = vsyncadd [#allocation8], 0
          %s219 = sshll.u32 %s1, 4
          %s220 = int_to_ptr.hbm [resolvable:$true] %s219
          %s221 = sshll.u32 [#allocation7], 4
          %s222 = int_to_ptr.vmem [resolvable:$true] %s221
          %227 = dma.hbm_to_vmem [thread:$0]  %s220, 1024, %s222, [#allocation8], 64, 64, 4
        $region16: #{tpu_custom_call.1} parent=11 // pred_fallthru
          _
        // Predicated region
        $region17: #{tpu_custom_call.1} parent=11 // pred_check
          %p228 = pneg %p89
        $region18: #{tpu_custom_call.1} parent=11 // pred_check_branch
          %230 = sbr.rel (%p228) target = $region20
        $region19: #{tpu_custom_call.1} parent=11 // pred_region
          _
        $region20: #{tpu_custom_call.1} parent=11 // pred_fallthru
          _
        // Predicated region
        $region21: #{tpu_custom_call.1} parent=11 // pred_check
          %p231 = pneg %p110
        $region22: #{tpu_custom_call.1} parent=11 // pred_check_branch
          %233 = sbr.rel (%p231) target = $region24
        $region23: #{tpu_custom_call.1} parent=11 // pred_region
          %235 = vsyncadd [#allocation8], 0
          %s236 = sshll.u32 %s3, 4
          %s237 = int_to_ptr.hbm [resolvable:$true] %s236
          %s238 = sshll.u32 [#allocation9], 4
          %s239 = int_to_ptr.vmem [resolvable:$true] %s238
          %244 = dma.hbm_to_vmem [thread:$0]  %s237, 9216, %s239, [#allocation8], 64, 64, 4
        $region24: #{tpu_custom_call.1} parent=11 // pred_fallthru
          _
        // Predicated region
        $region25: #{tpu_custom_call.1} parent=11 // pred_check
          %p245 = pneg %p131
        $region26: #{tpu_custom_call.1} parent=11 // pred_check_branch
          %247 = sbr.rel (%p245) target = $region28
        $region27: #{tpu_custom_call.1} parent=11 // pred_region
          _
        $region28: #{tpu_custom_call.1} parent=11 // pred_fallthru
          _
        // Predicated region
        $region29: #{tpu_custom_call.1} parent=11 // pred_check
          %p248 = pneg %p152
        $region30: #{tpu_custom_call.1} parent=11 // pred_check_branch
          %250 = sbr.rel (%p248) target = $region32
        $region31: #{tpu_custom_call.1} parent=11 // pred_region
          %252 = vsyncadd [#allocation11], 0
          %s253 = sshll.u32 %s5, 4
          %s254 = int_to_ptr.hbm [resolvable:$true] %s253
          %s255 = sshll.u32 [#allocation10], 4
          %s256 = int_to_ptr.vmem [resolvable:$true] %s255
          %261 = dma.hbm_to_vmem [thread:$0]  %s254, 1024, %s256, [#allocation11], 64, 64, 4
        $region32: #{tpu_custom_call.1} parent=11 // pred_fallthru
          _
        // Predicated region
        $region33: #{tpu_custom_call.1} parent=11 // pred_check
          %p262 = pneg %p173
        $region34: #{tpu_custom_call.1} parent=11 // pred_check_branch
          %264 = sbr.rel (%p262) target = $region36
        $region35: #{tpu_custom_call.1} parent=11 // pred_region
          _
        $region36: #{tpu_custom_call.1} parent=11 // pred_fallthru
          _
      $region12: #{tpu_custom_call.1} parent=5 // pred_fallthru
        _
      %p265 = scmp.lt.s32.totalorder %s21, 2
      // Predicated region
      $region37: #{tpu_custom_call.1} parent=5 // pred_check
        %p266 = pneg %p265
      $region38: #{tpu_custom_call.1} parent=5 // pred_check_branch
        %268 = sbr.rel (%p266) target = $region40
      $region39: #{tpu_custom_call.1} parent=5 // pred_region
        // Predicated region
        $region41: #{tpu_custom_call.1} parent=39 // pred_check
          %p269 = pneg %p41
        $region42: #{tpu_custom_call.1} parent=39 // pred_check_branch
          %271 = sbr.rel (%p269) target = $region44
        $region43: #{tpu_custom_call.1} parent=39 // pred_region
          %s272 = sand.u32 %s31, 1
          %s273 = scalar_lea.sflag [#allocation5], %s272
          %s274 = sand.u32 %s31, 1
          %s275 = smul.addr %s274, 256
          %s276 = scalar_lea.vmem [#allocation4], %s275
          %278 = vsyncadd %s273, 0
          %s279 = smul.addr %s21, 32
          %s280 = smul.addr %s279, 8
          %s281 = scalar_lea.hbm %s0, %s280
          %s282 = sshll.u32 %s281, 4
          %s283 = int_to_ptr.hbm [resolvable:$true] %s282
          %s284 = sshll.u32 %s276, 4
          %s285 = int_to_ptr.vmem [resolvable:$true] %s284
          %290 = dma.hbm_to_vmem [thread:$0]  %s283, 4096, %s285, %s273, 128, 128, 8
        $region44: #{tpu_custom_call.1} parent=39 // pred_fallthru
          _
      $region40: #{tpu_custom_call.1} parent=5 // pred_fallthru
        _
      %p291 = scmp.le.s32.totalorder 1, %s21
      %p292 = scmp.lt.s32.totalorder %s21, 3
      %p293 = pnand %p291, %p292
      %p294 = pneg %p293
      // Predicated region
      $region45: #{tpu_custom_call.1} parent=5 // pred_check
        _
      $region46: #{tpu_custom_call.1} parent=5 // pred_check_branch
        %296 = sbr.rel (%p293) target = $region48
      $region47: #{tpu_custom_call.1} parent=5 // pred_region
        %s297 = ssub.s32 %s21, 1
        %s298 = sand.u32 %s34, 1
        %s299 = scalar_lea.sflag [#allocation5], %s298
        %s300 = sand.u32 %s34, 1
        %s301 = smul.addr %s300, 256
        %s302 = scalar_lea.vmem [#allocation4], %s301
        // Predicated region
        $region49: #{tpu_custom_call.1} parent=47 // pred_check
          %p303 = pneg %p47
        $region50: #{tpu_custom_call.1} parent=47 // pred_check_branch
          %305 = sbr.rel (%p303) target = $region52
        $region51: #{tpu_custom_call.1} parent=47 // pred_region
          %307 = dma.done %s299, 4096
        $region52: #{tpu_custom_call.1} parent=47 // pred_fallthru
          _
        // Predicated region
        $region53: #{tpu_custom_call.1} parent=47 // pred_check
          %p308 = pneg %p68
        $region54: #{tpu_custom_call.1} parent=47 // pred_check_branch
          %310 = sbr.rel (%p308) target = $region56
        $region55: #{tpu_custom_call.1} parent=47 // pred_region
          %312 = dma.done [#allocation8], 1024
        $region56: #{tpu_custom_call.1} parent=47 // pred_fallthru
          _
        // Predicated region
        $region57: #{tpu_custom_call.1} parent=47 // pred_check
          %p313 = pneg %p110
        $region58: #{tpu_custom_call.1} parent=47 // pred_check_branch
          %315 = sbr.rel (%p313) target = $region60
        $region59: #{tpu_custom_call.1} parent=47 // pred_region
          %317 = dma.done [#allocation8], 9216
        $region60: #{tpu_custom_call.1} parent=47 // pred_fallthru
          _
        // Predicated region
        $region61: #{tpu_custom_call.1} parent=47 // pred_check
          %p318 = pneg %p152
        $region62: #{tpu_custom_call.1} parent=47 // pred_check_branch
          %320 = sbr.rel (%p318) target = $region64
        $region63: #{tpu_custom_call.1} parent=47 // pred_region
          %322 = dma.done [#allocation11], 1024
        $region64: #{tpu_custom_call.1} parent=47 // pred_fallthru
          _
        %s323 = sand.u32 %s34, 1
        %s324 = scalar_lea.sflag [#allocation5], %s323
        %s325 = sand.u32 %s34, 1
        %s326 = smul.addr %s325, 256
        %s327 = scalar_lea.vmem [#allocation4], %s326
        %p328 = pneg %p47
        %p329 = pneg %p44
        %p330 = pneg %p68
        %p331 = pneg %p65
        %p332 = pneg %p89
        %p333 = pneg %p86
        %p334 = pneg %p110
        %p335 = pneg %p107
        %p336 = pneg %p131
        %p337 = pneg %p128
        %p338 = pneg %p152
        %p339 = pneg %p149
        %p340 = pneg %p173
        %p341 = pneg %p170
        %p342 = pneg %p199
        %p343 = pneg %p196
        %s344 = sand.u32 %s186, 1
        %s345 = scalar_lea.sflag [#allocation6], %s344
        %s346 = sand.u32 %s186, 1
        %s347 = smul.addr %s346, 256
        %s348 = scalar_lea.vmem [#allocation12], %s347
        %v350 = vld [vmem:[%s302] sm:$0xff]
        %v351 = vld [vmem:[%s302 + $0x8] sm:$0xff]
        %v352 = vld [vmem:[%s302 + $0x10] sm:$0xff]
        %v353 = vld [vmem:[%s302 + $0x18] sm:$0xff]
        %v354 = vld [vmem:[%s302 + $0x20] sm:$0xff]
        %v355 = vld [vmem:[%s302 + $0x28] sm:$0xff]
        %v356 = vld [vmem:[%s302 + $0x30] sm:$0xff]
        %v357 = vld [vmem:[%s302 + $0x38] sm:$0xff]
        %v358 = vld [vmem:[%s302 + $0x40] sm:$0xff]
        %v359 = vld [vmem:[%s302 + $0x48] sm:$0xff]
        %v360 = vld [vmem:[%s302 + $0x50] sm:$0xff]
        %v361 = vld [vmem:[%s302 + $0x58] sm:$0xff]
        %v362 = vld [vmem:[%s302 + $0x60] sm:$0xff]
        %v363 = vld [vmem:[%s302 + $0x68] sm:$0xff]
        %v364 = vld [vmem:[%s302 + $0x70] sm:$0xff]
        %v365 = vld [vmem:[%s302 + $0x78] sm:$0xff]
        %v366 = vld [vmem:[%s302 + $0x80] sm:$0xff]
        %v367 = vld [vmem:[%s302 + $0x88] sm:$0xff]
        %v368 = vld [vmem:[%s302 + $0x90] sm:$0xff]
        %v369 = vld [vmem:[%s302 + $0x98] sm:$0xff]
        %v370 = vld [vmem:[%s302 + $0xa0] sm:$0xff]
        %v371 = vld [vmem:[%s302 + $0xa8] sm:$0xff]
        %v372 = vld [vmem:[%s302 + $0xb0] sm:$0xff]
        %v373 = vld [vmem:[%s302 + $0xb8] sm:$0xff]
        %v374 = vld [vmem:[%s302 + $0xc0] sm:$0xff]
        %v375 = vld [vmem:[%s302 + $0xc8] sm:$0xff]
        %v376 = vld [vmem:[%s302 + $0xd0] sm:$0xff]
        %v377 = vld [vmem:[%s302 + $0xd8] sm:$0xff]
        %v378 = vld [vmem:[%s302 + $0xe0] sm:$0xff]
        %v379 = vld [vmem:[%s302 + $0xe8] sm:$0xff]
        %v380 = vld [vmem:[%s302 + $0xf0] sm:$0xff]
        %v381 = vld [vmem:[%s302 + $0xf8] sm:$0xff]
        %v382 = vpack.c.bf16 %v351, %v350
        %v383 = vpack.c.bf16 %v353, %v352
        %v384 = vpack.c.bf16 %v355, %v354
        %v385 = vpack.c.bf16 %v357, %v356
        %v386 = vpack.c.bf16 %v359, %v358
        %v387 = vpack.c.bf16 %v361, %v360
        %v388 = vpack.c.bf16 %v363, %v362
        %v389 = vpack.c.bf16 %v365, %v364
        %v390 = vpack.c.bf16 %v367, %v366
        %v391 = vpack.c.bf16 %v369, %v368
        %v392 = vpack.c.bf16 %v371, %v370
        %v393 = vpack.c.bf16 %v373, %v372
        %v394 = vpack.c.bf16 %v375, %v374
        %v395 = vpack.c.bf16 %v377, %v376
        %v396 = vpack.c.bf16 %v379, %v378
        %v397 = vpack.c.bf16 %v381, %v380
        %v398 = vld [vmem:[#allocation7] sm:$0xf]
        %v399 = vld [vmem:[#allocation7 + $0x4] sm:$0xf]
        %v400 = vld [vmem:[#allocation7 + $0x8] sm:$0xf]
        %v401 = vld [vmem:[#allocation7 + $0xc] sm:$0xf]
        %v402 = vld [vmem:[#allocation7 + $0x10] sm:$0xf]
        %v403 = vld [vmem:[#allocation7 + $0x14] sm:$0xf]
        %v404 = vld [vmem:[#allocation7 + $0x18] sm:$0xf]
        %v405 = vld [vmem:[#allocation7 + $0x1c] sm:$0xf]
        %v406 = vld [vmem:[#allocation7 + $0x20] sm:$0xf]
        %v407 = vld [vmem:[#allocation7 + $0x24] sm:$0xf]
        %v408 = vld [vmem:[#allocation7 + $0x28] sm:$0xf]
        %v409 = vld [vmem:[#allocation7 + $0x2c] sm:$0xf]
        %v410 = vld [vmem:[#allocation7 + $0x30] sm:$0xf]
        %v411 = vld [vmem:[#allocation7 + $0x34] sm:$0xf]
        %v412 = vld [vmem:[#allocation7 + $0x38] sm:$0xf]
        %v413 = vld [vmem:[#allocation7 + $0x3c] sm:$0xf]
        %v414 = vld [vmem:[%s2] sm:$0x1]
        %v416 = vperm.slane %v414, 0
        %v434 = vunpack.c.l.b16 %v398
        %v435 = vunpack.c.l.b16 %v399
        %v436 = vunpack.c.l.b16 %v400
        %v437 = vunpack.c.l.b16 %v401
        %v438 = vunpack.c.l.b16 %v402
        %v439 = vunpack.c.l.b16 %v403
        %v440 = vunpack.c.l.b16 %v404
        %v441 = vunpack.c.l.b16 %v405
        %v442 = vunpack.c.l.b16 %v406
        %v443 = vunpack.c.l.b16 %v407
        %v444 = vunpack.c.l.b16 %v408
        %v445 = vunpack.c.l.b16 %v409
        %v446 = vunpack.c.l.b16 %v410
        %v447 = vunpack.c.l.b16 %v411
        %v448 = vunpack.c.l.b16 %v412
        %v449 = vunpack.c.l.b16 %v413
        %v450 = vpack.c.b16 %v435, %v434
        %v451 = vpack.c.b16 %v437, %v436
        %v452 = vpack.c.b16 %v439, %v438
        %v453 = vpack.c.b16 %v441, %v440
        %v454 = vpack.c.b16 %v443, %v442
        %v455 = vpack.c.b16 %v445, %v444
        %v456 = vpack.c.b16 %v447, %v446
        %v457 = vpack.c.b16 %v449, %v448
        %466 = vmatpush.bf16.msra.mxu0 %v457
        %467 = vmatpush.bf16.msra.mxu0 %v456
        %468 = vmatpush.bf16.msra.mxu0 %v455
        %469 = vmatpush.bf16.msra.mxu0 %v454
        %470 = vmatpush.bf16.msra.mxu0 %v453
        %471 = vmatpush.bf16.msra.mxu0 %v452
        %472 = vmatpush.bf16.msra.mxu0 %v451
        %473 = vmatpush.bf16.msra.mxu0 %v450
        %474 = vmatmul.bf16.gmra.mxu0 %v382
        %v475 = vpop.f32.mrf.mxu0
        %v476 = vadd.f32 %v416, %v475
        %v477 = vpop.f32.mrf.mxu0
        %v478 = vadd.f32 %v416, %v477
        %479 = vmatmul.bf16.gmra.mxu0 %v383
        %v480 = vpop.f32.mrf.mxu0
        %v481 = vadd.f32 %v416, %v480
        %v482 = vpop.f32.mrf.mxu0
        %v483 = vadd.f32 %v416, %v482
        %484 = vmatmul.bf16.gmra.mxu0 %v384
        %v485 = vpop.f32.mrf.mxu0
        %v486 = vadd.f32 %v416, %v485
        %v487 = vpop.f32.mrf.mxu0
        %v488 = vadd.f32 %v416, %v487
        %489 = vmatmul.bf16.gmra.mxu0 %v385
        %v490 = vpop.f32.mrf.mxu0
        %v491 = vadd.f32 %v416, %v490
        %v492 = vpop.f32.mrf.mxu0
        %v493 = vadd.f32 %v416, %v492
        %494 = vmatmul.bf16.gmra.mxu0 %v386
        %v495 = vpop.f32.mrf.mxu0
        %v496 = vadd.f32 %v416, %v495
        %v497 = vpop.f32.mrf.mxu0
        %v498 = vadd.f32 %v416, %v497
        %499 = vmatmul.bf16.gmra.mxu0 %v387
        %v500 = vpop.f32.mrf.mxu0
        %v501 = vadd.f32 %v416, %v500
        %v502 = vpop.f32.mrf.mxu0
        %v503 = vadd.f32 %v416, %v502
        %504 = vmatmul.bf16.gmra.mxu0 %v388
        %v505 = vpop.f32.mrf.mxu0
        %v506 = vadd.f32 %v416, %v505
        %v507 = vpop.f32.mrf.mxu0
        %v508 = vadd.f32 %v416, %v507
        %509 = vmatmul.bf16.gmra.mxu0 %v389
        %v510 = vpop.f32.mrf.mxu0
        %v511 = vadd.f32 %v416, %v510
        %v512 = vpop.f32.mrf.mxu0
        %v513 = vadd.f32 %v416, %v512
        %514 = vmatmul.bf16.gmra.mxu0 %v390
        %v515 = vpop.f32.mrf.mxu0
        %v516 = vadd.f32 %v416, %v515
        %v517 = vpop.f32.mrf.mxu0
        %v518 = vadd.f32 %v416, %v517
        %519 = vmatmul.bf16.gmra.mxu0 %v391
        %v520 = vpop.f32.mrf.mxu0
        %v521 = vadd.f32 %v416, %v520
        %v522 = vpop.f32.mrf.mxu0
        %v523 = vadd.f32 %v416, %v522
        %524 = vmatmul.bf16.gmra.mxu0 %v392
        %v525 = vpop.f32.mrf.mxu0
        %v526 = vadd.f32 %v416, %v525
        %v527 = vpop.f32.mrf.mxu0
        %v528 = vadd.f32 %v416, %v527
        %529 = vmatmul.bf16.gmra.mxu0 %v393
        %v530 = vpop.f32.mrf.mxu0
        %v531 = vadd.f32 %v416, %v530
        %v532 = vpop.f32.mrf.mxu0
        %v533 = vadd.f32 %v416, %v532
        %534 = vmatmul.bf16.gmra.mxu0 %v394
        %v535 = vpop.f32.mrf.mxu0
        %v536 = vadd.f32 %v416, %v535
        %v537 = vpop.f32.mrf.mxu0
        %v538 = vadd.f32 %v416, %v537
        %539 = vmatmul.bf16.gmra.mxu0 %v395
        %v540 = vpop.f32.mrf.mxu0
        %v541 = vadd.f32 %v416, %v540
        %v542 = vpop.f32.mrf.mxu0
        %v543 = vadd.f32 %v416, %v542
        %544 = vmatmul.bf16.gmra.mxu0 %v396
        %v545 = vpop.f32.mrf.mxu0
        %v546 = vadd.f32 %v416, %v545
        %v547 = vpop.f32.mrf.mxu0
        %v548 = vadd.f32 %v416, %v547
        %549 = vmatmul.bf16.gmra.mxu0 %v397
        %v550 = vpop.f32.mrf.mxu0
        %v551 = vadd.f32 %v416, %v550
        %v552 = vpop.f32.mrf.mxu0
        %v553 = vadd.f32 %v416, %v552
        %554 = vdwg.mxu0
        %v555 = vmax.f32 %v476, 0.0
        %v556 = vmax.f32 %v478, 0.0
        %v557 = vmax.f32 %v481, 0.0
        %v558 = vmax.f32 %v483, 0.0
        %v559 = vmax.f32 %v486, 0.0
        %v560 = vmax.f32 %v488, 0.0
        %v561 = vmax.f32 %v491, 0.0
        %v562 = vmax.f32 %v493, 0.0
        %v563 = vmax.f32 %v496, 0.0
        %v564 = vmax.f32 %v498, 0.0
        %v565 = vmax.f32 %v501, 0.0
        %v566 = vmax.f32 %v503, 0.0
        %v567 = vmax.f32 %v506, 0.0
        %v568 = vmax.f32 %v508, 0.0
        %v569 = vmax.f32 %v511, 0.0
        %v570 = vmax.f32 %v513, 0.0
        %v571 = vmax.f32 %v516, 0.0
        %v572 = vmax.f32 %v518, 0.0
        %v573 = vmax.f32 %v521, 0.0
        %v574 = vmax.f32 %v523, 0.0
        %v575 = vmax.f32 %v526, 0.0
        %v576 = vmax.f32 %v528, 0.0
        %v577 = vmax.f32 %v531, 0.0
        %v578 = vmax.f32 %v533, 0.0
        %v579 = vmax.f32 %v536, 0.0
        %v580 = vmax.f32 %v538, 0.0
        %v581 = vmax.f32 %v541, 0.0
        %v582 = vmax.f32 %v543, 0.0
        %v583 = vmax.f32 %v546, 0.0
        %v584 = vmax.f32 %v548, 0.0
        %v585 = vmax.f32 %v551, 0.0
        %v586 = vmax.f32 %v553, 0.0
        %587 = vst [vmem:[#allocation2] sm:$0xf] 0
        %588 = vst [vmem:[#allocation2 + $0x4] sm:$0xf] 0
        %589 = vst [vmem:[#allocation2 + $0x8] sm:$0x1] 0
        %s590 = scalar_lea.vmem [#allocation2], 204
        %591 = vst [vmem:[%s590] sm:$0xf] 0
        %592 = vst [vmem:[%s590 + $0x4] sm:$0xf] 0
        %593 = vst [vmem:[%s590 + $0x8] sm:$0x1] 0
        %vm594 = vcmask 1040384
        %vm595 = vsmask.f32 256
        %vm596 = vmand %vm594, %vm595
        %v597 = vld [vmem:[#allocation2] sm:$0x1]
        %v598 = vsel %vm596, 0, %v597
        %599 = vst [vmem:[#allocation2] sm:$0x1] %v598
        %v600 = vld [vmem:[#allocation2 + $0xc] sm:$0x1]
        %v601 = vsel %vm596, 0, %v600
        %602 = vst [vmem:[#allocation2 + $0xc] sm:$0x1] %v601
        %v603 = vld [vmem:[#allocation2 + $0x18] sm:$0x1]
        %v604 = vsel %vm596, 0, %v603
        %605 = vst [vmem:[#allocation2 + $0x18] sm:$0x1] %v604
        %v606 = vld [vmem:[#allocation2 + $0x24] sm:$0x1]
        %v607 = vsel %vm596, 0, %v606
        %608 = vst [vmem:[#allocation2 + $0x24] sm:$0x1] %v607
        %v609 = vld [vmem:[#allocation2 + $0x30] sm:$0x1]
        %v610 = vsel %vm596, 0, %v609
        %611 = vst [vmem:[#allocation2 + $0x30] sm:$0x1] %v610
        %v612 = vld [vmem:[#allocation2 + $0x3c] sm:$0x1]
        %v613 = vsel %vm596, 0, %v612
        %614 = vst [vmem:[#allocation2 + $0x3c] sm:$0x1] %v613
        %v615 = vld [vmem:[#allocation2 + $0x48] sm:$0x1]
        %v616 = vsel %vm596, 0, %v615
        %617 = vst [vmem:[#allocation2 + $0x48] sm:$0x1] %v616
        %v618 = vld [vmem:[#allocation2 + $0x54] sm:$0x1]
        %v619 = vsel %vm596, 0, %v618
        %620 = vst [vmem:[#allocation2 + $0x54] sm:$0x1] %v619
        %v621 = vld [vmem:[#allocation2 + $0x60] sm:$0x1]
        %v622 = vsel %vm596, 0, %v621
        %623 = vst [vmem:[#allocation2 + $0x60] sm:$0x1] %v622
        %v624 = vld [vmem:[#allocation2 + $0x6c] sm:$0x1]
        %v625 = vsel %vm596, 0, %v624
        %626 = vst [vmem:[#allocation2 + $0x6c] sm:$0x1] %v625
        %v627 = vld [vmem:[#allocation2 + $0x78] sm:$0x1]
        %v628 = vsel %vm596, 0, %v627
        %629 = vst [vmem:[#allocation2 + $0x78] sm:$0x1] %v628
        %v630 = vld [vmem:[#allocation2 + $0x84] sm:$0x1]
        %v631 = vsel %vm596, 0, %v630
        %632 = vst [vmem:[#allocation2 + $0x84] sm:$0x1] %v631
        %v633 = vld [vmem:[#allocation2 + $0x90] sm:$0x1]
        %v634 = vsel %vm596, 0, %v633
        %635 = vst [vmem:[#allocation2 + $0x90] sm:$0x1] %v634
        %v636 = vld [vmem:[#allocation2 + $0x9c] sm:$0x1]
        %v637 = vsel %vm596, 0, %v636
        %638 = vst [vmem:[#allocation2 + $0x9c] sm:$0x1] %v637
        %v639 = vld [vmem:[#allocation2 + $0xa8] sm:$0x1]
        %v640 = vsel %vm596, 0, %v639
        %641 = vst [vmem:[#allocation2 + $0xa8] sm:$0x1] %v640
        %v642 = vld [vmem:[#allocation2 + $0xb4] sm:$0x1]
        %v643 = vsel %vm596, 0, %v642
        %644 = vst [vmem:[#allocation2 + $0xb4] sm:$0x1] %v643
        %v645 = vld [vmem:[#allocation2 + $0xc0] sm:$0x1]
        %v646 = vsel %vm596, 0, %v645
        %647 = vst [vmem:[#allocation2 + $0xc0] sm:$0x1] %v646
        %v648 = vld [vmem:[#allocation2 + $0xcc] sm:$0x1]
        %v649 = vsel %vm596, 0, %v648
        %650 = vst [vmem:[#allocation2 + $0xcc] sm:$0x1] %v649
        %vm651 = vsmask.f32 7938
        %vm652 = vmand %vm594, %vm651
        %v653 = vld [vmem:[#allocation2 + $0x8] sm:$0x1]
        %v654 = vsel %vm652, 0, %v653
        %655 = vst [vmem:[#allocation2 + $0x8] sm:$0x1] %v654
        %v656 = vld [vmem:[#allocation2 + $0x14] sm:$0x1]
        %v657 = vsel %vm652, 0, %v656
        %658 = vst [vmem:[#allocation2 + $0x14] sm:$0x1] %v657
        %v659 = vld [vmem:[#allocation2 + $0x20] sm:$0x1]
        %v660 = vsel %vm652, 0, %v659
        %661 = vst [vmem:[#allocation2 + $0x20] sm:$0x1] %v660
        %v662 = vld [vmem:[#allocation2 + $0x2c] sm:$0x1]
        %v663 = vsel %vm652, 0, %v662
        %664 = vst [vmem:[#allocation2 + $0x2c] sm:$0x1] %v663
        %v665 = vld [vmem:[#allocation2 + $0x38] sm:$0x1]
        %v666 = vsel %vm652, 0, %v665
        %667 = vst [vmem:[#allocation2 + $0x38] sm:$0x1] %v666
        %v668 = vld [vmem:[#allocation2 + $0x44] sm:$0x1]
        %v669 = vsel %vm652, 0, %v668
        %670 = vst [vmem:[#allocation2 + $0x44] sm:$0x1] %v669
        %v671 = vld [vmem:[#allocation2 + $0x50] sm:$0x1]
        %v672 = vsel %vm652, 0, %v671
        %673 = vst [vmem:[#allocation2 + $0x50] sm:$0x1] %v672
        %v674 = vld [vmem:[#allocation2 + $0x5c] sm:$0x1]
        %v675 = vsel %vm652, 0, %v674
        %676 = vst [vmem:[#allocation2 + $0x5c] sm:$0x1] %v675
        %v677 = vld [vmem:[#allocation2 + $0x68] sm:$0x1]
        %v678 = vsel %vm652, 0, %v677
        %679 = vst [vmem:[#allocation2 + $0x68] sm:$0x1] %v678
        %v680 = vld [vmem:[#allocation2 + $0x74] sm:$0x1]
        %v681 = vsel %vm652, 0, %v680
        %682 = vst [vmem:[#allocation2 + $0x74] sm:$0x1] %v681
        %v683 = vld [vmem:[#allocation2 + $0x80] sm:$0x1]
        %v684 = vsel %vm652, 0, %v683
        %685 = vst [vmem:[#allocation2 + $0x80] sm:$0x1] %v684
        %v686 = vld [vmem:[#allocation2 + $0x8c] sm:$0x1]
        %v687 = vsel %vm652, 0, %v686
        %688 = vst [vmem:[#allocation2 + $0x8c] sm:$0x1] %v687
        %v689 = vld [vmem:[#allocation2 + $0x98] sm:$0x1]
        %v690 = vsel %vm652, 0, %v689
        %691 = vst [vmem:[#allocation2 + $0x98] sm:$0x1] %v690
        %v692 = vld [vmem:[#allocation2 + $0xa4] sm:$0x1]
        %v693 = vsel %vm652, 0, %v692
        %694 = vst [vmem:[#allocation2 + $0xa4] sm:$0x1] %v693
        %v695 = vld [vmem:[#allocation2 + $0xb0] sm:$0x1]
        %v696 = vsel %vm652, 0, %v695
        %697 = vst [vmem:[#allocation2 + $0xb0] sm:$0x1] %v696
        %v698 = vld [vmem:[#allocation2 + $0xbc] sm:$0x1]
        %v699 = vsel %vm652, 0, %v698
        %700 = vst [vmem:[#allocation2 + $0xbc] sm:$0x1] %v699
        %v701 = vld [vmem:[#allocation2 + $0xc8] sm:$0x1]
        %v702 = vsel %vm652, 0, %v701
        %703 = vst [vmem:[#allocation2 + $0xc8] sm:$0x1] %v702
        %v704 = vld [vmem:[#allocation2 + $0xd4] sm:$0x1]
        %v705 = vsel %vm652, 0, %v704
        %706 = vst [vmem:[#allocation2 + $0xd4] sm:$0x1] %v705
        %v707 = vpack.c.bf16 %v555, %v555
        %v708 = vpack.c.bf16 %v556, %v556
        %v709 = vpack.c.bf16 %v557, %v557
        %v710 = vpack.c.bf16 %v558, %v558
        %v711 = vpack.c.bf16 %v559, %v559
        %v712 = vpack.c.bf16 %v560, %v560
        %v713 = vpack.c.bf16 %v561, %v561
        %v714 = vpack.c.bf16 %v562, %v562
        %v715 = vpack.c.bf16 %v563, %v563
        %v716 = vpack.c.bf16 %v564, %v564
        %v717 = vpack.c.bf16 %v565, %v565
        %v718 = vpack.c.bf16 %v566, %v566
        %v719 = vpack.c.bf16 %v567, %v567
        %v720 = vpack.c.bf16 %v568, %v568
        %v721 = vpack.c.bf16 %v569, %v569
        %v722 = vpack.c.bf16 %v570, %v570
        %v723 = vpack.c.bf16 %v571, %v571
        %v724 = vpack.c.bf16 %v572, %v572
        %v725 = vpack.c.bf16 %v573, %v573
        %v726 = vpack.c.bf16 %v574, %v574
        %v727 = vpack.c.bf16 %v575, %v575
        %v728 = vpack.c.bf16 %v576, %v576
        %v729 = vpack.c.bf16 %v577, %v577
        %v730 = vpack.c.bf16 %v578, %v578
        %v731 = vpack.c.bf16 %v579, %v579
        %v732 = vpack.c.bf16 %v580, %v580
        %v733 = vpack.c.bf16 %v581, %v581
        %v734 = vpack.c.bf16 %v582, %v582
        %v735 = vpack.c.bf16 %v583, %v583
        %v736 = vpack.c.bf16 %v584, %v584
        %v737 = vpack.c.bf16 %v585, %v585
        %v738 = vpack.c.bf16 %v586, %v586
        %vm739 = vsmask.f32 4368
        %vm740 = vmor %vm595, %vm739
        %v742 = vshrl.u32 %v707, 16
        %v744 = vrot.slane %v742, 7
        %v745 = vshll.u32 %v707, 16
        %v747 = vor.u32 %v744, %v745
        %v748 = vrot.slane %v744, 4
        %v750 = vshrl.u32 %v708, 16
        %v752 = vrot.slane %v750, 7
        %v753 = vshll.u32 %v708, 16
        %v755 = vor.u32 %v752, %v753
        %v756 = vsel %vm740, %v748, %v755
        %v757 = vrot.slane %v752, 4
        %v759 = vshrl.u32 %v709, 16
        %v761 = vrot.slane %v759, 7
        %v762 = vshll.u32 %v709, 16
        %v764 = vor.u32 %v761, %v762
        %v765 = vrot.slane %v761, 4
        %v767 = vshrl.u32 %v710, 16
        %v769 = vrot.slane %v767, 7
        %v770 = vshll.u32 %v710, 16
        %v772 = vor.u32 %v769, %v770
        %v773 = vsel %vm740, %v765, %v772
        %v774 = vrot.slane %v769, 4
        %v776 = vshrl.u32 %v711, 16
        %v778 = vrot.slane %v776, 7
        %v779 = vshll.u32 %v711, 16
        %v781 = vor.u32 %v778, %v779
        %v782 = vrot.slane %v778, 4
        %v784 = vshrl.u32 %v712, 16
        %v786 = vrot.slane %v784, 7
        %v787 = vshll.u32 %v712, 16
        %v789 = vor.u32 %v786, %v787
        %v790 = vsel %vm740, %v782, %v789
        %v791 = vrot.slane %v786, 4
        %v793 = vshrl.u32 %v713, 16
        %v795 = vrot.slane %v793, 7
        %v796 = vshll.u32 %v713, 16
        %v798 = vor.u32 %v795, %v796
        %v799 = vrot.slane %v795, 4
        %v801 = vshrl.u32 %v714, 16
        %v803 = vrot.slane %v801, 7
        %v804 = vshll.u32 %v714, 16
        %v806 = vor.u32 %v803, %v804
        %v807 = vsel %vm740, %v799, %v806
        %v808 = vrot.slane %v803, 4
        %v810 = vshrl.u32 %v715, 16
        %v812 = vrot.slane %v810, 7
        %v813 = vshll.u32 %v715, 16
        %v815 = vor.u32 %v812, %v813
        %v816 = vrot.slane %v812, 4
        %v818 = vshrl.u32 %v716, 16
        %v820 = vrot.slane %v818, 7
        %v821 = vshll.u32 %v716, 16
        %v823 = vor.u32 %v820, %v821
        %v824 = vsel %vm740, %v816, %v823
        %v825 = vrot.slane %v820, 4
        %v827 = vshrl.u32 %v717, 16
        %v829 = vrot.slane %v827, 7
        %v830 = vshll.u32 %v717, 16
        %v832 = vor.u32 %v829, %v830
        %v833 = vrot.slane %v829, 4
        %v835 = vshrl.u32 %v718, 16
        %v837 = vrot.slane %v835, 7
        %v838 = vshll.u32 %v718, 16
        %v840 = vor.u32 %v837, %v838
        %v841 = vsel %vm740, %v833, %v840
        %v842 = vrot.slane %v837, 4
        %v844 = vshrl.u32 %v719, 16
        %v846 = vrot.slane %v844, 7
        %v847 = vshll.u32 %v719, 16
        %v849 = vor.u32 %v846, %v847
        %v850 = vrot.slane %v846, 4
        %v852 = vshrl.u32 %v720, 16
        %v854 = vrot.slane %v852, 7
        %v855 = vshll.u32 %v720, 16
        %v857 = vor.u32 %v854, %v855
        %v858 = vsel %vm740, %v850, %v857
        %v859 = vrot.slane %v854, 4
        %v861 = vshrl.u32 %v721, 16
        %v863 = vrot.slane %v861, 7
        %v864 = vshll.u32 %v721, 16
        %v866 = vor.u32 %v863, %v864
        %v867 = vrot.slane %v863, 4
        %v869 = vshrl.u32 %v722, 16
        %v871 = vrot.slane %v869, 7
        %v872 = vshll.u32 %v722, 16
        %v874 = vor.u32 %v871, %v872
        %v875 = vsel %vm740, %v867, %v874
        %v876 = vrot.slane %v871, 4
        %v878 = vshrl.u32 %v723, 16
        %v880 = vrot.slane %v878, 7
        %v881 = vshll.u32 %v723, 16
        %v883 = vor.u32 %v880, %v881
        %v884 = vrot.slane %v880, 4
        %v886 = vshrl.u32 %v724, 16
        %v888 = vrot.slane %v886, 7
        %v889 = vshll.u32 %v724, 16
        %v891 = vor.u32 %v888, %v889
        %v892 = vsel %vm740, %v884, %v891
        %v893 = vrot.slane %v888, 4
        %v895 = vshrl.u32 %v725, 16
        %v897 = vrot.slane %v895, 7
        %v898 = vshll.u32 %v725, 16
        %v900 = vor.u32 %v897, %v898
        %v901 = vrot.slane %v897, 4
        %v903 = vshrl.u32 %v726, 16
        %v905 = vrot.slane %v903, 7
        %v906 = vshll.u32 %v726, 16
        %v908 = vor.u32 %v905, %v906
        %v909 = vsel %vm740, %v901, %v908
        %v910 = vrot.slane %v905, 4
        %v912 = vshrl.u32 %v727, 16
        %v914 = vrot.slane %v912, 7
        %v915 = vshll.u32 %v727, 16
        %v917 = vor.u32 %v914, %v915
        %v918 = vrot.slane %v914, 4
        %v920 = vshrl.u32 %v728, 16
        %v922 = vrot.slane %v920, 7
        %v923 = vshll.u32 %v728, 16
        %v925 = vor.u32 %v922, %v923
        %v926 = vsel %vm740, %v918, %v925
        %v927 = vrot.slane %v922, 4
        %v929 = vshrl.u32 %v729, 16
        %v931 = vrot.slane %v929, 7
        %v932 = vshll.u32 %v729, 16
        %v934 = vor.u32 %v931, %v932
        %v935 = vrot.slane %v931, 4
        %v937 = vshrl.u32 %v730, 16
        %v939 = vrot.slane %v937, 7
        %v940 = vshll.u32 %v730, 16
        %v942 = vor.u32 %v939, %v940
        %v943 = vsel %vm740, %v935, %v942
        %v944 = vrot.slane %v939, 4
        %v946 = vshrl.u32 %v731, 16
        %v948 = vrot.slane %v946, 7
        %v949 = vshll.u32 %v731, 16
        %v951 = vor.u32 %v948, %v949
        %v952 = vrot.slane %v948, 4
        %v954 = vshrl.u32 %v732, 16
        %v956 = vrot.slane %v954, 7
        %v957 = vshll.u32 %v732, 16
        %v959 = vor.u32 %v956, %v957
        %v960 = vsel %vm740, %v952, %v959
        %v961 = vrot.slane %v956, 4
        %v963 = vshrl.u32 %v733, 16
        %v965 = vrot.slane %v963, 7
        %v966 = vshll.u32 %v733, 16
        %v968 = vor.u32 %v965, %v966
        %v969 = vrot.slane %v965, 4
        %v971 = vshrl.u32 %v734, 16
        %v973 = vrot.slane %v971, 7
        %v974 = vshll.u32 %v734, 16
        %v976 = vor.u32 %v973, %v974
        %v977 = vsel %vm740, %v969, %v976
        %v978 = vrot.slane %v973, 4
        %v980 = vshrl.u32 %v735, 16
        %v982 = vrot.slane %v980, 7
        %v983 = vshll.u32 %v735, 16
        %v985 = vor.u32 %v982, %v983
        %v986 = vrot.slane %v982, 4
        %v988 = vshrl.u32 %v736, 16
        %v990 = vrot.slane %v988, 7
        %v991 = vshll.u32 %v736, 16
        %v993 = vor.u32 %v990, %v991
        %v994 = vsel %vm740, %v986, %v993
        %v995 = vrot.slane %v990, 4
        %v997 = vshrl.u32 %v737, 16
        %v999 = vrot.slane %v997, 7
        %v1000 = vshll.u32 %v737, 16
        %v1002 = vor.u32 %v999, %v1000
        %v1003 = vrot.slane %v999, 4
        %v1005 = vshrl.u32 %v738, 16
        %v1007 = vrot.slane %v1005, 7
        %v1008 = vshll.u32 %v738, 16
        %v1010 = vor.u32 %v1007, %v1008
        %v1011 = vsel %vm740, %v1003, %v1010
        %v1012 = vrot.slane %v1007, 4
        %s1061 = scalar_lea.vmem [#allocation2], 12
        %vm1062 = vcmask 1043456
        %vm1063 = vmand %vm1062, %vm651
        %v1064 = vld [vmem:[%s1061] sm:$0xf]
        %v1065 = vsel %vm1063, %v747, %v1064
        %1066 = vst [vmem:[%s1061] sm:$0xf] %v1065
        %1067 = vst [vmem:[%s1061 + $0x4] sm:$0xf] %v756
        %v1068 = vld [vmem:[%s1061 + $0x8] sm:$0x1]
        %v1069 = vsel %vm596, %v757, %v1068
        %1070 = vst [vmem:[%s1061 + $0x8] sm:$0x1] %v1069
        %v1071 = vld [vmem:[%s1061 + $0xc] sm:$0xf]
        %v1072 = vsel %vm1063, %v764, %v1071
        %1073 = vst [vmem:[%s1061 + $0xc] sm:$0xf] %v1072
        %1074 = vst [vmem:[%s1061 + $0x10] sm:$0xf] %v773
        %v1075 = vld [vmem:[%s1061 + $0x14] sm:$0x1]
        %v1076 = vsel %vm596, %v774, %v1075
        %1077 = vst [vmem:[%s1061 + $0x14] sm:$0x1] %v1076
        %v1078 = vld [vmem:[%s1061 + $0x18] sm:$0xf]
        %v1079 = vsel %vm1063, %v781, %v1078
        %1080 = vst [vmem:[%s1061 + $0x18] sm:$0xf] %v1079
        %1081 = vst [vmem:[%s1061 + $0x1c] sm:$0xf] %v790
        %v1082 = vld [vmem:[%s1061 + $0x20] sm:$0x1]
        %v1083 = vsel %vm596, %v791, %v1082
        %1084 = vst [vmem:[%s1061 + $0x20] sm:$0x1] %v1083
        %v1085 = vld [vmem:[%s1061 + $0x24] sm:$0xf]
        %v1086 = vsel %vm1063, %v798, %v1085
        %1087 = vst [vmem:[%s1061 + $0x24] sm:$0xf] %v1086
        %1088 = vst [vmem:[%s1061 + $0x28] sm:$0xf] %v807
        %v1089 = vld [vmem:[%s1061 + $0x2c] sm:$0x1]
        %v1090 = vsel %vm596, %v808, %v1089
        %1091 = vst [vmem:[%s1061 + $0x2c] sm:$0x1] %v1090
        %v1092 = vld [vmem:[%s1061 + $0x30] sm:$0xf]
        %v1093 = vsel %vm1063, %v815, %v1092
        %1094 = vst [vmem:[%s1061 + $0x30] sm:$0xf] %v1093
        %1095 = vst [vmem:[%s1061 + $0x34] sm:$0xf] %v824
        %v1096 = vld [vmem:[%s1061 + $0x38] sm:$0x1]
        %v1097 = vsel %vm596, %v825, %v1096
        %1098 = vst [vmem:[%s1061 + $0x38] sm:$0x1] %v1097
        %v1099 = vld [vmem:[%s1061 + $0x3c] sm:$0xf]
        %v1100 = vsel %vm1063, %v832, %v1099
        %1101 = vst [vmem:[%s1061 + $0x3c] sm:$0xf] %v1100
        %1102 = vst [vmem:[%s1061 + $0x40] sm:$0xf] %v841
        %v1103 = vld [vmem:[%s1061 + $0x44] sm:$0x1]
        %v1104 = vsel %vm596, %v842, %v1103
        %1105 = vst [vmem:[%s1061 + $0x44] sm:$0x1] %v1104
        %v1106 = vld [vmem:[%s1061 + $0x48] sm:$0xf]
        %v1107 = vsel %vm1063, %v849, %v1106
        %1108 = vst [vmem:[%s1061 + $0x48] sm:$0xf] %v1107
        %1109 = vst [vmem:[%s1061 + $0x4c] sm:$0xf] %v858
        %v1110 = vld [vmem:[%s1061 + $0x50] sm:$0x1]
        %v1111 = vsel %vm596, %v859, %v1110
        %1112 = vst [vmem:[%s1061 + $0x50] sm:$0x1] %v1111
        %v1113 = vld [vmem:[%s1061 + $0x54] sm:$0xf]
        %v1114 = vsel %vm1063, %v866, %v1113
        %1115 = vst [vmem:[%s1061 + $0x54] sm:$0xf] %v1114
        %1116 = vst [vmem:[%s1061 + $0x58] sm:$0xf] %v875
        %v1117 = vld [vmem:[%s1061 + $0x5c] sm:$0x1]
        %v1118 = vsel %vm596, %v876, %v1117
        %1119 = vst [vmem:[%s1061 + $0x5c] sm:$0x1] %v1118
        %v1120 = vld [vmem:[%s1061 + $0x60] sm:$0xf]
        %v1121 = vsel %vm1063, %v883, %v1120
        %1122 = vst [vmem:[%s1061 + $0x60] sm:$0xf] %v1121
        %1123 = vst [vmem:[%s1061 + $0x64] sm:$0xf] %v892
        %v1124 = vld [vmem:[%s1061 + $0x68] sm:$0x1]
        %v1125 = vsel %vm596, %v893, %v1124
        %1126 = vst [vmem:[%s1061 + $0x68] sm:$0x1] %v1125
        %v1127 = vld [vmem:[%s1061 + $0x6c] sm:$0xf]
        %v1128 = vsel %vm1063, %v900, %v1127
        %1129 = vst [vmem:[%s1061 + $0x6c] sm:$0xf] %v1128
        %1130 = vst [vmem:[%s1061 + $0x70] sm:$0xf] %v909
        %v1131 = vld [vmem:[%s1061 + $0x74] sm:$0x1]
        %v1132 = vsel %vm596, %v910, %v1131
        %1133 = vst [vmem:[%s1061 + $0x74] sm:$0x1] %v1132
        %v1134 = vld [vmem:[%s1061 + $0x78] sm:$0xf]
        %v1135 = vsel %vm1063, %v917, %v1134
        %1136 = vst [vmem:[%s1061 + $0x78] sm:$0xf] %v1135
        %1137 = vst [vmem:[%s1061 + $0x7c] sm:$0xf] %v926
        %v1138 = vld [vmem:[%s1061 + $0x80] sm:$0x1]
        %v1139 = vsel %vm596, %v927, %v1138
        %1140 = vst [vmem:[%s1061 + $0x80] sm:$0x1] %v1139
        %v1141 = vld [vmem:[%s1061 + $0x84] sm:$0xf]
        %v1142 = vsel %vm1063, %v934, %v1141
        %1143 = vst [vmem:[%s1061 + $0x84] sm:$0xf] %v1142
        %1144 = vst [vmem:[%s1061 + $0x88] sm:$0xf] %v943
        %v1145 = vld [vmem:[%s1061 + $0x8c] sm:$0x1]
        %v1146 = vsel %vm596, %v944, %v1145
        %1147 = vst [vmem:[%s1061 + $0x8c] sm:$0x1] %v1146
        %v1148 = vld [vmem:[%s1061 + $0x90] sm:$0xf]
        %v1149 = vsel %vm1063, %v951, %v1148
        %1150 = vst [vmem:[%s1061 + $0x90] sm:$0xf] %v1149
        %1151 = vst [vmem:[%s1061 + $0x94] sm:$0xf] %v960
        %v1152 = vld [vmem:[%s1061 + $0x98] sm:$0x1]
        %v1153 = vsel %vm596, %v961, %v1152
        %1154 = vst [vmem:[%s1061 + $0x98] sm:$0x1] %v1153
        %v1155 = vld [vmem:[%s1061 + $0x9c] sm:$0xf]
        %v1156 = vsel %vm1063, %v968, %v1155
        %1157 = vst [vmem:[%s1061 + $0x9c] sm:$0xf] %v1156
        %1158 = vst [vmem:[%s1061 + $0xa0] sm:$0xf] %v977
        %v1159 = vld [vmem:[%s1061 + $0xa4] sm:$0x1]
        %v1160 = vsel %vm596, %v978, %v1159
        %1161 = vst [vmem:[%s1061 + $0xa4] sm:$0x1] %v1160
        %v1162 = vld [vmem:[%s1061 + $0xa8] sm:$0xf]
        %v1163 = vsel %vm1063, %v985, %v1162
        %1164 = vst [vmem:[%s1061 + $0xa8] sm:$0xf] %v1163
        %1165 = vst [vmem:[%s1061 + $0xac] sm:$0xf] %v994
        %v1166 = vld [vmem:[%s1061 + $0xb0] sm:$0x1]
        %v1167 = vsel %vm596, %v995, %v1166
        %1168 = vst [vmem:[%s1061 + $0xb0] sm:$0x1] %v1167
        %v1169 = vld [vmem:[%s1061 + $0xb4] sm:$0xf]
        %v1170 = vsel %vm1063, %v1002, %v1169
        %1171 = vst [vmem:[%s1061 + $0xb4] sm:$0xf] %v1170
        %1172 = vst [vmem:[%s1061 + $0xb8] sm:$0xf] %v1011
        %v1173 = vld [vmem:[%s1061 + $0xbc] sm:$0x1]
        %v1174 = vsel %vm596, %v1012, %v1173
        %1175 = vst [vmem:[%s1061 + $0xbc] sm:$0x1] %v1174
        %v1176 = vld [vmem:[#allocation2] sm:$0xf]
        %v1177 = vld [vmem:[#allocation2 + $0x4] sm:$0xf]
        %v1178 = vld [vmem:[#allocation2 + $0xc] sm:$0xf]
        %v1179 = vld [vmem:[#allocation2 + $0x10] sm:$0xf]
        %v1180 = vld [vmem:[#allocation2 + $0x18] sm:$0xf]
        %v1181 = vld [vmem:[#allocation2 + $0x1c] sm:$0xf]
        %v1182 = vld [vmem:[#allocation2 + $0x24] sm:$0xf]
        %v1183 = vld [vmem:[#allocation2 + $0x28] sm:$0xf]
        %v1184 = vld [vmem:[#allocation2 + $0x30] sm:$0xf]
        %v1185 = vld [vmem:[#allocation2 + $0x34] sm:$0xf]
        %v1186 = vld [vmem:[#allocation2 + $0x3c] sm:$0xf]
        %v1187 = vld [vmem:[#allocation2 + $0x40] sm:$0xf]
        %v1188 = vld [vmem:[#allocation2 + $0x48] sm:$0xf]
        %v1189 = vld [vmem:[#allocation2 + $0x4c] sm:$0xf]
        %v1190 = vld [vmem:[#allocation2 + $0x54] sm:$0xf]
        %v1191 = vld [vmem:[#allocation2 + $0x58] sm:$0xf]
        %v1192 = vld [vmem:[#allocation2 + $0x60] sm:$0xf]
        %v1193 = vld [vmem:[#allocation2 + $0x64] sm:$0xf]
        %v1194 = vld [vmem:[#allocation2 + $0x6c] sm:$0xf]
        %v1195 = vld [vmem:[#allocation2 + $0x70] sm:$0xf]
        %v1196 = vld [vmem:[#allocation2 + $0x78] sm:$0xf]
        %v1197 = vld [vmem:[#allocation2 + $0x7c] sm:$0xf]
        %v1198 = vld [vmem:[#allocation2 + $0x84] sm:$0xf]
        %v1199 = vld [vmem:[#allocation2 + $0x88] sm:$0xf]
        %v1200 = vld [vmem:[#allocation2 + $0x90] sm:$0xf]
        %v1201 = vld [vmem:[#allocation2 + $0x94] sm:$0xf]
        %v1202 = vld [vmem:[#allocation2 + $0x9c] sm:$0xf]
        %v1203 = vld [vmem:[#allocation2 + $0xa0] sm:$0xf]
        %v1204 = vld [vmem:[#allocation2 + $0xa8] sm:$0xf]
        %v1205 = vld [vmem:[#allocation2 + $0xac] sm:$0xf]
        %v1206 = vld [vmem:[#allocation2 + $0xb4] sm:$0xf]
        %v1207 = vld [vmem:[#allocation2 + $0xb8] sm:$0xf]
        %1208 = vst [vmem:[#allocation3] sm:$0xf] %v1176
        %1209 = vst [vmem:[#allocation3 + $0x24] sm:$0xf] %v1177
        %1210 = vst [vmem:[#allocation3 + $0x48] sm:$0xf] %v1178
        %1211 = vst [vmem:[#allocation3 + $0x6c] sm:$0xf] %v1179
        %1212 = vst [vmem:[#allocation3 + $0x90] sm:$0xf] %v1180
        %1213 = vst [vmem:[#allocation3 + $0xb4] sm:$0xf] %v1181
        %1214 = vst [vmem:[#allocation3 + $0xd8] sm:$0xf] %v1182
        %1215 = vst [vmem:[#allocation3 + $0xfc] sm:$0xf] %v1183
        %1216 = vst [vmem:[#allocation3 + $0x120] sm:$0xf] %v1184
        %1217 = vst [vmem:[#allocation3 + $0x144] sm:$0xf] %v1185
        %1218 = vst [vmem:[#allocation3 + $0x168] sm:$0xf] %v1186
        %1219 = vst [vmem:[#allocation3 + $0x18c] sm:$0xf] %v1187
        %1220 = vst [vmem:[#allocation3 + $0x1b0] sm:$0xf] %v1188
        %1221 = vst [vmem:[#allocation3 + $0x1d4] sm:$0xf] %v1189
        %1222 = vst [vmem:[#allocation3 + $0x1f8] sm:$0xf] %v1190
        %1223 = vst [vmem:[#allocation3 + $0x21c] sm:$0xf] %v1191
        %1224 = vst [vmem:[#allocation3 + $0x240] sm:$0xf] %v1192
        %1225 = vst [vmem:[#allocation3 + $0x264] sm:$0xf] %v1193
        %1226 = vst [vmem:[#allocation3 + $0x288] sm:$0xf] %v1194
        %1227 = vst [vmem:[#allocation3 + $0x2ac] sm:$0xf] %v1195
        %1228 = vst [vmem:[#allocation3 + $0x2d0] sm:$0xf] %v1196
        %1229 = vst [vmem:[#allocation3 + $0x2f4] sm:$0xf] %v1197
        %1230 = vst [vmem:[#allocation3 + $0x318] sm:$0xf] %v1198
        %1231 = vst [vmem:[#allocation3 + $0x33c] sm:$0xf] %v1199
        %1232 = vst [vmem:[#allocation3 + $0x360] sm:$0xf] %v1200
        %1233 = vst [vmem:[#allocation3 + $0x384] sm:$0xf] %v1201
        %1234 = vst [vmem:[#allocation3 + $0x3a8] sm:$0xf] %v1202
        %1235 = vst [vmem:[#allocation3 + $0x3cc] sm:$0xf] %v1203
        %1236 = vst [vmem:[#allocation3 + $0x3f0] sm:$0xf] %v1204
        %1237 = vst [vmem:[#allocation3 + $0x414] sm:$0xf] %v1205
        %1238 = vst [vmem:[#allocation3 + $0x438] sm:$0xf] %v1206
        %1239 = vst [vmem:[#allocation3 + $0x45c] sm:$0xf] %v1207
        %v1240 = vld [vmem:[#allocation2] sm:$0xf]
        %v1241 = vld [vmem:[#allocation2 + $0x4] sm:$0xf]
        %v1242 = vld [vmem:[#allocation2 + $0x8] sm:$0x1]
        %v1243 = vld [vmem:[#allocation2 + $0xc] sm:$0xf]
        %v1244 = vld [vmem:[#allocation2 + $0x10] sm:$0xf]
        %v1245 = vld [vmem:[#allocation2 + $0x14] sm:$0x1]
        %v1246 = vld [vmem:[#allocation2 + $0x18] sm:$0xf]
        %v1247 = vld [vmem:[#allocation2 + $0x1c] sm:$0xf]
        %v1248 = vld [vmem:[#allocation2 + $0x20] sm:$0x1]
        %v1249 = vld [vmem:[#allocation2 + $0x24] sm:$0xf]
        %v1250 = vld [vmem:[#allocation2 + $0x28] sm:$0xf]
        %v1251 = vld [vmem:[#allocation2 + $0x2c] sm:$0x1]
        %v1252 = vld [vmem:[#allocation2 + $0x30] sm:$0xf]
        %v1253 = vld [vmem:[#allocation2 + $0x34] sm:$0xf]
        %v1254 = vld [vmem:[#allocation2 + $0x38] sm:$0x1]
        %v1255 = vld [vmem:[#allocation2 + $0x3c] sm:$0xf]
        %v1256 = vld [vmem:[#allocation2 + $0x40] sm:$0xf]
        %v1257 = vld [vmem:[#allocation2 + $0x44] sm:$0x1]
        %v1258 = vld [vmem:[#allocation2 + $0x48] sm:$0xf]
        %v1259 = vld [vmem:[#allocation2 + $0x4c] sm:$0xf]
        %v1260 = vld [vmem:[#allocation2 + $0x50] sm:$0x1]
        %v1261 = vld [vmem:[#allocation2 + $0x54] sm:$0xf]
        %v1262 = vld [vmem:[#allocation2 + $0x58] sm:$0xf]
        %v1263 = vld [vmem:[#allocation2 + $0x5c] sm:$0x1]
        %v1264 = vld [vmem:[#allocation2 + $0x60] sm:$0xf]
        %v1265 = vld [vmem:[#allocation2 + $0x64] sm:$0xf]
        %v1266 = vld [vmem:[#allocation2 + $0x68] sm:$0x1]
        %v1267 = vld [vmem:[#allocation2 + $0x6c] sm:$0xf]
        %v1268 = vld [vmem:[#allocation2 + $0x70] sm:$0xf]
        %v1269 = vld [vmem:[#allocation2 + $0x74] sm:$0x1]
        %v1270 = vld [vmem:[#allocation2 + $0x78] sm:$0xf]
        %v1271 = vld [vmem:[#allocation2 + $0x7c] sm:$0xf]
        %v1272 = vld [vmem:[#allocation2 + $0x80] sm:$0x1]
        %v1273 = vld [vmem:[#allocation2 + $0x84] sm:$0xf]
        %v1274 = vld [vmem:[#allocation2 + $0x88] sm:$0xf]
        %v1275 = vld [vmem:[#allocation2 + $0x8c] sm:$0x1]
        %v1276 = vld [vmem:[#allocation2 + $0x90] sm:$0xf]
        %v1277 = vld [vmem:[#allocation2 + $0x94] sm:$0xf]
        %v1278 = vld [vmem:[#allocation2 + $0x98] sm:$0x1]
        %v1279 = vld [vmem:[#allocation2 + $0x9c] sm:$0xf]
        %v1280 = vld [vmem:[#allocation2 + $0xa0] sm:$0xf]
        %v1281 = vld [vmem:[#allocation2 + $0xa4] sm:$0x1]
        %v1282 = vld [vmem:[#allocation2 + $0xa8] sm:$0xf]
        %v1283 = vld [vmem:[#allocation2 + $0xac] sm:$0xf]
        %v1284 = vld [vmem:[#allocation2 + $0xb0] sm:$0x1]
        %v1285 = vld [vmem:[#allocation2 + $0xb4] sm:$0xf]
        %v1286 = vld [vmem:[#allocation2 + $0xb8] sm:$0xf]
        %v1287 = vld [vmem:[#allocation2 + $0xbc] sm:$0x1]
        %vm1288 = vsmask.f32 3328
        %vm1289 = vsmask.f32 7440
        %vm1290 = vmor %vm1288, %vm1289
        %v1292 = vshrl.u32 %v1240, 16
        %v1294 = vrot.slane %v1292, 4
        %v1295 = vshll.u32 %v1240, 16
        %v1297 = vrot.slane %v1295, 5
        %v1298 = vor.u32 %v1294, %v1297
        %v1299 = vrot.slane %v1298, 4
        %v1301 = vshll.u32 %v1241, 16
        %v1303 = vrot.slane %v1301, 5
        %v1304 = vsel %vm1290, %v1299, %v1303
        %v1305 = vshrl.u32 %v1241, 16
        %v1307 = vrot.slane %v1305, 4
        %v1308 = vor.u32 %v1307, %v1303
        %v1309 = vrot.slane %v1308, 4
        %v1311 = vshll.u32 %v1242, 16
        %v1313 = vrot.slane %v1311, 5
        %v1314 = vsel %vm1290, %v1309, %v1313
        %v1316 = vshrl.u32 %v1243, 16
        %v1318 = vrot.slane %v1316, 4
        %v1319 = vshll.u32 %v1243, 16
        %v1321 = vrot.slane %v1319, 5
        %v1322 = vor.u32 %v1318, %v1321
        %v1323 = vrot.slane %v1322, 4
        %v1325 = vshll.u32 %v1244, 16
        %v1327 = vrot.slane %v1325, 5
        %v1328 = vsel %vm1290, %v1323, %v1327
        %v1329 = vshrl.u32 %v1244, 16
        %v1331 = vrot.slane %v1329, 4
        %v1332 = vor.u32 %v1331, %v1327
        %v1333 = vrot.slane %v1332, 4
        %v1335 = vshll.u32 %v1245, 16
        %v1337 = vrot.slane %v1335, 5
        %v1338 = vsel %vm1290, %v1333, %v1337
        %v1340 = vshrl.u32 %v1246, 16
        %v1342 = vrot.slane %v1340, 4
        %v1343 = vshll.u32 %v1246, 16
        %v1345 = vrot.slane %v1343, 5
        %v1346 = vor.u32 %v1342, %v1345
        %v1347 = vrot.slane %v1346, 4
        %v1349 = vshll.u32 %v1247, 16
        %v1351 = vrot.slane %v1349, 5
        %v1352 = vsel %vm1290, %v1347, %v1351
        %v1353 = vshrl.u32 %v1247, 16
        %v1355 = vrot.slane %v1353, 4
        %v1356 = vor.u32 %v1355, %v1351
        %v1357 = vrot.slane %v1356, 4
        %v1359 = vshll.u32 %v1248, 16
        %v1361 = vrot.slane %v1359, 5
        %v1362 = vsel %vm1290, %v1357, %v1361
        %v1364 = vshrl.u32 %v1249, 16
        %v1366 = vrot.slane %v1364, 4
        %v1367 = vshll.u32 %v1249, 16
        %v1369 = vrot.slane %v1367, 5
        %v1370 = vor.u32 %v1366, %v1369
        %v1371 = vrot.slane %v1370, 4
        %v1373 = vshll.u32 %v1250, 16
        %v1375 = vrot.slane %v1373, 5
        %v1376 = vsel %vm1290, %v1371, %v1375
        %v1377 = vshrl.u32 %v1250, 16
        %v1379 = vrot.slane %v1377, 4
        %v1380 = vor.u32 %v1379, %v1375
        %v1381 = vrot.slane %v1380, 4
        %v1383 = vshll.u32 %v1251, 16
        %v1385 = vrot.slane %v1383, 5
        %v1386 = vsel %vm1290, %v1381, %v1385
        %v1388 = vshrl.u32 %v1252, 16
        %v1390 = vrot.slane %v1388, 4
        %v1391 = vshll.u32 %v1252, 16
        %v1393 = vrot.slane %v1391, 5
        %v1394 = vor.u32 %v1390, %v1393
        %v1395 = vrot.slane %v1394, 4
        %v1397 = vshll.u32 %v1253, 16
        %v1399 = vrot.slane %v1397, 5
        %v1400 = vsel %vm1290, %v1395, %v1399
        %v1401 = vshrl.u32 %v1253, 16
        %v1403 = vrot.slane %v1401, 4
        %v1404 = vor.u32 %v1403, %v1399
        %v1405 = vrot.slane %v1404, 4
        %v1407 = vshll.u32 %v1254, 16
        %v1409 = vrot.slane %v1407, 5
        %v1410 = vsel %vm1290, %v1405, %v1409
        %v1412 = vshrl.u32 %v1255, 16
        %v1414 = vrot.slane %v1412, 4
        %v1415 = vshll.u32 %v1255, 16
        %v1417 = vrot.slane %v1415, 5
        %v1418 = vor.u32 %v1414, %v1417
        %v1419 = vrot.slane %v1418, 4
        %v1421 = vshll.u32 %v1256, 16
        %v1423 = vrot.slane %v1421, 5
        %v1424 = vsel %vm1290, %v1419, %v1423
        %v1425 = vshrl.u32 %v1256, 16
        %v1427 = vrot.slane %v1425, 4
        %v1428 = vor.u32 %v1427, %v1423
        %v1429 = vrot.slane %v1428, 4
        %v1431 = vshll.u32 %v1257, 16
        %v1433 = vrot.slane %v1431, 5
        %v1434 = vsel %vm1290, %v1429, %v1433
        %v1436 = vshrl.u32 %v1258, 16
        %v1438 = vrot.slane %v1436, 4
        %v1439 = vshll.u32 %v1258, 16
        %v1441 = vrot.slane %v1439, 5
        %v1442 = vor.u32 %v1438, %v1441
        %v1443 = vrot.slane %v1442, 4
        %v1445 = vshll.u32 %v1259, 16
        %v1447 = vrot.slane %v1445, 5
        %v1448 = vsel %vm1290, %v1443, %v1447
        %v1449 = vshrl.u32 %v1259, 16
        %v1451 = vrot.slane %v1449, 4
        %v1452 = vor.u32 %v1451, %v1447
        %v1453 = vrot.slane %v1452, 4
        %v1455 = vshll.u32 %v1260, 16
        %v1457 = vrot.slane %v1455, 5
        %v1458 = vsel %vm1290, %v1453, %v1457
        %v1460 = vshrl.u32 %v1261, 16
        %v1462 = vrot.slane %v1460, 4
        %v1463 = vshll.u32 %v1261, 16
        %v1465 = vrot.slane %v1463, 5
        %v1466 = vor.u32 %v1462, %v1465
        %v1467 = vrot.slane %v1466, 4
        %v1469 = vshll.u32 %v1262, 16
        %v1471 = vrot.slane %v1469, 5
        %v1472 = vsel %vm1290, %v1467, %v1471
        %v1473 = vshrl.u32 %v1262, 16
        %v1475 = vrot.slane %v1473, 4
        %v1476 = vor.u32 %v1475, %v1471
        %v1477 = vrot.slane %v1476, 4
        %v1479 = vshll.u32 %v1263, 16
        %v1481 = vrot.slane %v1479, 5
        %v1482 = vsel %vm1290, %v1477, %v1481
        %v1484 = vshrl.u32 %v1264, 16
        %v1486 = vrot.slane %v1484, 4
        %v1487 = vshll.u32 %v1264, 16
        %v1489 = vrot.slane %v1487, 5
        %v1490 = vor.u32 %v1486, %v1489
        %v1491 = vrot.slane %v1490, 4
        %v1493 = vshll.u32 %v1265, 16
        %v1495 = vrot.slane %v1493, 5
        %v1496 = vsel %vm1290, %v1491, %v1495
        %v1497 = vshrl.u32 %v1265, 16
        %v1499 = vrot.slane %v1497, 4
        %v1500 = vor.u32 %v1499, %v1495
        %v1501 = vrot.slane %v1500, 4
        %v1503 = vshll.u32 %v1266, 16
        %v1505 = vrot.slane %v1503, 5
        %v1506 = vsel %vm1290, %v1501, %v1505
        %v1508 = vshrl.u32 %v1267, 16
        %v1510 = vrot.slane %v1508, 4
        %v1511 = vshll.u32 %v1267, 16
        %v1513 = vrot.slane %v1511, 5
        %v1514 = vor.u32 %v1510, %v1513
        %v1515 = vrot.slane %v1514, 4
        %v1517 = vshll.u32 %v1268, 16
        %v1519 = vrot.slane %v1517, 5
        %v1520 = vsel %vm1290, %v1515, %v1519
        %v1521 = vshrl.u32 %v1268, 16
        %v1523 = vrot.slane %v1521, 4
        %v1524 = vor.u32 %v1523, %v1519
        %v1525 = vrot.slane %v1524, 4
        %v1527 = vshll.u32 %v1269, 16
        %v1529 = vrot.slane %v1527, 5
        %v1530 = vsel %vm1290, %v1525, %v1529
        %v1532 = vshrl.u32 %v1270, 16
        %v1534 = vrot.slane %v1532, 4
        %v1535 = vshll.u32 %v1270, 16
        %v1537 = vrot.slane %v1535, 5
        %v1538 = vor.u32 %v1534, %v1537
        %v1539 = vrot.slane %v1538, 4
        %v1541 = vshll.u32 %v1271, 16
        %v1543 = vrot.slane %v1541, 5
        %v1544 = vsel %vm1290, %v1539, %v1543
        %v1545 = vshrl.u32 %v1271, 16
        %v1547 = vrot.slane %v1545, 4
        %v1548 = vor.u32 %v1547, %v1543
        %v1549 = vrot.slane %v1548, 4
        %v1551 = vshll.u32 %v1272, 16
        %v1553 = vrot.slane %v1551, 5
        %v1554 = vsel %vm1290, %v1549, %v1553
        %v1556 = vshrl.u32 %v1273, 16
        %v1558 = vrot.slane %v1556, 4
        %v1559 = vshll.u32 %v1273, 16
        %v1561 = vrot.slane %v1559, 5
        %v1562 = vor.u32 %v1558, %v1561
        %v1563 = vrot.slane %v1562, 4
        %v1565 = vshll.u32 %v1274, 16
        %v1567 = vrot.slane %v1565, 5
        %v1568 = vsel %vm1290, %v1563, %v1567
        %v1569 = vshrl.u32 %v1274, 16
        %v1571 = vrot.slane %v1569, 4
        %v1572 = vor.u32 %v1571, %v1567
        %v1573 = vrot.slane %v1572, 4
        %v1575 = vshll.u32 %v1275, 16
        %v1577 = vrot.slane %v1575, 5
        %v1578 = vsel %vm1290, %v1573, %v1577
        %v1580 = vshrl.u32 %v1276, 16
        %v1582 = vrot.slane %v1580, 4
        %v1583 = vshll.u32 %v1276, 16
        %v1585 = vrot.slane %v1583, 5
        %v1586 = vor.u32 %v1582, %v1585
        %v1587 = vrot.slane %v1586, 4
        %v1589 = vshll.u32 %v1277, 16
        %v1591 = vrot.slane %v1589, 5
        %v1592 = vsel %vm1290, %v1587, %v1591
        %v1593 = vshrl.u32 %v1277, 16
        %v1595 = vrot.slane %v1593, 4
        %v1596 = vor.u32 %v1595, %v1591
        %v1597 = vrot.slane %v1596, 4
        %v1599 = vshll.u32 %v1278, 16
        %v1601 = vrot.slane %v1599, 5
        %v1602 = vsel %vm1290, %v1597, %v1601
        %v1604 = vshrl.u32 %v1279, 16
        %v1606 = vrot.slane %v1604, 4
        %v1607 = vshll.u32 %v1279, 16
        %v1609 = vrot.slane %v1607, 5
        %v1610 = vor.u32 %v1606, %v1609
        %v1611 = vrot.slane %v1610, 4
        %v1613 = vshll.u32 %v1280, 16
        %v1615 = vrot.slane %v1613, 5
        %v1616 = vsel %vm1290, %v1611, %v1615
        %v1617 = vshrl.u32 %v1280, 16
        %v1619 = vrot.slane %v1617, 4
        %v1620 = vor.u32 %v1619, %v1615
        %v1621 = vrot.slane %v1620, 4
        %v1623 = vshll.u32 %v1281, 16
        %v1625 = vrot.slane %v1623, 5
        %v1626 = vsel %vm1290, %v1621, %v1625
        %v1628 = vshrl.u32 %v1282, 16
        %v1630 = vrot.slane %v1628, 4
        %v1631 = vshll.u32 %v1282, 16
        %v1633 = vrot.slane %v1631, 5
        %v1634 = vor.u32 %v1630, %v1633
        %v1635 = vrot.slane %v1634, 4
        %v1637 = vshll.u32 %v1283, 16
        %v1639 = vrot.slane %v1637, 5
        %v1640 = vsel %vm1290, %v1635, %v1639
        %v1641 = vshrl.u32 %v1283, 16
        %v1643 = vrot.slane %v1641, 4
        %v1644 = vor.u32 %v1643, %v1639
        %v1645 = vrot.slane %v1644, 4
        %v1647 = vshll.u32 %v1284, 16
        %v1649 = vrot.slane %v1647, 5
        %v1650 = vsel %vm1290, %v1645, %v1649
        %v1652 = vshrl.u32 %v1285, 16
        %v1654 = vrot.slane %v1652, 4
        %v1655 = vshll.u32 %v1285, 16
        %v1657 = vrot.slane %v1655, 5
        %v1658 = vor.u32 %v1654, %v1657
        %v1659 = vrot.slane %v1658, 4
        %v1661 = vshll.u32 %v1286, 16
        %v1663 = vrot.slane %v1661, 5
        %v1664 = vsel %vm1290, %v1659, %v1663
        %v1665 = vshrl.u32 %v1286, 16
        %v1667 = vrot.slane %v1665, 4
        %v1668 = vor.u32 %v1667, %v1663
        %v1669 = vrot.slane %v1668, 4
        %v1671 = vshll.u32 %v1287, 16
        %v1673 = vrot.slane %v1671, 5
        %v1674 = vsel %vm1290, %v1669, %v1673
        %1707 = vst [vmem:[#allocation3 + $0x4] sm:$0xf] %v1304
        %1708 = vst [vmem:[#allocation3 + $0x28] sm:$0xf] %v1314
        %1709 = vst [vmem:[#allocation3 + $0x4c] sm:$0xf] %v1328
        %1710 = vst [vmem:[#allocation3 + $0x70] sm:$0xf] %v1338
        %1711 = vst [vmem:[#allocation3 + $0x94] sm:$0xf] %v1352
        %1712 = vst [vmem:[#allocation3 + $0xb8] sm:$0xf] %v1362
        %1713 = vst [vmem:[#allocation3 + $0xdc] sm:$0xf] %v1376
        %1714 = vst [vmem:[#allocation3 + $0x100] sm:$0xf] %v1386
        %1715 = vst [vmem:[#allocation3 + $0x124] sm:$0xf] %v1400
        %1716 = vst [vmem:[#allocation3 + $0x148] sm:$0xf] %v1410
        %1717 = vst [vmem:[#allocation3 + $0x16c] sm:$0xf] %v1424
        %1718 = vst [vmem:[#allocation3 + $0x190] sm:$0xf] %v1434
        %1719 = vst [vmem:[#allocation3 + $0x1b4] sm:$0xf] %v1448
        %1720 = vst [vmem:[#allocation3 + $0x1d8] sm:$0xf] %v1458
        %1721 = vst [vmem:[#allocation3 + $0x1fc] sm:$0xf] %v1472
        %1722 = vst [vmem:[#allocation3 + $0x220] sm:$0xf] %v1482
        %1723 = vst [vmem:[#allocation3 + $0x244] sm:$0xf] %v1496
        %1724 = vst [vmem:[#allocation3 + $0x268] sm:$0xf] %v1506
        %1725 = vst [vmem:[#allocation3 + $0x28c] sm:$0xf] %v1520
        %1726 = vst [vmem:[#allocation3 + $0x2b0] sm:$0xf] %v1530
        %1727 = vst [vmem:[#allocation3 + $0x2d4] sm:$0xf] %v1544
        %1728 = vst [vmem:[#allocation3 + $0x2f8] sm:$0xf] %v1554
        %1729 = vst [vmem:[#allocation3 + $0x31c] sm:$0xf] %v1568
        %1730 = vst [vmem:[#allocation3 + $0x340] sm:$0xf] %v1578
        %1731 = vst [vmem:[#allocation3 + $0x364] sm:$0xf] %v1592
        %1732 = vst [vmem:[#allocation3 + $0x388] sm:$0xf] %v1602
        %1733 = vst [vmem:[#allocation3 + $0x3ac] sm:$0xf] %v1616
        %1734 = vst [vmem:[#allocation3 + $0x3d0] sm:$0xf] %v1626
        %1735 = vst [vmem:[#allocation3 + $0x3f4] sm:$0xf] %v1640
        %1736 = vst [vmem:[#allocation3 + $0x418] sm:$0xf] %v1650
        %1737 = vst [vmem:[#allocation3 + $0x43c] sm:$0xf] %v1664
        %1738 = vst [vmem:[#allocation3 + $0x460] sm:$0xf] %v1674
        %v1739 = vld [vmem:[#allocation2] sm:$0xe]
        %v1740 = vld [vmem:[#allocation2 + $0x4] sm:$0xf]
        %v1741 = vld [vmem:[#allocation2 + $0x8] sm:$0x1]
        %v1742 = vld [vmem:[#allocation2 + $0xc] sm:$0xe]
        %v1743 = vld [vmem:[#allocation2 + $0x10] sm:$0xf]
        %v1744 = vld [vmem:[#allocation2 + $0x14] sm:$0x1]
        %v1745 = vld [vmem:[#allocation2 + $0x18] sm:$0xe]
        %v1746 = vld [vmem:[#allocation2 + $0x1c] sm:$0xf]
        %v1747 = vld [vmem:[#allocation2 + $0x20] sm:$0x1]
        %v1748 = vld [vmem:[#allocation2 + $0x24] sm:$0xe]
        %v1749 = vld [vmem:[#allocation2 + $0x28] sm:$0xf]
        %v1750 = vld [vmem:[#allocation2 + $0x2c] sm:$0x1]
        %v1751 = vld [vmem:[#allocation2 + $0x30] sm:$0xe]
        %v1752 = vld [vmem:[#allocation2 + $0x34] sm:$0xf]
        %v1753 = vld [vmem:[#allocation2 + $0x38] sm:$0x1]
        %v1754 = vld [vmem:[#allocation2 + $0x3c] sm:$0xe]
        %v1755 = vld [vmem:[#allocation2 + $0x40] sm:$0xf]
        %v1756 = vld [vmem:[#allocation2 + $0x44] sm:$0x1]
        %v1757 = vld [vmem:[#allocation2 + $0x48] sm:$0xe]
        %v1758 = vld [vmem:[#allocation2 + $0x4c] sm:$0xf]
        %v1759 = vld [vmem:[#allocation2 + $0x50] sm:$0x1]
        %v1760 = vld [vmem:[#allocation2 + $0x54] sm:$0xe]
        %v1761 = vld [vmem:[#allocation2 + $0x58] sm:$0xf]
        %v1762 = vld [vmem:[#allocation2 + $0x5c] sm:$0x1]
        %v1763 = vld [vmem:[#allocation2 + $0x60] sm:$0xe]
        %v1764 = vld [vmem:[#allocation2 + $0x64] sm:$0xf]
        %v1765 = vld [vmem:[#allocation2 + $0x68] sm:$0x1]
        %v1766 = vld [vmem:[#allocation2 + $0x6c] sm:$0xe]
        %v1767 = vld [vmem:[#allocation2 + $0x70] sm:$0xf]
        %v1768 = vld [vmem:[#allocation2 + $0x74] sm:$0x1]
        %v1769 = vld [vmem:[#allocation2 + $0x78] sm:$0xe]
        %v1770 = vld [vmem:[#allocation2 + $0x7c] sm:$0xf]
        %v1771 = vld [vmem:[#allocation2 + $0x80] sm:$0x1]
        %v1772 = vld [vmem:[#allocation2 + $0x84] sm:$0xe]
        %v1773 = vld [vmem:[#allocation2 + $0x88] sm:$0xf]
        %v1774 = vld [vmem:[#allocation2 + $0x8c] sm:$0x1]
        %v1775 = vld [vmem:[#allocation2 + $0x90] sm:$0xe]
        %v1776 = vld [vmem:[#allocation2 + $0x94] sm:$0xf]
        %v1777 = vld [vmem:[#allocation2 + $0x98] sm:$0x1]
        %v1778 = vld [vmem:[#allocation2 + $0x9c] sm:$0xe]
        %v1779 = vld [vmem:[#allocation2 + $0xa0] sm:$0xf]
        %v1780 = vld [vmem:[#allocation2 + $0xa4] sm:$0x1]
        %v1781 = vld [vmem:[#allocation2 + $0xa8] sm:$0xe]
        %v1782 = vld [vmem:[#allocation2 + $0xac] sm:$0xf]
        %v1783 = vld [vmem:[#allocation2 + $0xb0] sm:$0x1]
        %v1784 = vld [vmem:[#allocation2 + $0xb4] sm:$0xe]
        %v1785 = vld [vmem:[#allocation2 + $0xb8] sm:$0xf]
        %v1786 = vld [vmem:[#allocation2 + $0xbc] sm:$0x1]
        %vm1835 = vcmask 1042432
        %vm1836 = vcmask 1046532
        %vm1837 = vmor %vm1835, %vm1836
        %v1838 = vrot.slane %v1739, 5
        %v1839 = vrot.slane %v1838, 4
        %v1840 = vrot.slane %v1740, 5
        %v1841 = vsel %vm1837, %v1839, %v1840
        %v1842 = vrot.slane %v1840, 4
        %v1843 = vrot.slane %v1741, 5
        %v1844 = vsel %vm1837, %v1842, %v1843
        %v1845 = vrot.slane %v1742, 5
        %v1846 = vrot.slane %v1845, 4
        %v1847 = vrot.slane %v1743, 5
        %v1848 = vsel %vm1837, %v1846, %v1847
        %v1849 = vrot.slane %v1847, 4
        %v1850 = vrot.slane %v1744, 5
        %v1851 = vsel %vm1837, %v1849, %v1850
        %v1852 = vrot.slane %v1745, 5
        %v1853 = vrot.slane %v1852, 4
        %v1854 = vrot.slane %v1746, 5
        %v1855 = vsel %vm1837, %v1853, %v1854
        %v1856 = vrot.slane %v1854, 4
        %v1857 = vrot.slane %v1747, 5
        %v1858 = vsel %vm1837, %v1856, %v1857
        %v1859 = vrot.slane %v1748, 5
        %v1860 = vrot.slane %v1859, 4
        %v1861 = vrot.slane %v1749, 5
        %v1862 = vsel %vm1837, %v1860, %v1861
        %v1863 = vrot.slane %v1861, 4
        %v1864 = vrot.slane %v1750, 5
        %v1865 = vsel %vm1837, %v1863, %v1864
        %v1866 = vrot.slane %v1751, 5
        %v1867 = vrot.slane %v1866, 4
        %v1868 = vrot.slane %v1752, 5
        %v1869 = vsel %vm1837, %v1867, %v1868
        %v1870 = vrot.slane %v1868, 4
        %v1871 = vrot.slane %v1753, 5
        %v1872 = vsel %vm1837, %v1870, %v1871
        %v1873 = vrot.slane %v1754, 5
        %v1874 = vrot.slane %v1873, 4
        %v1875 = vrot.slane %v1755, 5
        %v1876 = vsel %vm1837, %v1874, %v1875
        %v1877 = vrot.slane %v1875, 4
        %v1878 = vrot.slane %v1756, 5
        %v1879 = vsel %vm1837, %v1877, %v1878
        %v1880 = vrot.slane %v1757, 5
        %v1881 = vrot.slane %v1880, 4
        %v1882 = vrot.slane %v1758, 5
        %v1883 = vsel %vm1837, %v1881, %v1882
        %v1884 = vrot.slane %v1882, 4
        %v1885 = vrot.slane %v1759, 5
        %v1886 = vsel %vm1837, %v1884, %v1885
        %v1887 = vrot.slane %v1760, 5
        %v1888 = vrot.slane %v1887, 4
        %v1889 = vrot.slane %v1761, 5
        %v1890 = vsel %vm1837, %v1888, %v1889
        %v1891 = vrot.slane %v1889, 4
        %v1892 = vrot.slane %v1762, 5
        %v1893 = vsel %vm1837, %v1891, %v1892
        %v1894 = vrot.slane %v1763, 5
        %v1895 = vrot.slane %v1894, 4
        %v1896 = vrot.slane %v1764, 5
        %v1897 = vsel %vm1837, %v1895, %v1896
        %v1898 = vrot.slane %v1896, 4
        %v1899 = vrot.slane %v1765, 5
        %v1900 = vsel %vm1837, %v1898, %v1899
        %v1901 = vrot.slane %v1766, 5
        %v1902 = vrot.slane %v1901, 4
        %v1903 = vrot.slane %v1767, 5
        %v1904 = vsel %vm1837, %v1902, %v1903
        %v1905 = vrot.slane %v1903, 4
        %v1906 = vrot.slane %v1768, 5
        %v1907 = vsel %vm1837, %v1905, %v1906
        %v1908 = vrot.slane %v1769, 5
        %v1909 = vrot.slane %v1908, 4
        %v1910 = vrot.slane %v1770, 5
        %v1911 = vsel %vm1837, %v1909, %v1910
        %v1912 = vrot.slane %v1910, 4
        %v1913 = vrot.slane %v1771, 5
        %v1914 = vsel %vm1837, %v1912, %v1913
        %v1915 = vrot.slane %v1772, 5
        %v1916 = vrot.slane %v1915, 4
        %v1917 = vrot.slane %v1773, 5
        %v1918 = vsel %vm1837, %v1916, %v1917
        %v1919 = vrot.slane %v1917, 4
        %v1920 = vrot.slane %v1774, 5
        %v1921 = vsel %vm1837, %v1919, %v1920
        %v1922 = vrot.slane %v1775, 5
        %v1923 = vrot.slane %v1922, 4
        %v1924 = vrot.slane %v1776, 5
        %v1925 = vsel %vm1837, %v1923, %v1924
        %v1926 = vrot.slane %v1924, 4
        %v1927 = vrot.slane %v1777, 5
        %v1928 = vsel %vm1837, %v1926, %v1927
        %v1929 = vrot.slane %v1778, 5
        %v1930 = vrot.slane %v1929, 4
        %v1931 = vrot.slane %v1779, 5
        %v1932 = vsel %vm1837, %v1930, %v1931
        %v1933 = vrot.slane %v1931, 4
        %v1934 = vrot.slane %v1780, 5
        %v1935 = vsel %vm1837, %v1933, %v1934
        %v1936 = vrot.slane %v1781, 5
        %v1937 = vrot.slane %v1936, 4
        %v1938 = vrot.slane %v1782, 5
        %v1939 = vsel %vm1837, %v1937, %v1938
        %v1940 = vrot.slane %v1938, 4
        %v1941 = vrot.slane %v1783, 5
        %v1942 = vsel %vm1837, %v1940, %v1941
        %v1943 = vrot.slane %v1784, 5
        %v1944 = vrot.slane %v1943, 4
        %v1945 = vrot.slane %v1785, 5
        %v1946 = vsel %vm1837, %v1944, %v1945
        %v1947 = vrot.slane %v1945, 4
        %v1948 = vrot.slane %v1786, 5
        %v1949 = vsel %vm1837, %v1947, %v1948
        %1982 = vst [vmem:[#allocation3 + $0x8] sm:$0xf] %v1841
        %1983 = vst [vmem:[#allocation3 + $0x2c] sm:$0xf] %v1844
        %1984 = vst [vmem:[#allocation3 + $0x50] sm:$0xf] %v1848
        %1985 = vst [vmem:[#allocation3 + $0x74] sm:$0xf] %v1851
        %1986 = vst [vmem:[#allocation3 + $0x98] sm:$0xf] %v1855
        %1987 = vst [vmem:[#allocation3 + $0xbc] sm:$0xf] %v1858
        %1988 = vst [vmem:[#allocation3 + $0xe0] sm:$0xf] %v1862
        %1989 = vst [vmem:[#allocation3 + $0x104] sm:$0xf] %v1865
        %1990 = vst [vmem:[#allocation3 + $0x128] sm:$0xf] %v1869
        %1991 = vst [vmem:[#allocation3 + $0x14c] sm:$0xf] %v1872
        %1992 = vst [vmem:[#allocation3 + $0x170] sm:$0xf] %v1876
        %1993 = vst [vmem:[#allocation3 + $0x194] sm:$0xf] %v1879
        %1994 = vst [vmem:[#allocation3 + $0x1b8] sm:$0xf] %v1883
        %1995 = vst [vmem:[#allocation3 + $0x1dc] sm:$0xf] %v1886
        %1996 = vst [vmem:[#allocation3 + $0x200] sm:$0xf] %v1890
        %1997 = vst [vmem:[#allocation3 + $0x224] sm:$0xf] %v1893
        %1998 = vst [vmem:[#allocation3 + $0x248] sm:$0xf] %v1897
        %1999 = vst [vmem:[#allocation3 + $0x26c] sm:$0xf] %v1900
        %2000 = vst [vmem:[#allocation3 + $0x290] sm:$0xf] %v1904
        %2001 = vst [vmem:[#allocation3 + $0x2b4] sm:$0xf] %v1907
        %2002 = vst [vmem:[#allocation3 + $0x2d8] sm:$0xf] %v1911
        %2003 = vst [vmem:[#allocation3 + $0x2fc] sm:$0xf] %v1914
        %2004 = vst [vmem:[#allocation3 + $0x320] sm:$0xf] %v1918
        %2005 = vst [vmem:[#allocation3 + $0x344] sm:$0xf] %v1921
        %2006 = vst [vmem:[#allocation3 + $0x368] sm:$0xf] %v1925
        %2007 = vst [vmem:[#allocation3 + $0x38c] sm:$0xf] %v1928
        %2008 = vst [vmem:[#allocation3 + $0x3b0] sm:$0xf] %v1932
        %2009 = vst [vmem:[#allocation3 + $0x3d4] sm:$0xf] %v1935
        %2010 = vst [vmem:[#allocation3 + $0x3f8] sm:$0xf] %v1939
        %2011 = vst [vmem:[#allocation3 + $0x41c] sm:$0xf] %v1942
        %2012 = vst [vmem:[#allocation3 + $0x440] sm:$0xf] %v1946
        %2013 = vst [vmem:[#allocation3 + $0x464] sm:$0xf] %v1949
        %v2014 = vld [vmem:[%s1061] sm:$0xf]
        %v2015 = vld [vmem:[%s1061 + $0x4] sm:$0xf]
        %v2016 = vld [vmem:[%s1061 + $0xc] sm:$0xf]
        %v2017 = vld [vmem:[%s1061 + $0x10] sm:$0xf]
        %v2018 = vld [vmem:[%s1061 + $0x18] sm:$0xf]
        %v2019 = vld [vmem:[%s1061 + $0x1c] sm:$0xf]
        %v2020 = vld [vmem:[%s1061 + $0x24] sm:$0xf]
        %v2021 = vld [vmem:[%s1061 + $0x28] sm:$0xf]
        %v2022 = vld [vmem:[%s1061 + $0x30] sm:$0xf]
        %v2023 = vld [vmem:[%s1061 + $0x34] sm:$0xf]
        %v2024 = vld [vmem:[%s1061 + $0x3c] sm:$0xf]
        %v2025 = vld [vmem:[%s1061 + $0x40] sm:$0xf]
        %v2026 = vld [vmem:[%s1061 + $0x48] sm:$0xf]
        %v2027 = vld [vmem:[%s1061 + $0x4c] sm:$0xf]
        %v2028 = vld [vmem:[%s1061 + $0x54] sm:$0xf]
        %v2029 = vld [vmem:[%s1061 + $0x58] sm:$0xf]
        %v2030 = vld [vmem:[%s1061 + $0x60] sm:$0xf]
        %v2031 = vld [vmem:[%s1061 + $0x64] sm:$0xf]
        %v2032 = vld [vmem:[%s1061 + $0x6c] sm:$0xf]
        %v2033 = vld [vmem:[%s1061 + $0x70] sm:$0xf]
        %v2034 = vld [vmem:[%s1061 + $0x78] sm:$0xf]
        %v2035 = vld [vmem:[%s1061 + $0x7c] sm:$0xf]
        %v2036 = vld [vmem:[%s1061 + $0x84] sm:$0xf]
        %v2037 = vld [vmem:[%s1061 + $0x88] sm:$0xf]
        %v2038 = vld [vmem:[%s1061 + $0x90] sm:$0xf]
        %v2039 = vld [vmem:[%s1061 + $0x94] sm:$0xf]
        %v2040 = vld [vmem:[%s1061 + $0x9c] sm:$0xf]
        %v2041 = vld [vmem:[%s1061 + $0xa0] sm:$0xf]
        %v2042 = vld [vmem:[%s1061 + $0xa8] sm:$0xf]
        %v2043 = vld [vmem:[%s1061 + $0xac] sm:$0xf]
        %v2044 = vld [vmem:[%s1061 + $0xb4] sm:$0xf]
        %v2045 = vld [vmem:[%s1061 + $0xb8] sm:$0xf]
        %2046 = vst [vmem:[#allocation3 + $0xc] sm:$0xf] %v2014
        %2047 = vst [vmem:[#allocation3 + $0x30] sm:$0xf] %v2015
        %2048 = vst [vmem:[#allocation3 + $0x54] sm:$0xf] %v2016
        %2049 = vst [vmem:[#allocation3 + $0x78] sm:$0xf] %v2017
        %2050 = vst [vmem:[#allocation3 + $0x9c] sm:$0xf] %v2018
        %2051 = vst [vmem:[#allocation3 + $0xc0] sm:$0xf] %v2019
        %2052 = vst [vmem:[#allocation3 + $0xe4] sm:$0xf] %v2020
        %2053 = vst [vmem:[#allocation3 + $0x108] sm:$0xf] %v2021
        %2054 = vst [vmem:[#allocation3 + $0x12c] sm:$0xf] %v2022
        %2055 = vst [vmem:[#allocation3 + $0x150] sm:$0xf] %v2023
        %2056 = vst [vmem:[#allocation3 + $0x174] sm:$0xf] %v2024
        %2057 = vst [vmem:[#allocation3 + $0x198] sm:$0xf] %v2025
        %2058 = vst [vmem:[#allocation3 + $0x1bc] sm:$0xf] %v2026
        %2059 = vst [vmem:[#allocation3 + $0x1e0] sm:$0xf] %v2027
        %2060 = vst [vmem:[#allocation3 + $0x204] sm:$0xf] %v2028
        %2061 = vst [vmem:[#allocation3 + $0x228] sm:$0xf] %v2029
        %2062 = vst [vmem:[#allocation3 + $0x24c] sm:$0xf] %v2030
        %2063 = vst [vmem:[#allocation3 + $0x270] sm:$0xf] %v2031
        %2064 = vst [vmem:[#allocation3 + $0x294] sm:$0xf] %v2032
        %2065 = vst [vmem:[#allocation3 + $0x2b8] sm:$0xf] %v2033
        %2066 = vst [vmem:[#allocation3 + $0x2dc] sm:$0xf] %v2034
        %2067 = vst [vmem:[#allocation3 + $0x300] sm:$0xf] %v2035
        %2068 = vst [vmem:[#allocation3 + $0x324] sm:$0xf] %v2036
        %2069 = vst [vmem:[#allocation3 + $0x348] sm:$0xf] %v2037
        %2070 = vst [vmem:[#allocation3 + $0x36c] sm:$0xf] %v2038
        %2071 = vst [vmem:[#allocation3 + $0x390] sm:$0xf] %v2039
        %2072 = vst [vmem:[#allocation3 + $0x3b4] sm:$0xf] %v2040
        %2073 = vst [vmem:[#allocation3 + $0x3d8] sm:$0xf] %v2041
        %2074 = vst [vmem:[#allocation3 + $0x3fc] sm:$0xf] %v2042
        %2075 = vst [vmem:[#allocation3 + $0x420] sm:$0xf] %v2043
        %2076 = vst [vmem:[#allocation3 + $0x444] sm:$0xf] %v2044
        %2077 = vst [vmem:[#allocation3 + $0x468] sm:$0xf] %v2045
        %v2078 = vld [vmem:[%s1061] sm:$0xf]
        %v2079 = vld [vmem:[%s1061 + $0x4] sm:$0xf]
        %v2080 = vld [vmem:[%s1061 + $0x8] sm:$0x1]
        %v2081 = vld [vmem:[%s1061 + $0xc] sm:$0xf]
        %v2082 = vld [vmem:[%s1061 + $0x10] sm:$0xf]
        %v2083 = vld [vmem:[%s1061 + $0x14] sm:$0x1]
        %v2084 = vld [vmem:[%s1061 + $0x18] sm:$0xf]
        %v2085 = vld [vmem:[%s1061 + $0x1c] sm:$0xf]
        %v2086 = vld [vmem:[%s1061 + $0x20] sm:$0x1]
        %v2087 = vld [vmem:[%s1061 + $0x24] sm:$0xf]
        %v2088 = vld [vmem:[%s1061 + $0x28] sm:$0xf]
        %v2089 = vld [vmem:[%s1061 + $0x2c] sm:$0x1]
        %v2090 = vld [vmem:[%s1061 + $0x30] sm:$0xf]
        %v2091 = vld [vmem:[%s1061 + $0x34] sm:$0xf]
        %v2092 = vld [vmem:[%s1061 + $0x38] sm:$0x1]
        %v2093 = vld [vmem:[%s1061 + $0x3c] sm:$0xf]
        %v2094 = vld [vmem:[%s1061 + $0x40] sm:$0xf]
        %v2095 = vld [vmem:[%s1061 + $0x44] sm:$0x1]
        %v2096 = vld [vmem:[%s1061 + $0x48] sm:$0xf]
        %v2097 = vld [vmem:[%s1061 + $0x4c] sm:$0xf]
        %v2098 = vld [vmem:[%s1061 + $0x50] sm:$0x1]
        %v2099 = vld [vmem:[%s1061 + $0x54] sm:$0xf]
        %v2100 = vld [vmem:[%s1061 + $0x58] sm:$0xf]
        %v2101 = vld [vmem:[%s1061 + $0x5c] sm:$0x1]
        %v2102 = vld [vmem:[%s1061 + $0x60] sm:$0xf]
        %v2103 = vld [vmem:[%s1061 + $0x64] sm:$0xf]
        %v2104 = vld [vmem:[%s1061 + $0x68] sm:$0x1]
        %v2105 = vld [vmem:[%s1061 + $0x6c] sm:$0xf]
        %v2106 = vld [vmem:[%s1061 + $0x70] sm:$0xf]
        %v2107 = vld [vmem:[%s1061 + $0x74] sm:$0x1]
        %v2108 = vld [vmem:[%s1061 + $0x78] sm:$0xf]
        %v2109 = vld [vmem:[%s1061 + $0x7c] sm:$0xf]
        %v2110 = vld [vmem:[%s1061 + $0x80] sm:$0x1]
        %v2111 = vld [vmem:[%s1061 + $0x84] sm:$0xf]
        %v2112 = vld [vmem:[%s1061 + $0x88] sm:$0xf]
        %v2113 = vld [vmem:[%s1061 + $0x8c] sm:$0x1]
        %v2114 = vld [vmem:[%s1061 + $0x90] sm:$0xf]
        %v2115 = vld [vmem:[%s1061 + $0x94] sm:$0xf]
        %v2116 = vld [vmem:[%s1061 + $0x98] sm:$0x1]
        %v2117 = vld [vmem:[%s1061 + $0x9c] sm:$0xf]
        %v2118 = vld [vmem:[%s1061 + $0xa0] sm:$0xf]
        %v2119 = vld [vmem:[%s1061 + $0xa4] sm:$0x1]
        %v2120 = vld [vmem:[%s1061 + $0xa8] sm:$0xf]
        %v2121 = vld [vmem:[%s1061 + $0xac] sm:$0xf]
        %v2122 = vld [vmem:[%s1061 + $0xb0] sm:$0x1]
        %v2123 = vld [vmem:[%s1061 + $0xb4] sm:$0xf]
        %v2124 = vld [vmem:[%s1061 + $0xb8] sm:$0xf]
        %v2125 = vld [vmem:[%s1061 + $0xbc] sm:$0x1]
        %v2127 = vshrl.u32 %v2078, 16
        %v2129 = vrot.slane %v2127, 4
        %v2130 = vshll.u32 %v2078, 16
        %v2132 = vrot.slane %v2130, 5
        %v2133 = vor.u32 %v2129, %v2132
        %v2134 = vrot.slane %v2133, 4
        %v2136 = vshll.u32 %v2079, 16
        %v2138 = vrot.slane %v2136, 5
        %v2139 = vsel %vm1290, %v2134, %v2138
        %v2140 = vshrl.u32 %v2079, 16
        %v2142 = vrot.slane %v2140, 4
        %v2143 = vor.u32 %v2142, %v2138
        %v2144 = vrot.slane %v2143, 4
        %v2146 = vshll.u32 %v2080, 16
        %v2148 = vrot.slane %v2146, 5
        %v2149 = vsel %vm1290, %v2144, %v2148
        %v2151 = vshrl.u32 %v2081, 16
        %v2153 = vrot.slane %v2151, 4
        %v2154 = vshll.u32 %v2081, 16
        %v2156 = vrot.slane %v2154, 5
        %v2157 = vor.u32 %v2153, %v2156
        %v2158 = vrot.slane %v2157, 4
        %v2160 = vshll.u32 %v2082, 16
        %v2162 = vrot.slane %v2160, 5
        %v2163 = vsel %vm1290, %v2158, %v2162
        %v2164 = vshrl.u32 %v2082, 16
        %v2166 = vrot.slane %v2164, 4
        %v2167 = vor.u32 %v2166, %v2162
        %v2168 = vrot.slane %v2167, 4
        %v2170 = vshll.u32 %v2083, 16
        %v2172 = vrot.slane %v2170, 5
        %v2173 = vsel %vm1290, %v2168, %v2172
        %v2175 = vshrl.u32 %v2084, 16
        %v2177 = vrot.slane %v2175, 4
        %v2178 = vshll.u32 %v2084, 16
        %v2180 = vrot.slane %v2178, 5
        %v2181 = vor.u32 %v2177, %v2180
        %v2182 = vrot.slane %v2181, 4
        %v2184 = vshll.u32 %v2085, 16
        %v2186 = vrot.slane %v2184, 5
        %v2187 = vsel %vm1290, %v2182, %v2186
        %v2188 = vshrl.u32 %v2085, 16
        %v2190 = vrot.slane %v2188, 4
        %v2191 = vor.u32 %v2190, %v2186
        %v2192 = vrot.slane %v2191, 4
        %v2194 = vshll.u32 %v2086, 16
        %v2196 = vrot.slane %v2194, 5
        %v2197 = vsel %vm1290, %v2192, %v2196
        %v2199 = vshrl.u32 %v2087, 16
        %v2201 = vrot.slane %v2199, 4
        %v2202 = vshll.u32 %v2087, 16
        %v2204 = vrot.slane %v2202, 5
        %v2205 = vor.u32 %v2201, %v2204
        %v2206 = vrot.slane %v2205, 4
        %v2208 = vshll.u32 %v2088, 16
        %v2210 = vrot.slane %v2208, 5
        %v2211 = vsel %vm1290, %v2206, %v2210
        %v2212 = vshrl.u32 %v2088, 16
        %v2214 = vrot.slane %v2212, 4
        %v2215 = vor.u32 %v2214, %v2210
        %v2216 = vrot.slane %v2215, 4
        %v2218 = vshll.u32 %v2089, 16
        %v2220 = vrot.slane %v2218, 5
        %v2221 = vsel %vm1290, %v2216, %v2220
        %v2223 = vshrl.u32 %v2090, 16
        %v2225 = vrot.slane %v2223, 4
        %v2226 = vshll.u32 %v2090, 16
        %v2228 = vrot.slane %v2226, 5
        %v2229 = vor.u32 %v2225, %v2228
        %v2230 = vrot.slane %v2229, 4
        %v2232 = vshll.u32 %v2091, 16
        %v2234 = vrot.slane %v2232, 5
        %v2235 = vsel %vm1290, %v2230, %v2234
        %v2236 = vshrl.u32 %v2091, 16
        %v2238 = vrot.slane %v2236, 4
        %v2239 = vor.u32 %v2238, %v2234
        %v2240 = vrot.slane %v2239, 4
        %v2242 = vshll.u32 %v2092, 16
        %v2244 = vrot.slane %v2242, 5
        %v2245 = vsel %vm1290, %v2240, %v2244
        %v2247 = vshrl.u32 %v2093, 16
        %v2249 = vrot.slane %v2247, 4
        %v2250 = vshll.u32 %v2093, 16
        %v2252 = vrot.slane %v2250, 5
        %v2253 = vor.u32 %v2249, %v2252
        %v2254 = vrot.slane %v2253, 4
        %v2256 = vshll.u32 %v2094, 16
        %v2258 = vrot.slane %v2256, 5
        %v2259 = vsel %vm1290, %v2254, %v2258
        %v2260 = vshrl.u32 %v2094, 16
        %v2262 = vrot.slane %v2260, 4
        %v2263 = vor.u32 %v2262, %v2258
        %v2264 = vrot.slane %v2263, 4
        %v2266 = vshll.u32 %v2095, 16
        %v2268 = vrot.slane %v2266, 5
        %v2269 = vsel %vm1290, %v2264, %v2268
        %v2271 = vshrl.u32 %v2096, 16
        %v2273 = vrot.slane %v2271, 4
        %v2274 = vshll.u32 %v2096, 16
        %v2276 = vrot.slane %v2274, 5
        %v2277 = vor.u32 %v2273, %v2276
        %v2278 = vrot.slane %v2277, 4
        %v2280 = vshll.u32 %v2097, 16
        %v2282 = vrot.slane %v2280, 5
        %v2283 = vsel %vm1290, %v2278, %v2282
        %v2284 = vshrl.u32 %v2097, 16
        %v2286 = vrot.slane %v2284, 4
        %v2287 = vor.u32 %v2286, %v2282
        %v2288 = vrot.slane %v2287, 4
        %v2290 = vshll.u32 %v2098, 16
        %v2292 = vrot.slane %v2290, 5
        %v2293 = vsel %vm1290, %v2288, %v2292
        %v2295 = vshrl.u32 %v2099, 16
        %v2297 = vrot.slane %v2295, 4
        %v2298 = vshll.u32 %v2099, 16
        %v2300 = vrot.slane %v2298, 5
        %v2301 = vor.u32 %v2297, %v2300
        %v2302 = vrot.slane %v2301, 4
        %v2304 = vshll.u32 %v2100, 16
        %v2306 = vrot.slane %v2304, 5
        %v2307 = vsel %vm1290, %v2302, %v2306
        %v2308 = vshrl.u32 %v2100, 16
        %v2310 = vrot.slane %v2308, 4
        %v2311 = vor.u32 %v2310, %v2306
        %v2312 = vrot.slane %v2311, 4
        %v2314 = vshll.u32 %v2101, 16
        %v2316 = vrot.slane %v2314, 5
        %v2317 = vsel %vm1290, %v2312, %v2316
        %v2319 = vshrl.u32 %v2102, 16
        %v2321 = vrot.slane %v2319, 4
        %v2322 = vshll.u32 %v2102, 16
        %v2324 = vrot.slane %v2322, 5
        %v2325 = vor.u32 %v2321, %v2324
        %v2326 = vrot.slane %v2325, 4
        %v2328 = vshll.u32 %v2103, 16
        %v2330 = vrot.slane %v2328, 5
        %v2331 = vsel %vm1290, %v2326, %v2330
        %v2332 = vshrl.u32 %v2103, 16
        %v2334 = vrot.slane %v2332, 4
        %v2335 = vor.u32 %v2334, %v2330
        %v2336 = vrot.slane %v2335, 4
        %v2338 = vshll.u32 %v2104, 16
        %v2340 = vrot.slane %v2338, 5
        %v2341 = vsel %vm1290, %v2336, %v2340
        %v2343 = vshrl.u32 %v2105, 16
        %v2345 = vrot.slane %v2343, 4
        %v2346 = vshll.u32 %v2105, 16
        %v2348 = vrot.slane %v2346, 5
        %v2349 = vor.u32 %v2345, %v2348
        %v2350 = vrot.slane %v2349, 4
        %v2352 = vshll.u32 %v2106, 16
        %v2354 = vrot.slane %v2352, 5
        %v2355 = vsel %vm1290, %v2350, %v2354
        %v2356 = vshrl.u32 %v2106, 16
        %v2358 = vrot.slane %v2356, 4
        %v2359 = vor.u32 %v2358, %v2354
        %v2360 = vrot.slane %v2359, 4
        %v2362 = vshll.u32 %v2107, 16
        %v2364 = vrot.slane %v2362, 5
        %v2365 = vsel %vm1290, %v2360, %v2364
        %v2367 = vshrl.u32 %v2108, 16
        %v2369 = vrot.slane %v2367, 4
        %v2370 = vshll.u32 %v2108, 16
        %v2372 = vrot.slane %v2370, 5
        %v2373 = vor.u32 %v2369, %v2372
        %v2374 = vrot.slane %v2373, 4
        %v2376 = vshll.u32 %v2109, 16
        %v2378 = vrot.slane %v2376, 5
        %v2379 = vsel %vm1290, %v2374, %v2378
        %v2380 = vshrl.u32 %v2109, 16
        %v2382 = vrot.slane %v2380, 4
        %v2383 = vor.u32 %v2382, %v2378
        %v2384 = vrot.slane %v2383, 4
        %v2386 = vshll.u32 %v2110, 16
        %v2388 = vrot.slane %v2386, 5
        %v2389 = vsel %vm1290, %v2384, %v2388
        %v2391 = vshrl.u32 %v2111, 16
        %v2393 = vrot.slane %v2391, 4
        %v2394 = vshll.u32 %v2111, 16
        %v2396 = vrot.slane %v2394, 5
        %v2397 = vor.u32 %v2393, %v2396
        %v2398 = vrot.slane %v2397, 4
        %v2400 = vshll.u32 %v2112, 16
        %v2402 = vrot.slane %v2400, 5
        %v2403 = vsel %vm1290, %v2398, %v2402
        %v2404 = vshrl.u32 %v2112, 16
        %v2406 = vrot.slane %v2404, 4
        %v2407 = vor.u32 %v2406, %v2402
        %v2408 = vrot.slane %v2407, 4
        %v2410 = vshll.u32 %v2113, 16
        %v2412 = vrot.slane %v2410, 5
        %v2413 = vsel %vm1290, %v2408, %v2412
        %v2415 = vshrl.u32 %v2114, 16
        %v2417 = vrot.slane %v2415, 4
        %v2418 = vshll.u32 %v2114, 16
        %v2420 = vrot.slane %v2418, 5
        %v2421 = vor.u32 %v2417, %v2420
        %v2422 = vrot.slane %v2421, 4
        %v2424 = vshll.u32 %v2115, 16
        %v2426 = vrot.slane %v2424, 5
        %v2427 = vsel %vm1290, %v2422, %v2426
        %v2428 = vshrl.u32 %v2115, 16
        %v2430 = vrot.slane %v2428, 4
        %v2431 = vor.u32 %v2430, %v2426
        %v2432 = vrot.slane %v2431, 4
        %v2434 = vshll.u32 %v2116, 16
        %v2436 = vrot.slane %v2434, 5
        %v2437 = vsel %vm1290, %v2432, %v2436
        %v2439 = vshrl.u32 %v2117, 16
        %v2441 = vrot.slane %v2439, 4
        %v2442 = vshll.u32 %v2117, 16
        %v2444 = vrot.slane %v2442, 5
        %v2445 = vor.u32 %v2441, %v2444
        %v2446 = vrot.slane %v2445, 4
        %v2448 = vshll.u32 %v2118, 16
        %v2450 = vrot.slane %v2448, 5
        %v2451 = vsel %vm1290, %v2446, %v2450
        %v2452 = vshrl.u32 %v2118, 16
        %v2454 = vrot.slane %v2452, 4
        %v2455 = vor.u32 %v2454, %v2450
        %v2456 = vrot.slane %v2455, 4
        %v2458 = vshll.u32 %v2119, 16
        %v2460 = vrot.slane %v2458, 5
        %v2461 = vsel %vm1290, %v2456, %v2460
        %v2463 = vshrl.u32 %v2120, 16
        %v2465 = vrot.slane %v2463, 4
        %v2466 = vshll.u32 %v2120, 16
        %v2468 = vrot.slane %v2466, 5
        %v2469 = vor.u32 %v2465, %v2468
        %v2470 = vrot.slane %v2469, 4
        %v2472 = vshll.u32 %v2121, 16
        %v2474 = vrot.slane %v2472, 5
        %v2475 = vsel %vm1290, %v2470, %v2474
        %v2476 = vshrl.u32 %v2121, 16
        %v2478 = vrot.slane %v2476, 4
        %v2479 = vor.u32 %v2478, %v2474
        %v2480 = vrot.slane %v2479, 4
        %v2482 = vshll.u32 %v2122, 16
        %v2484 = vrot.slane %v2482, 5
        %v2485 = vsel %vm1290, %v2480, %v2484
        %v2487 = vshrl.u32 %v2123, 16
        %v2489 = vrot.slane %v2487, 4
        %v2490 = vshll.u32 %v2123, 16
        %v2492 = vrot.slane %v2490, 5
        %v2493 = vor.u32 %v2489, %v2492
        %v2494 = vrot.slane %v2493, 4
        %v2496 = vshll.u32 %v2124, 16
        %v2498 = vrot.slane %v2496, 5
        %v2499 = vsel %vm1290, %v2494, %v2498
        %v2500 = vshrl.u32 %v2124, 16
        %v2502 = vrot.slane %v2500, 4
        %v2503 = vor.u32 %v2502, %v2498
        %v2504 = vrot.slane %v2503, 4
        %v2506 = vshll.u32 %v2125, 16
        %v2508 = vrot.slane %v2506, 5
        %v2509 = vsel %vm1290, %v2504, %v2508
        %2542 = vst [vmem:[#allocation3 + $0x10] sm:$0xf] %v2139
        %2543 = vst [vmem:[#allocation3 + $0x34] sm:$0xf] %v2149
        %2544 = vst [vmem:[#allocation3 + $0x58] sm:$0xf] %v2163
        %2545 = vst [vmem:[#allocation3 + $0x7c] sm:$0xf] %v2173
        %2546 = vst [vmem:[#allocation3 + $0xa0] sm:$0xf] %v2187
        %2547 = vst [vmem:[#allocation3 + $0xc4] sm:$0xf] %v2197
        %2548 = vst [vmem:[#allocation3 + $0xe8] sm:$0xf] %v2211
        %2549 = vst [vmem:[#allocation3 + $0x10c] sm:$0xf] %v2221
        %2550 = vst [vmem:[#allocation3 + $0x130] sm:$0xf] %v2235
        %2551 = vst [vmem:[#allocation3 + $0x154] sm:$0xf] %v2245
        %2552 = vst [vmem:[#allocation3 + $0x178] sm:$0xf] %v2259
        %2553 = vst [vmem:[#allocation3 + $0x19c] sm:$0xf] %v2269
        %2554 = vst [vmem:[#allocation3 + $0x1c0] sm:$0xf] %v2283
        %2555 = vst [vmem:[#allocation3 + $0x1e4] sm:$0xf] %v2293
        %2556 = vst [vmem:[#allocation3 + $0x208] sm:$0xf] %v2307
        %2557 = vst [vmem:[#allocation3 + $0x22c] sm:$0xf] %v2317
        %2558 = vst [vmem:[#allocation3 + $0x250] sm:$0xf] %v2331
        %2559 = vst [vmem:[#allocation3 + $0x274] sm:$0xf] %v2341
        %2560 = vst [vmem:[#allocation3 + $0x298] sm:$0xf] %v2355
        %2561 = vst [vmem:[#allocation3 + $0x2bc] sm:$0xf] %v2365
        %2562 = vst [vmem:[#allocation3 + $0x2e0] sm:$0xf] %v2379
        %2563 = vst [vmem:[#allocation3 + $0x304] sm:$0xf] %v2389
        %2564 = vst [vmem:[#allocation3 + $0x328] sm:$0xf] %v2403
        %2565 = vst [vmem:[#allocation3 + $0x34c] sm:$0xf] %v2413
        %2566 = vst [vmem:[#allocation3 + $0x370] sm:$0xf] %v2427
        %2567 = vst [vmem:[#allocation3 + $0x394] sm:$0xf] %v2437
        %2568 = vst [vmem:[#allocation3 + $0x3b8] sm:$0xf] %v2451
        %2569 = vst [vmem:[#allocation3 + $0x3dc] sm:$0xf] %v2461
        %2570 = vst [vmem:[#allocation3 + $0x400] sm:$0xf] %v2475
        %2571 = vst [vmem:[#allocation3 + $0x424] sm:$0xf] %v2485
        %2572 = vst [vmem:[#allocation3 + $0x448] sm:$0xf] %v2499
        %2573 = vst [vmem:[#allocation3 + $0x46c] sm:$0xf] %v2509
        %v2574 = vld [vmem:[%s1061] sm:$0xe]
        %v2575 = vld [vmem:[%s1061 + $0x4] sm:$0xf]
        %v2576 = vld [vmem:[%s1061 + $0x8] sm:$0x1]
        %v2577 = vld [vmem:[%s1061 + $0xc] sm:$0xe]
        %v2578 = vld [vmem:[%s1061 + $0x10] sm:$0xf]
        %v2579 = vld [vmem:[%s1061 + $0x14] sm:$0x1]
        %v2580 = vld [vmem:[%s1061 + $0x18] sm:$0xe]
        %v2581 = vld [vmem:[%s1061 + $0x1c] sm:$0xf]
        %v2582 = vld [vmem:[%s1061 + $0x20] sm:$0x1]
        %v2583 = vld [vmem:[%s1061 + $0x24] sm:$0xe]
        %v2584 = vld [vmem:[%s1061 + $0x28] sm:$0xf]
        %v2585 = vld [vmem:[%s1061 + $0x2c] sm:$0x1]
        %v2586 = vld [vmem:[%s1061 + $0x30] sm:$0xe]
        %v2587 = vld [vmem:[%s1061 + $0x34] sm:$0xf]
        %v2588 = vld [vmem:[%s1061 + $0x38] sm:$0x1]
        %v2589 = vld [vmem:[%s1061 + $0x3c] sm:$0xe]
        %v2590 = vld [vmem:[%s1061 + $0x40] sm:$0xf]
        %v2591 = vld [vmem:[%s1061 + $0x44] sm:$0x1]
        %v2592 = vld [vmem:[%s1061 + $0x48] sm:$0xe]
        %v2593 = vld [vmem:[%s1061 + $0x4c] sm:$0xf]
        %v2594 = vld [vmem:[%s1061 + $0x50] sm:$0x1]
        %v2595 = vld [vmem:[%s1061 + $0x54] sm:$0xe]
        %v2596 = vld [vmem:[%s1061 + $0x58] sm:$0xf]
        %v2597 = vld [vmem:[%s1061 + $0x5c] sm:$0x1]
        %v2598 = vld [vmem:[%s1061 + $0x60] sm:$0xe]
        %v2599 = vld [vmem:[%s1061 + $0x64] sm:$0xf]
        %v2600 = vld [vmem:[%s1061 + $0x68] sm:$0x1]
        %v2601 = vld [vmem:[%s1061 + $0x6c] sm:$0xe]
        %v2602 = vld [vmem:[%s1061 + $0x70] sm:$0xf]
        %v2603 = vld [vmem:[%s1061 + $0x74] sm:$0x1]
        %v2604 = vld [vmem:[%s1061 + $0x78] sm:$0xe]
        %v2605 = vld [vmem:[%s1061 + $0x7c] sm:$0xf]
        %v2606 = vld [vmem:[%s1061 + $0x80] sm:$0x1]
        %v2607 = vld [vmem:[%s1061 + $0x84] sm:$0xe]
        %v2608 = vld [vmem:[%s1061 + $0x88] sm:$0xf]
        %v2609 = vld [vmem:[%s1061 + $0x8c] sm:$0x1]
        %v2610 = vld [vmem:[%s1061 + $0x90] sm:$0xe]
        %v2611 = vld [vmem:[%s1061 + $0x94] sm:$0xf]
        %v2612 = vld [vmem:[%s1061 + $0x98] sm:$0x1]
        %v2613 = vld [vmem:[%s1061 + $0x9c] sm:$0xe]
        %v2614 = vld [vmem:[%s1061 + $0xa0] sm:$0xf]
        %v2615 = vld [vmem:[%s1061 + $0xa4] sm:$0x1]
        %v2616 = vld [vmem:[%s1061 + $0xa8] sm:$0xe]
        %v2617 = vld [vmem:[%s1061 + $0xac] sm:$0xf]
        %v2618 = vld [vmem:[%s1061 + $0xb0] sm:$0x1]
        %v2619 = vld [vmem:[%s1061 + $0xb4] sm:$0xe]
        %v2620 = vld [vmem:[%s1061 + $0xb8] sm:$0xf]
        %v2621 = vld [vmem:[%s1061 + $0xbc] sm:$0x1]
        %v2670 = vrot.slane %v2574, 5
        %v2671 = vrot.slane %v2670, 4
        %v2672 = vrot.slane %v2575, 5
        %v2673 = vsel %vm1837, %v2671, %v2672
        %v2674 = vrot.slane %v2672, 4
        %v2675 = vrot.slane %v2576, 5
        %v2676 = vsel %vm1837, %v2674, %v2675
        %v2677 = vrot.slane %v2577, 5
        %v2678 = vrot.slane %v2677, 4
        %v2679 = vrot.slane %v2578, 5
        %v2680 = vsel %vm1837, %v2678, %v2679
        %v2681 = vrot.slane %v2679, 4
        %v2682 = vrot.slane %v2579, 5
        %v2683 = vsel %vm1837, %v2681, %v2682
        %v2684 = vrot.slane %v2580, 5
        %v2685 = vrot.slane %v2684, 4
        %v2686 = vrot.slane %v2581, 5
        %v2687 = vsel %vm1837, %v2685, %v2686
        %v2688 = vrot.slane %v2686, 4
        %v2689 = vrot.slane %v2582, 5
        %v2690 = vsel %vm1837, %v2688, %v2689
        %v2691 = vrot.slane %v2583, 5
        %v2692 = vrot.slane %v2691, 4
        %v2693 = vrot.slane %v2584, 5
        %v2694 = vsel %vm1837, %v2692, %v2693
        %v2695 = vrot.slane %v2693, 4
        %v2696 = vrot.slane %v2585, 5
        %v2697 = vsel %vm1837, %v2695, %v2696
        %v2698 = vrot.slane %v2586, 5
        %v2699 = vrot.slane %v2698, 4
        %v2700 = vrot.slane %v2587, 5
        %v2701 = vsel %vm1837, %v2699, %v2700
        %v2702 = vrot.slane %v2700, 4
        %v2703 = vrot.slane %v2588, 5
        %v2704 = vsel %vm1837, %v2702, %v2703
        %v2705 = vrot.slane %v2589, 5
        %v2706 = vrot.slane %v2705, 4
        %v2707 = vrot.slane %v2590, 5
        %v2708 = vsel %vm1837, %v2706, %v2707
        %v2709 = vrot.slane %v2707, 4
        %v2710 = vrot.slane %v2591, 5
        %v2711 = vsel %vm1837, %v2709, %v2710
        %v2712 = vrot.slane %v2592, 5
        %v2713 = vrot.slane %v2712, 4
        %v2714 = vrot.slane %v2593, 5
        %v2715 = vsel %vm1837, %v2713, %v2714
        %v2716 = vrot.slane %v2714, 4
        %v2717 = vrot.slane %v2594, 5
        %v2718 = vsel %vm1837, %v2716, %v2717
        %v2719 = vrot.slane %v2595, 5
        %v2720 = vrot.slane %v2719, 4
        %v2721 = vrot.slane %v2596, 5
        %v2722 = vsel %vm1837, %v2720, %v2721
        %v2723 = vrot.slane %v2721, 4
        %v2724 = vrot.slane %v2597, 5
        %v2725 = vsel %vm1837, %v2723, %v2724
        %v2726 = vrot.slane %v2598, 5
        %v2727 = vrot.slane %v2726, 4
        %v2728 = vrot.slane %v2599, 5
        %v2729 = vsel %vm1837, %v2727, %v2728
        %v2730 = vrot.slane %v2728, 4
        %v2731 = vrot.slane %v2600, 5
        %v2732 = vsel %vm1837, %v2730, %v2731
        %v2733 = vrot.slane %v2601, 5
        %v2734 = vrot.slane %v2733, 4
        %v2735 = vrot.slane %v2602, 5
        %v2736 = vsel %vm1837, %v2734, %v2735
        %v2737 = vrot.slane %v2735, 4
        %v2738 = vrot.slane %v2603, 5
        %v2739 = vsel %vm1837, %v2737, %v2738
        %v2740 = vrot.slane %v2604, 5
        %v2741 = vrot.slane %v2740, 4
        %v2742 = vrot.slane %v2605, 5
        %v2743 = vsel %vm1837, %v2741, %v2742
        %v2744 = vrot.slane %v2742, 4
        %v2745 = vrot.slane %v2606, 5
        %v2746 = vsel %vm1837, %v2744, %v2745
        %v2747 = vrot.slane %v2607, 5
        %v2748 = vrot.slane %v2747, 4
        %v2749 = vrot.slane %v2608, 5
        %v2750 = vsel %vm1837, %v2748, %v2749
        %v2751 = vrot.slane %v2749, 4
        %v2752 = vrot.slane %v2609, 5
        %v2753 = vsel %vm1837, %v2751, %v2752
        %v2754 = vrot.slane %v2610, 5
        %v2755 = vrot.slane %v2754, 4
        %v2756 = vrot.slane %v2611, 5
        %v2757 = vsel %vm1837, %v2755, %v2756
        %v2758 = vrot.slane %v2756, 4
        %v2759 = vrot.slane %v2612, 5
        %v2760 = vsel %vm1837, %v2758, %v2759
        %v2761 = vrot.slane %v2613, 5
        %v2762 = vrot.slane %v2761, 4
        %v2763 = vrot.slane %v2614, 5
        %v2764 = vsel %vm1837, %v2762, %v2763
        %v2765 = vrot.slane %v2763, 4
        %v2766 = vrot.slane %v2615, 5
        %v2767 = vsel %vm1837, %v2765, %v2766
        %v2768 = vrot.slane %v2616, 5
        %v2769 = vrot.slane %v2768, 4
        %v2770 = vrot.slane %v2617, 5
        %v2771 = vsel %vm1837, %v2769, %v2770
        %v2772 = vrot.slane %v2770, 4
        %v2773 = vrot.slane %v2618, 5
        %v2774 = vsel %vm1837, %v2772, %v2773
        %v2775 = vrot.slane %v2619, 5
        %v2776 = vrot.slane %v2775, 4
        %v2777 = vrot.slane %v2620, 5
        %v2778 = vsel %vm1837, %v2776, %v2777
        %v2779 = vrot.slane %v2777, 4
        %v2780 = vrot.slane %v2621, 5
        %v2781 = vsel %vm1837, %v2779, %v2780
        %2814 = vst [vmem:[#allocation3 + $0x14] sm:$0xf] %v2673
        %2815 = vst [vmem:[#allocation3 + $0x38] sm:$0xf] %v2676
        %2816 = vst [vmem:[#allocation3 + $0x5c] sm:$0xf] %v2680
        %2817 = vst [vmem:[#allocation3 + $0x80] sm:$0xf] %v2683
        %2818 = vst [vmem:[#allocation3 + $0xa4] sm:$0xf] %v2687
        %2819 = vst [vmem:[#allocation3 + $0xc8] sm:$0xf] %v2690
        %2820 = vst [vmem:[#allocation3 + $0xec] sm:$0xf] %v2694
        %2821 = vst [vmem:[#allocation3 + $0x110] sm:$0xf] %v2697
        %2822 = vst [vmem:[#allocation3 + $0x134] sm:$0xf] %v2701
        %2823 = vst [vmem:[#allocation3 + $0x158] sm:$0xf] %v2704
        %2824 = vst [vmem:[#allocation3 + $0x17c] sm:$0xf] %v2708
        %2825 = vst [vmem:[#allocation3 + $0x1a0] sm:$0xf] %v2711
        %2826 = vst [vmem:[#allocation3 + $0x1c4] sm:$0xf] %v2715
        %2827 = vst [vmem:[#allocation3 + $0x1e8] sm:$0xf] %v2718
        %2828 = vst [vmem:[#allocation3 + $0x20c] sm:$0xf] %v2722
        %2829 = vst [vmem:[#allocation3 + $0x230] sm:$0xf] %v2725
        %2830 = vst [vmem:[#allocation3 + $0x254] sm:$0xf] %v2729
        %2831 = vst [vmem:[#allocation3 + $0x278] sm:$0xf] %v2732
        %2832 = vst [vmem:[#allocation3 + $0x29c] sm:$0xf] %v2736
        %2833 = vst [vmem:[#allocation3 + $0x2c0] sm:$0xf] %v2739
        %2834 = vst [vmem:[#allocation3 + $0x2e4] sm:$0xf] %v2743
        %2835 = vst [vmem:[#allocation3 + $0x308] sm:$0xf] %v2746
        %2836 = vst [vmem:[#allocation3 + $0x32c] sm:$0xf] %v2750
        %2837 = vst [vmem:[#allocation3 + $0x350] sm:$0xf] %v2753
        %2838 = vst [vmem:[#allocation3 + $0x374] sm:$0xf] %v2757
        %2839 = vst [vmem:[#allocation3 + $0x398] sm:$0xf] %v2760
        %2840 = vst [vmem:[#allocation3 + $0x3bc] sm:$0xf] %v2764
        %2841 = vst [vmem:[#allocation3 + $0x3e0] sm:$0xf] %v2767
        %2842 = vst [vmem:[#allocation3 + $0x404] sm:$0xf] %v2771
        %2843 = vst [vmem:[#allocation3 + $0x428] sm:$0xf] %v2774
        %2844 = vst [vmem:[#allocation3 + $0x44c] sm:$0xf] %v2778
        %2845 = vst [vmem:[#allocation3 + $0x470] sm:$0xf] %v2781
        %s2846 = scalar_lea.vmem [#allocation2], 24
        %v2847 = vld [vmem:[%s2846] sm:$0xf]
        %v2848 = vld [vmem:[%s2846 + $0x4] sm:$0xf]
        %v2849 = vld [vmem:[%s2846 + $0xc] sm:$0xf]
        %v2850 = vld [vmem:[%s2846 + $0x10] sm:$0xf]
        %v2851 = vld [vmem:[%s2846 + $0x18] sm:$0xf]
        %v2852 = vld [vmem:[%s2846 + $0x1c] sm:$0xf]
        %v2853 = vld [vmem:[%s2846 + $0x24] sm:$0xf]
        %v2854 = vld [vmem:[%s2846 + $0x28] sm:$0xf]
        %v2855 = vld [vmem:[%s2846 + $0x30] sm:$0xf]
        %v2856 = vld [vmem:[%s2846 + $0x34] sm:$0xf]
        %v2857 = vld [vmem:[%s2846 + $0x3c] sm:$0xf]
        %v2858 = vld [vmem:[%s2846 + $0x40] sm:$0xf]
        %v2859 = vld [vmem:[%s2846 + $0x48] sm:$0xf]
        %v2860 = vld [vmem:[%s2846 + $0x4c] sm:$0xf]
        %v2861 = vld [vmem:[%s2846 + $0x54] sm:$0xf]
        %v2862 = vld [vmem:[%s2846 + $0x58] sm:$0xf]
        %v2863 = vld [vmem:[%s2846 + $0x60] sm:$0xf]
        %v2864 = vld [vmem:[%s2846 + $0x64] sm:$0xf]
        %v2865 = vld [vmem:[%s2846 + $0x6c] sm:$0xf]
        %v2866 = vld [vmem:[%s2846 + $0x70] sm:$0xf]
        %v2867 = vld [vmem:[%s2846 + $0x78] sm:$0xf]
        %v2868 = vld [vmem:[%s2846 + $0x7c] sm:$0xf]
        %v2869 = vld [vmem:[%s2846 + $0x84] sm:$0xf]
        %v2870 = vld [vmem:[%s2846 + $0x88] sm:$0xf]
        %v2871 = vld [vmem:[%s2846 + $0x90] sm:$0xf]
        %v2872 = vld [vmem:[%s2846 + $0x94] sm:$0xf]
        %v2873 = vld [vmem:[%s2846 + $0x9c] sm:$0xf]
        %v2874 = vld [vmem:[%s2846 + $0xa0] sm:$0xf]
        %v2875 = vld [vmem:[%s2846 + $0xa8] sm:$0xf]
        %v2876 = vld [vmem:[%s2846 + $0xac] sm:$0xf]
        %v2877 = vld [vmem:[%s2846 + $0xb4] sm:$0xf]
        %v2878 = vld [vmem:[%s2846 + $0xb8] sm:$0xf]
        %2879 = vst [vmem:[#allocation3 + $0x18] sm:$0xf] %v2847
        %2880 = vst [vmem:[#allocation3 + $0x3c] sm:$0xf] %v2848
        %2881 = vst [vmem:[#allocation3 + $0x60] sm:$0xf] %v2849
        %2882 = vst [vmem:[#allocation3 + $0x84] sm:$0xf] %v2850
        %2883 = vst [vmem:[#allocation3 + $0xa8] sm:$0xf] %v2851
        %2884 = vst [vmem:[#allocation3 + $0xcc] sm:$0xf] %v2852
        %2885 = vst [vmem:[#allocation3 + $0xf0] sm:$0xf] %v2853
        %2886 = vst [vmem:[#allocation3 + $0x114] sm:$0xf] %v2854
        %2887 = vst [vmem:[#allocation3 + $0x138] sm:$0xf] %v2855
        %2888 = vst [vmem:[#allocation3 + $0x15c] sm:$0xf] %v2856
        %2889 = vst [vmem:[#allocation3 + $0x180] sm:$0xf] %v2857
        %2890 = vst [vmem:[#allocation3 + $0x1a4] sm:$0xf] %v2858
        %2891 = vst [vmem:[#allocation3 + $0x1c8] sm:$0xf] %v2859
        %2892 = vst [vmem:[#allocation3 + $0x1ec] sm:$0xf] %v2860
        %2893 = vst [vmem:[#allocation3 + $0x210] sm:$0xf] %v2861
        %2894 = vst [vmem:[#allocation3 + $0x234] sm:$0xf] %v2862
        %2895 = vst [vmem:[#allocation3 + $0x258] sm:$0xf] %v2863
        %2896 = vst [vmem:[#allocation3 + $0x27c] sm:$0xf] %v2864
        %2897 = vst [vmem:[#allocation3 + $0x2a0] sm:$0xf] %v2865
        %2898 = vst [vmem:[#allocation3 + $0x2c4] sm:$0xf] %v2866
        %2899 = vst [vmem:[#allocation3 + $0x2e8] sm:$0xf] %v2867
        %2900 = vst [vmem:[#allocation3 + $0x30c] sm:$0xf] %v2868
        %2901 = vst [vmem:[#allocation3 + $0x330] sm:$0xf] %v2869
        %2902 = vst [vmem:[#allocation3 + $0x354] sm:$0xf] %v2870
        %2903 = vst [vmem:[#allocation3 + $0x378] sm:$0xf] %v2871
        %2904 = vst [vmem:[#allocation3 + $0x39c] sm:$0xf] %v2872
        %2905 = vst [vmem:[#allocation3 + $0x3c0] sm:$0xf] %v2873
        %2906 = vst [vmem:[#allocation3 + $0x3e4] sm:$0xf] %v2874
        %2907 = vst [vmem:[#allocation3 + $0x408] sm:$0xf] %v2875
        %2908 = vst [vmem:[#allocation3 + $0x42c] sm:$0xf] %v2876
        %2909 = vst [vmem:[#allocation3 + $0x450] sm:$0xf] %v2877
        %2910 = vst [vmem:[#allocation3 + $0x474] sm:$0xf] %v2878
        %v2911 = vld [vmem:[%s2846] sm:$0xf]
        %v2912 = vld [vmem:[%s2846 + $0x4] sm:$0xf]
        %v2913 = vld [vmem:[%s2846 + $0x8] sm:$0x1]
        %v2914 = vld [vmem:[%s2846 + $0xc] sm:$0xf]
        %v2915 = vld [vmem:[%s2846 + $0x10] sm:$0xf]
        %v2916 = vld [vmem:[%s2846 + $0x14] sm:$0x1]
        %v2917 = vld [vmem:[%s2846 + $0x18] sm:$0xf]
        %v2918 = vld [vmem:[%s2846 + $0x1c] sm:$0xf]
        %v2919 = vld [vmem:[%s2846 + $0x20] sm:$0x1]
        %v2920 = vld [vmem:[%s2846 + $0x24] sm:$0xf]
        %v2921 = vld [vmem:[%s2846 + $0x28] sm:$0xf]
        %v2922 = vld [vmem:[%s2846 + $0x2c] sm:$0x1]
        %v2923 = vld [vmem:[%s2846 + $0x30] sm:$0xf]
        %v2924 = vld [vmem:[%s2846 + $0x34] sm:$0xf]
        %v2925 = vld [vmem:[%s2846 + $0x38] sm:$0x1]
        %v2926 = vld [vmem:[%s2846 + $0x3c] sm:$0xf]
        %v2927 = vld [vmem:[%s2846 + $0x40] sm:$0xf]
        %v2928 = vld [vmem:[%s2846 + $0x44] sm:$0x1]
        %v2929 = vld [vmem:[%s2846 + $0x48] sm:$0xf]
        %v2930 = vld [vmem:[%s2846 + $0x4c] sm:$0xf]
        %v2931 = vld [vmem:[%s2846 + $0x50] sm:$0x1]
        %v2932 = vld [vmem:[%s2846 + $0x54] sm:$0xf]
        %v2933 = vld [vmem:[%s2846 + $0x58] sm:$0xf]
        %v2934 = vld [vmem:[%s2846 + $0x5c] sm:$0x1]
        %v2935 = vld [vmem:[%s2846 + $0x60] sm:$0xf]
        %v2936 = vld [vmem:[%s2846 + $0x64] sm:$0xf]
        %v2937 = vld [vmem:[%s2846 + $0x68] sm:$0x1]
        %v2938 = vld [vmem:[%s2846 + $0x6c] sm:$0xf]
        %v2939 = vld [vmem:[%s2846 + $0x70] sm:$0xf]
        %v2940 = vld [vmem:[%s2846 + $0x74] sm:$0x1]
        %v2941 = vld [vmem:[%s2846 + $0x78] sm:$0xf]
        %v2942 = vld [vmem:[%s2846 + $0x7c] sm:$0xf]
        %v2943 = vld [vmem:[%s2846 + $0x80] sm:$0x1]
        %v2944 = vld [vmem:[%s2846 + $0x84] sm:$0xf]
        %v2945 = vld [vmem:[%s2846 + $0x88] sm:$0xf]
        %v2946 = vld [vmem:[%s2846 + $0x8c] sm:$0x1]
        %v2947 = vld [vmem:[%s2846 + $0x90] sm:$0xf]
        %v2948 = vld [vmem:[%s2846 + $0x94] sm:$0xf]
        %v2949 = vld [vmem:[%s2846 + $0x98] sm:$0x1]
        %v2950 = vld [vmem:[%s2846 + $0x9c] sm:$0xf]
        %v2951 = vld [vmem:[%s2846 + $0xa0] sm:$0xf]
        %v2952 = vld [vmem:[%s2846 + $0xa4] sm:$0x1]
        %v2953 = vld [vmem:[%s2846 + $0xa8] sm:$0xf]
        %v2954 = vld [vmem:[%s2846 + $0xac] sm:$0xf]
        %v2955 = vld [vmem:[%s2846 + $0xb0] sm:$0x1]
        %v2956 = vld [vmem:[%s2846 + $0xb4] sm:$0xf]
        %v2957 = vld [vmem:[%s2846 + $0xb8] sm:$0xf]
        %v2958 = vld [vmem:[%s2846 + $0xbc] sm:$0x1]
        %v2960 = vshrl.u32 %v2911, 16
        %v2962 = vrot.slane %v2960, 4
        %v2963 = vshll.u32 %v2911, 16
        %v2965 = vrot.slane %v2963, 5
        %v2966 = vor.u32 %v2962, %v2965
        %v2967 = vrot.slane %v2966, 4
        %v2969 = vshll.u32 %v2912, 16
        %v2971 = vrot.slane %v2969, 5
        %v2972 = vsel %vm1290, %v2967, %v2971
        %v2973 = vshrl.u32 %v2912, 16
        %v2975 = vrot.slane %v2973, 4
        %v2976 = vor.u32 %v2975, %v2971
        %v2977 = vrot.slane %v2976, 4
        %v2979 = vshll.u32 %v2913, 16
        %v2981 = vrot.slane %v2979, 5
        %v2982 = vsel %vm1290, %v2977, %v2981
        %v2984 = vshrl.u32 %v2914, 16
        %v2986 = vrot.slane %v2984, 4
        %v2987 = vshll.u32 %v2914, 16
        %v2989 = vrot.slane %v2987, 5
        %v2990 = vor.u32 %v2986, %v2989
        %v2991 = vrot.slane %v2990, 4
        %v2993 = vshll.u32 %v2915, 16
        %v2995 = vrot.slane %v2993, 5
        %v2996 = vsel %vm1290, %v2991, %v2995
        %v2997 = vshrl.u32 %v2915, 16
        %v2999 = vrot.slane %v2997, 4
        %v3000 = vor.u32 %v2999, %v2995
        %v3001 = vrot.slane %v3000, 4
        %v3003 = vshll.u32 %v2916, 16
        %v3005 = vrot.slane %v3003, 5
        %v3006 = vsel %vm1290, %v3001, %v3005
        %v3008 = vshrl.u32 %v2917, 16
        %v3010 = vrot.slane %v3008, 4
        %v3011 = vshll.u32 %v2917, 16
        %v3013 = vrot.slane %v3011, 5
        %v3014 = vor.u32 %v3010, %v3013
        %v3015 = vrot.slane %v3014, 4
        %v3017 = vshll.u32 %v2918, 16
        %v3019 = vrot.slane %v3017, 5
        %v3020 = vsel %vm1290, %v3015, %v3019
        %v3021 = vshrl.u32 %v2918, 16
        %v3023 = vrot.slane %v3021, 4
        %v3024 = vor.u32 %v3023, %v3019
        %v3025 = vrot.slane %v3024, 4
        %v3027 = vshll.u32 %v2919, 16
        %v3029 = vrot.slane %v3027, 5
        %v3030 = vsel %vm1290, %v3025, %v3029
        %v3032 = vshrl.u32 %v2920, 16
        %v3034 = vrot.slane %v3032, 4
        %v3035 = vshll.u32 %v2920, 16
        %v3037 = vrot.slane %v3035, 5
        %v3038 = vor.u32 %v3034, %v3037
        %v3039 = vrot.slane %v3038, 4
        %v3041 = vshll.u32 %v2921, 16
        %v3043 = vrot.slane %v3041, 5
        %v3044 = vsel %vm1290, %v3039, %v3043
        %v3045 = vshrl.u32 %v2921, 16
        %v3047 = vrot.slane %v3045, 4
        %v3048 = vor.u32 %v3047, %v3043
        %v3049 = vrot.slane %v3048, 4
        %v3051 = vshll.u32 %v2922, 16
        %v3053 = vrot.slane %v3051, 5
        %v3054 = vsel %vm1290, %v3049, %v3053
        %v3056 = vshrl.u32 %v2923, 16
        %v3058 = vrot.slane %v3056, 4
        %v3059 = vshll.u32 %v2923, 16
        %v3061 = vrot.slane %v3059, 5
        %v3062 = vor.u32 %v3058, %v3061
        %v3063 = vrot.slane %v3062, 4
        %v3065 = vshll.u32 %v2924, 16
        %v3067 = vrot.slane %v3065, 5
        %v3068 = vsel %vm1290, %v3063, %v3067
        %v3069 = vshrl.u32 %v2924, 16
        %v3071 = vrot.slane %v3069, 4
        %v3072 = vor.u32 %v3071, %v3067
        %v3073 = vrot.slane %v3072, 4
        %v3075 = vshll.u32 %v2925, 16
        %v3077 = vrot.slane %v3075, 5
        %v3078 = vsel %vm1290, %v3073, %v3077
        %v3080 = vshrl.u32 %v2926, 16
        %v3082 = vrot.slane %v3080, 4
        %v3083 = vshll.u32 %v2926, 16
        %v3085 = vrot.slane %v3083, 5
        %v3086 = vor.u32 %v3082, %v3085
        %v3087 = vrot.slane %v3086, 4
        %v3089 = vshll.u32 %v2927, 16
        %v3091 = vrot.slane %v3089, 5
        %v3092 = vsel %vm1290, %v3087, %v3091
        %v3093 = vshrl.u32 %v2927, 16
        %v3095 = vrot.slane %v3093, 4
        %v3096 = vor.u32 %v3095, %v3091
        %v3097 = vrot.slane %v3096, 4
        %v3099 = vshll.u32 %v2928, 16
        %v3101 = vrot.slane %v3099, 5
        %v3102 = vsel %vm1290, %v3097, %v3101
        %v3104 = vshrl.u32 %v2929, 16
        %v3106 = vrot.slane %v3104, 4
        %v3107 = vshll.u32 %v2929, 16
        %v3109 = vrot.slane %v3107, 5
        %v3110 = vor.u32 %v3106, %v3109
        %v3111 = vrot.slane %v3110, 4
        %v3113 = vshll.u32 %v2930, 16
        %v3115 = vrot.slane %v3113, 5
        %v3116 = vsel %vm1290, %v3111, %v3115
        %v3117 = vshrl.u32 %v2930, 16
        %v3119 = vrot.slane %v3117, 4
        %v3120 = vor.u32 %v3119, %v3115
        %v3121 = vrot.slane %v3120, 4
        %v3123 = vshll.u32 %v2931, 16
        %v3125 = vrot.slane %v3123, 5
        %v3126 = vsel %vm1290, %v3121, %v3125
        %v3128 = vshrl.u32 %v2932, 16
        %v3130 = vrot.slane %v3128, 4
        %v3131 = vshll.u32 %v2932, 16
        %v3133 = vrot.slane %v3131, 5
        %v3134 = vor.u32 %v3130, %v3133
        %v3135 = vrot.slane %v3134, 4
        %v3137 = vshll.u32 %v2933, 16
        %v3139 = vrot.slane %v3137, 5
        %v3140 = vsel %vm1290, %v3135, %v3139
        %v3141 = vshrl.u32 %v2933, 16
        %v3143 = vrot.slane %v3141, 4
        %v3144 = vor.u32 %v3143, %v3139
        %v3145 = vrot.slane %v3144, 4
        %v3147 = vshll.u32 %v2934, 16
        %v3149 = vrot.slane %v3147, 5
        %v3150 = vsel %vm1290, %v3145, %v3149
        %v3152 = vshrl.u32 %v2935, 16
        %v3154 = vrot.slane %v3152, 4
        %v3155 = vshll.u32 %v2935, 16
        %v3157 = vrot.slane %v3155, 5
        %v3158 = vor.u32 %v3154, %v3157
        %v3159 = vrot.slane %v3158, 4
        %v3161 = vshll.u32 %v2936, 16
        %v3163 = vrot.slane %v3161, 5
        %v3164 = vsel %vm1290, %v3159, %v3163
        %v3165 = vshrl.u32 %v2936, 16
        %v3167 = vrot.slane %v3165, 4
        %v3168 = vor.u32 %v3167, %v3163
        %v3169 = vrot.slane %v3168, 4
        %v3171 = vshll.u32 %v2937, 16
        %v3173 = vrot.slane %v3171, 5
        %v3174 = vsel %vm1290, %v3169, %v3173
        %v3176 = vshrl.u32 %v2938, 16
        %v3178 = vrot.slane %v3176, 4
        %v3179 = vshll.u32 %v2938, 16
        %v3181 = vrot.slane %v3179, 5
        %v3182 = vor.u32 %v3178, %v3181
        %v3183 = vrot.slane %v3182, 4
        %v3185 = vshll.u32 %v2939, 16
        %v3187 = vrot.slane %v3185, 5
        %v3188 = vsel %vm1290, %v3183, %v3187
        %v3189 = vshrl.u32 %v2939, 16
        %v3191 = vrot.slane %v3189, 4
        %v3192 = vor.u32 %v3191, %v3187
        %v3193 = vrot.slane %v3192, 4
        %v3195 = vshll.u32 %v2940, 16
        %v3197 = vrot.slane %v3195, 5
        %v3198 = vsel %vm1290, %v3193, %v3197
        %v3200 = vshrl.u32 %v2941, 16
        %v3202 = vrot.slane %v3200, 4
        %v3203 = vshll.u32 %v2941, 16
        %v3205 = vrot.slane %v3203, 5
        %v3206 = vor.u32 %v3202, %v3205
        %v3207 = vrot.slane %v3206, 4
        %v3209 = vshll.u32 %v2942, 16
        %v3211 = vrot.slane %v3209, 5
        %v3212 = vsel %vm1290, %v3207, %v3211
        %v3213 = vshrl.u32 %v2942, 16
        %v3215 = vrot.slane %v3213, 4
        %v3216 = vor.u32 %v3215, %v3211
        %v3217 = vrot.slane %v3216, 4
        %v3219 = vshll.u32 %v2943, 16
        %v3221 = vrot.slane %v3219, 5
        %v3222 = vsel %vm1290, %v3217, %v3221
        %v3224 = vshrl.u32 %v2944, 16
        %v3226 = vrot.slane %v3224, 4
        %v3227 = vshll.u32 %v2944, 16
        %v3229 = vrot.slane %v3227, 5
        %v3230 = vor.u32 %v3226, %v3229
        %v3231 = vrot.slane %v3230, 4
        %v3233 = vshll.u32 %v2945, 16
        %v3235 = vrot.slane %v3233, 5
        %v3236 = vsel %vm1290, %v3231, %v3235
        %v3237 = vshrl.u32 %v2945, 16
        %v3239 = vrot.slane %v3237, 4
        %v3240 = vor.u32 %v3239, %v3235
        %v3241 = vrot.slane %v3240, 4
        %v3243 = vshll.u32 %v2946, 16
        %v3245 = vrot.slane %v3243, 5
        %v3246 = vsel %vm1290, %v3241, %v3245
        %v3248 = vshrl.u32 %v2947, 16
        %v3250 = vrot.slane %v3248, 4
        %v3251 = vshll.u32 %v2947, 16
        %v3253 = vrot.slane %v3251, 5
        %v3254 = vor.u32 %v3250, %v3253
        %v3255 = vrot.slane %v3254, 4
        %v3257 = vshll.u32 %v2948, 16
        %v3259 = vrot.slane %v3257, 5
        %v3260 = vsel %vm1290, %v3255, %v3259
        %v3261 = vshrl.u32 %v2948, 16
        %v3263 = vrot.slane %v3261, 4
        %v3264 = vor.u32 %v3263, %v3259
        %v3265 = vrot.slane %v3264, 4
        %v3267 = vshll.u32 %v2949, 16
        %v3269 = vrot.slane %v3267, 5
        %v3270 = vsel %vm1290, %v3265, %v3269
        %v3272 = vshrl.u32 %v2950, 16
        %v3274 = vrot.slane %v3272, 4
        %v3275 = vshll.u32 %v2950, 16
        %v3277 = vrot.slane %v3275, 5
        %v3278 = vor.u32 %v3274, %v3277
        %v3279 = vrot.slane %v3278, 4
        %v3281 = vshll.u32 %v2951, 16
        %v3283 = vrot.slane %v3281, 5
        %v3284 = vsel %vm1290, %v3279, %v3283
        %v3285 = vshrl.u32 %v2951, 16
        %v3287 = vrot.slane %v3285, 4
        %v3288 = vor.u32 %v3287, %v3283
        %v3289 = vrot.slane %v3288, 4
        %v3291 = vshll.u32 %v2952, 16
        %v3293 = vrot.slane %v3291, 5
        %v3294 = vsel %vm1290, %v3289, %v3293
        %v3296 = vshrl.u32 %v2953, 16
        %v3298 = vrot.slane %v3296, 4
        %v3299 = vshll.u32 %v2953, 16
        %v3301 = vrot.slane %v3299, 5
        %v3302 = vor.u32 %v3298, %v3301
        %v3303 = vrot.slane %v3302, 4
        %v3305 = vshll.u32 %v2954, 16
        %v3307 = vrot.slane %v3305, 5
        %v3308 = vsel %vm1290, %v3303, %v3307
        %v3309 = vshrl.u32 %v2954, 16
        %v3311 = vrot.slane %v3309, 4
        %v3312 = vor.u32 %v3311, %v3307
        %v3313 = vrot.slane %v3312, 4
        %v3315 = vshll.u32 %v2955, 16
        %v3317 = vrot.slane %v3315, 5
        %v3318 = vsel %vm1290, %v3313, %v3317
        %v3320 = vshrl.u32 %v2956, 16
        %v3322 = vrot.slane %v3320, 4
        %v3323 = vshll.u32 %v2956, 16
        %v3325 = vrot.slane %v3323, 5
        %v3326 = vor.u32 %v3322, %v3325
        %v3327 = vrot.slane %v3326, 4
        %v3329 = vshll.u32 %v2957, 16
        %v3331 = vrot.slane %v3329, 5
        %v3332 = vsel %vm1290, %v3327, %v3331
        %v3333 = vshrl.u32 %v2957, 16
        %v3335 = vrot.slane %v3333, 4
        %v3336 = vor.u32 %v3335, %v3331
        %v3337 = vrot.slane %v3336, 4
        %v3339 = vshll.u32 %v2958, 16
        %v3341 = vrot.slane %v3339, 5
        %v3342 = vsel %vm1290, %v3337, %v3341
        %3375 = vst [vmem:[#allocation3 + $0x1c] sm:$0xf] %v2972
        %3376 = vst [vmem:[#allocation3 + $0x40] sm:$0xf] %v2982
        %3377 = vst [vmem:[#allocation3 + $0x64] sm:$0xf] %v2996
        %3378 = vst [vmem:[#allocation3 + $0x88] sm:$0xf] %v3006
        %3379 = vst [vmem:[#allocation3 + $0xac] sm:$0xf] %v3020
        %3380 = vst [vmem:[#allocation3 + $0xd0] sm:$0xf] %v3030
        %3381 = vst [vmem:[#allocation3 + $0xf4] sm:$0xf] %v3044
        %3382 = vst [vmem:[#allocation3 + $0x118] sm:$0xf] %v3054
        %3383 = vst [vmem:[#allocation3 + $0x13c] sm:$0xf] %v3068
        %3384 = vst [vmem:[#allocation3 + $0x160] sm:$0xf] %v3078
        %3385 = vst [vmem:[#allocation3 + $0x184] sm:$0xf] %v3092
        %3386 = vst [vmem:[#allocation3 + $0x1a8] sm:$0xf] %v3102
        %3387 = vst [vmem:[#allocation3 + $0x1cc] sm:$0xf] %v3116
        %3388 = vst [vmem:[#allocation3 + $0x1f0] sm:$0xf] %v3126
        %3389 = vst [vmem:[#allocation3 + $0x214] sm:$0xf] %v3140
        %3390 = vst [vmem:[#allocation3 + $0x238] sm:$0xf] %v3150
        %3391 = vst [vmem:[#allocation3 + $0x25c] sm:$0xf] %v3164
        %3392 = vst [vmem:[#allocation3 + $0x280] sm:$0xf] %v3174
        %3393 = vst [vmem:[#allocation3 + $0x2a4] sm:$0xf] %v3188
        %3394 = vst [vmem:[#allocation3 + $0x2c8] sm:$0xf] %v3198
        %3395 = vst [vmem:[#allocation3 + $0x2ec] sm:$0xf] %v3212
        %3396 = vst [vmem:[#allocation3 + $0x310] sm:$0xf] %v3222
        %3397 = vst [vmem:[#allocation3 + $0x334] sm:$0xf] %v3236
        %3398 = vst [vmem:[#allocation3 + $0x358] sm:$0xf] %v3246
        %3399 = vst [vmem:[#allocation3 + $0x37c] sm:$0xf] %v3260
        %3400 = vst [vmem:[#allocation3 + $0x3a0] sm:$0xf] %v3270
        %3401 = vst [vmem:[#allocation3 + $0x3c4] sm:$0xf] %v3284
        %3402 = vst [vmem:[#allocation3 + $0x3e8] sm:$0xf] %v3294
        %3403 = vst [vmem:[#allocation3 + $0x40c] sm:$0xf] %v3308
        %3404 = vst [vmem:[#allocation3 + $0x430] sm:$0xf] %v3318
        %3405 = vst [vmem:[#allocation3 + $0x454] sm:$0xf] %v3332
        %3406 = vst [vmem:[#allocation3 + $0x478] sm:$0xf] %v3342
        %v3407 = vld [vmem:[%s2846] sm:$0xe]
        %v3408 = vld [vmem:[%s2846 + $0x4] sm:$0xf]
        %v3409 = vld [vmem:[%s2846 + $0x8] sm:$0x1]
        %v3410 = vld [vmem:[%s2846 + $0xc] sm:$0xe]
        %v3411 = vld [vmem:[%s2846 + $0x10] sm:$0xf]
        %v3412 = vld [vmem:[%s2846 + $0x14] sm:$0x1]
        %v3413 = vld [vmem:[%s2846 + $0x18] sm:$0xe]
        %v3414 = vld [vmem:[%s2846 + $0x1c] sm:$0xf]
        %v3415 = vld [vmem:[%s2846 + $0x20] sm:$0x1]
        %v3416 = vld [vmem:[%s2846 + $0x24] sm:$0xe]
        %v3417 = vld [vmem:[%s2846 + $0x28] sm:$0xf]
        %v3418 = vld [vmem:[%s2846 + $0x2c] sm:$0x1]
        %v3419 = vld [vmem:[%s2846 + $0x30] sm:$0xe]
        %v3420 = vld [vmem:[%s2846 + $0x34] sm:$0xf]
        %v3421 = vld [vmem:[%s2846 + $0x38] sm:$0x1]
        %v3422 = vld [vmem:[%s2846 + $0x3c] sm:$0xe]
        %v3423 = vld [vmem:[%s2846 + $0x40] sm:$0xf]
        %v3424 = vld [vmem:[%s2846 + $0x44] sm:$0x1]
        %v3425 = vld [vmem:[%s2846 + $0x48] sm:$0xe]
        %v3426 = vld [vmem:[%s2846 + $0x4c] sm:$0xf]
        %v3427 = vld [vmem:[%s2846 + $0x50] sm:$0x1]
        %v3428 = vld [vmem:[%s2846 + $0x54] sm:$0xe]
        %v3429 = vld [vmem:[%s2846 + $0x58] sm:$0xf]
        %v3430 = vld [vmem:[%s2846 + $0x5c] sm:$0x1]
        %v3431 = vld [vmem:[%s2846 + $0x60] sm:$0xe]
        %v3432 = vld [vmem:[%s2846 + $0x64] sm:$0xf]
        %v3433 = vld [vmem:[%s2846 + $0x68] sm:$0x1]
        %v3434 = vld [vmem:[%s2846 + $0x6c] sm:$0xe]
        %v3435 = vld [vmem:[%s2846 + $0x70] sm:$0xf]
        %v3436 = vld [vmem:[%s2846 + $0x74] sm:$0x1]
        %v3437 = vld [vmem:[%s2846 + $0x78] sm:$0xe]
        %v3438 = vld [vmem:[%s2846 + $0x7c] sm:$0xf]
        %v3439 = vld [vmem:[%s2846 + $0x80] sm:$0x1]
        %v3440 = vld [vmem:[%s2846 + $0x84] sm:$0xe]
        %v3441 = vld [vmem:[%s2846 + $0x88] sm:$0xf]
        %v3442 = vld [vmem:[%s2846 + $0x8c] sm:$0x1]
        %v3443 = vld [vmem:[%s2846 + $0x90] sm:$0xe]
        %v3444 = vld [vmem:[%s2846 + $0x94] sm:$0xf]
        %v3445 = vld [vmem:[%s2846 + $0x98] sm:$0x1]
        %v3446 = vld [vmem:[%s2846 + $0x9c] sm:$0xe]
        %v3447 = vld [vmem:[%s2846 + $0xa0] sm:$0xf]
        %v3448 = vld [vmem:[%s2846 + $0xa4] sm:$0x1]
        %v3449 = vld [vmem:[%s2846 + $0xa8] sm:$0xe]
        %v3450 = vld [vmem:[%s2846 + $0xac] sm:$0xf]
        %v3451 = vld [vmem:[%s2846 + $0xb0] sm:$0x1]
        %v3452 = vld [vmem:[%s2846 + $0xb4] sm:$0xe]
        %v3453 = vld [vmem:[%s2846 + $0xb8] sm:$0xf]
        %v3454 = vld [vmem:[%s2846 + $0xbc] sm:$0x1]
        %v3503 = vrot.slane %v3407, 5
        %v3504 = vrot.slane %v3503, 4
        %v3505 = vrot.slane %v3408, 5
        %v3506 = vsel %vm1837, %v3504, %v3505
        %v3507 = vrot.slane %v3505, 4
        %v3508 = vrot.slane %v3409, 5
        %v3509 = vsel %vm1837, %v3507, %v3508
        %v3510 = vrot.slane %v3410, 5
        %v3511 = vrot.slane %v3510, 4
        %v3512 = vrot.slane %v3411, 5
        %v3513 = vsel %vm1837, %v3511, %v3512
        %v3514 = vrot.slane %v3512, 4
        %v3515 = vrot.slane %v3412, 5
        %v3516 = vsel %vm1837, %v3514, %v3515
        %v3517 = vrot.slane %v3413, 5
        %v3518 = vrot.slane %v3517, 4
        %v3519 = vrot.slane %v3414, 5
        %v3520 = vsel %vm1837, %v3518, %v3519
        %v3521 = vrot.slane %v3519, 4
        %v3522 = vrot.slane %v3415, 5
        %v3523 = vsel %vm1837, %v3521, %v3522
        %v3524 = vrot.slane %v3416, 5
        %v3525 = vrot.slane %v3524, 4
        %v3526 = vrot.slane %v3417, 5
        %v3527 = vsel %vm1837, %v3525, %v3526
        %v3528 = vrot.slane %v3526, 4
        %v3529 = vrot.slane %v3418, 5
        %v3530 = vsel %vm1837, %v3528, %v3529
        %v3531 = vrot.slane %v3419, 5
        %v3532 = vrot.slane %v3531, 4
        %v3533 = vrot.slane %v3420, 5
        %v3534 = vsel %vm1837, %v3532, %v3533
        %v3535 = vrot.slane %v3533, 4
        %v3536 = vrot.slane %v3421, 5
        %v3537 = vsel %vm1837, %v3535, %v3536
        %v3538 = vrot.slane %v3422, 5
        %v3539 = vrot.slane %v3538, 4
        %v3540 = vrot.slane %v3423, 5
        %v3541 = vsel %vm1837, %v3539, %v3540
        %v3542 = vrot.slane %v3540, 4
        %v3543 = vrot.slane %v3424, 5
        %v3544 = vsel %vm1837, %v3542, %v3543
        %v3545 = vrot.slane %v3425, 5
        %v3546 = vrot.slane %v3545, 4
        %v3547 = vrot.slane %v3426, 5
        %v3548 = vsel %vm1837, %v3546, %v3547
        %v3549 = vrot.slane %v3547, 4
        %v3550 = vrot.slane %v3427, 5
        %v3551 = vsel %vm1837, %v3549, %v3550
        %v3552 = vrot.slane %v3428, 5
        %v3553 = vrot.slane %v3552, 4
        %v3554 = vrot.slane %v3429, 5
        %v3555 = vsel %vm1837, %v3553, %v3554
        %v3556 = vrot.slane %v3554, 4
        %v3557 = vrot.slane %v3430, 5
        %v3558 = vsel %vm1837, %v3556, %v3557
        %v3559 = vrot.slane %v3431, 5
        %v3560 = vrot.slane %v3559, 4
        %v3561 = vrot.slane %v3432, 5
        %v3562 = vsel %vm1837, %v3560, %v3561
        %v3563 = vrot.slane %v3561, 4
        %v3564 = vrot.slane %v3433, 5
        %v3565 = vsel %vm1837, %v3563, %v3564
        %v3566 = vrot.slane %v3434, 5
        %v3567 = vrot.slane %v3566, 4
        %v3568 = vrot.slane %v3435, 5
        %v3569 = vsel %vm1837, %v3567, %v3568
        %v3570 = vrot.slane %v3568, 4
        %v3571 = vrot.slane %v3436, 5
        %v3572 = vsel %vm1837, %v3570, %v3571
        %v3573 = vrot.slane %v3437, 5
        %v3574 = vrot.slane %v3573, 4
        %v3575 = vrot.slane %v3438, 5
        %v3576 = vsel %vm1837, %v3574, %v3575
        %v3577 = vrot.slane %v3575, 4
        %v3578 = vrot.slane %v3439, 5
        %v3579 = vsel %vm1837, %v3577, %v3578
        %v3580 = vrot.slane %v3440, 5
        %v3581 = vrot.slane %v3580, 4
        %v3582 = vrot.slane %v3441, 5
        %v3583 = vsel %vm1837, %v3581, %v3582
        %v3584 = vrot.slane %v3582, 4
        %v3585 = vrot.slane %v3442, 5
        %v3586 = vsel %vm1837, %v3584, %v3585
        %v3587 = vrot.slane %v3443, 5
        %v3588 = vrot.slane %v3587, 4
        %v3589 = vrot.slane %v3444, 5
        %v3590 = vsel %vm1837, %v3588, %v3589
        %v3591 = vrot.slane %v3589, 4
        %v3592 = vrot.slane %v3445, 5
        %v3593 = vsel %vm1837, %v3591, %v3592
        %v3594 = vrot.slane %v3446, 5
        %v3595 = vrot.slane %v3594, 4
        %v3596 = vrot.slane %v3447, 5
        %v3597 = vsel %vm1837, %v3595, %v3596
        %v3598 = vrot.slane %v3596, 4
        %v3599 = vrot.slane %v3448, 5
        %v3600 = vsel %vm1837, %v3598, %v3599
        %v3601 = vrot.slane %v3449, 5
        %v3602 = vrot.slane %v3601, 4
        %v3603 = vrot.slane %v3450, 5
        %v3604 = vsel %vm1837, %v3602, %v3603
        %v3605 = vrot.slane %v3603, 4
        %v3606 = vrot.slane %v3451, 5
        %v3607 = vsel %vm1837, %v3605, %v3606
        %v3608 = vrot.slane %v3452, 5
        %v3609 = vrot.slane %v3608, 4
        %v3610 = vrot.slane %v3453, 5
        %v3611 = vsel %vm1837, %v3609, %v3610
        %v3612 = vrot.slane %v3610, 4
        %v3613 = vrot.slane %v3454, 5
        %v3614 = vsel %vm1837, %v3612, %v3613
        %3647 = vst [vmem:[#allocation3 + $0x20] sm:$0xf] %v3506
        %3648 = vst [vmem:[#allocation3 + $0x44] sm:$0xf] %v3509
        %3649 = vst [vmem:[#allocation3 + $0x68] sm:$0xf] %v3513
        %3650 = vst [vmem:[#allocation3 + $0x8c] sm:$0xf] %v3516
        %3651 = vst [vmem:[#allocation3 + $0xb0] sm:$0xf] %v3520
        %3652 = vst [vmem:[#allocation3 + $0xd4] sm:$0xf] %v3523
        %3653 = vst [vmem:[#allocation3 + $0xf8] sm:$0xf] %v3527
        %3654 = vst [vmem:[#allocation3 + $0x11c] sm:$0xf] %v3530
        %3655 = vst [vmem:[#allocation3 + $0x140] sm:$0xf] %v3534
        %3656 = vst [vmem:[#allocation3 + $0x164] sm:$0xf] %v3537
        %3657 = vst [vmem:[#allocation3 + $0x188] sm:$0xf] %v3541
        %3658 = vst [vmem:[#allocation3 + $0x1ac] sm:$0xf] %v3544
        %3659 = vst [vmem:[#allocation3 + $0x1d0] sm:$0xf] %v3548
        %3660 = vst [vmem:[#allocation3 + $0x1f4] sm:$0xf] %v3551
        %3661 = vst [vmem:[#allocation3 + $0x218] sm:$0xf] %v3555
        %3662 = vst [vmem:[#allocation3 + $0x23c] sm:$0xf] %v3558
        %3663 = vst [vmem:[#allocation3 + $0x260] sm:$0xf] %v3562
        %3664 = vst [vmem:[#allocation3 + $0x284] sm:$0xf] %v3565
        %3665 = vst [vmem:[#allocation3 + $0x2a8] sm:$0xf] %v3569
        %3666 = vst [vmem:[#allocation3 + $0x2cc] sm:$0xf] %v3572
        %3667 = vst [vmem:[#allocation3 + $0x2f0] sm:$0xf] %v3576
        %3668 = vst [vmem:[#allocation3 + $0x314] sm:$0xf] %v3579
        %3669 = vst [vmem:[#allocation3 + $0x338] sm:$0xf] %v3583
        %3670 = vst [vmem:[#allocation3 + $0x35c] sm:$0xf] %v3586
        %3671 = vst [vmem:[#allocation3 + $0x380] sm:$0xf] %v3590
        %3672 = vst [vmem:[#allocation3 + $0x3a4] sm:$0xf] %v3593
        %3673 = vst [vmem:[#allocation3 + $0x3c8] sm:$0xf] %v3597
        %3674 = vst [vmem:[#allocation3 + $0x3ec] sm:$0xf] %v3600
        %3675 = vst [vmem:[#allocation3 + $0x410] sm:$0xf] %v3604
        %3676 = vst [vmem:[#allocation3 + $0x434] sm:$0xf] %v3607
        %3677 = vst [vmem:[#allocation3 + $0x458] sm:$0xf] %v3611
        %3678 = vst [vmem:[#allocation3 + $0x47c] sm:$0xf] %v3614
        %v3679 = vld [vmem:[#allocation3] sm:$0xff]
        %v3680 = vld [vmem:[#allocation3 + $0x8] sm:$0xff]
        %v3681 = vld [vmem:[#allocation3 + $0x10] sm:$0xff]
        %v3682 = vld [vmem:[#allocation3 + $0x18] sm:$0xff]
        %v3683 = vld [vmem:[#allocation3 + $0x20] sm:$0xf]
        %v3684 = vld [vmem:[#allocation3 + $0x24] sm:$0xff]
        %v3685 = vld [vmem:[#allocation3 + $0x2c] sm:$0xff]
        %v3686 = vld [vmem:[#allocation3 + $0x34] sm:$0xff]
        %v3687 = vld [vmem:[#allocation3 + $0x3c] sm:$0xff]
        %v3688 = vld [vmem:[#allocation3 + $0x44] sm:$0xf]
        %v3689 = vld [vmem:[#allocation3 + $0x48] sm:$0xff]
        %v3690 = vld [vmem:[#allocation3 + $0x50] sm:$0xff]
        %v3691 = vld [vmem:[#allocation3 + $0x58] sm:$0xff]
        %v3692 = vld [vmem:[#allocation3 + $0x60] sm:$0xff]
        %v3693 = vld [vmem:[#allocation3 + $0x68] sm:$0xf]
        %v3694 = vld [vmem:[#allocation3 + $0x6c] sm:$0xff]
        %v3695 = vld [vmem:[#allocation3 + $0x74] sm:$0xff]
        %v3696 = vld [vmem:[#allocation3 + $0x7c] sm:$0xff]
        %v3697 = vld [vmem:[#allocation3 + $0x84] sm:$0xff]
        %v3698 = vld [vmem:[#allocation3 + $0x8c] sm:$0xf]
        %v3699 = vld [vmem:[#allocation3 + $0x90] sm:$0xff]
        %v3700 = vld [vmem:[#allocation3 + $0x98] sm:$0xff]
        %v3701 = vld [vmem:[#allocation3 + $0xa0] sm:$0xff]
        %v3702 = vld [vmem:[#allocation3 + $0xa8] sm:$0xff]
        %v3703 = vld [vmem:[#allocation3 + $0xb0] sm:$0xf]
        %v3704 = vld [vmem:[#allocation3 + $0xb4] sm:$0xff]
        %v3705 = vld [vmem:[#allocation3 + $0xbc] sm:$0xff]
        %v3706 = vld [vmem:[#allocation3 + $0xc4] sm:$0xff]
        %v3707 = vld [vmem:[#allocation3 + $0xcc] sm:$0xff]
        %v3708 = vld [vmem:[#allocation3 + $0xd4] sm:$0xf]
        %v3709 = vld [vmem:[#allocation3 + $0xd8] sm:$0xff]
        %v3710 = vld [vmem:[#allocation3 + $0xe0] sm:$0xff]
        %v3711 = vld [vmem:[#allocation3 + $0xe8] sm:$0xff]
        %v3712 = vld [vmem:[#allocation3 + $0xf0] sm:$0xff]
        %v3713 = vld [vmem:[#allocation3 + $0xf8] sm:$0xf]
        %v3714 = vld [vmem:[#allocation3 + $0xfc] sm:$0xff]
        %v3715 = vld [vmem:[#allocation3 + $0x104] sm:$0xff]
        %v3716 = vld [vmem:[#allocation3 + $0x10c] sm:$0xff]
        %v3717 = vld [vmem:[#allocation3 + $0x114] sm:$0xff]
        %v3718 = vld [vmem:[#allocation3 + $0x11c] sm:$0xf]
        %v3719 = vld [vmem:[#allocation3 + $0x120] sm:$0xff]
        %v3720 = vld [vmem:[#allocation3 + $0x128] sm:$0xff]
        %v3721 = vld [vmem:[#allocation3 + $0x130] sm:$0xff]
        %v3722 = vld [vmem:[#allocation3 + $0x138] sm:$0xff]
        %v3723 = vld [vmem:[#allocation3 + $0x140] sm:$0xf]
        %v3724 = vld [vmem:[#allocation3 + $0x144] sm:$0xff]
        %v3725 = vld [vmem:[#allocation3 + $0x14c] sm:$0xff]
        %v3726 = vld [vmem:[#allocation3 + $0x154] sm:$0xff]
        %v3727 = vld [vmem:[#allocation3 + $0x15c] sm:$0xff]
        %v3728 = vld [vmem:[#allocation3 + $0x164] sm:$0xf]
        %v3729 = vld [vmem:[#allocation3 + $0x168] sm:$0xff]
        %v3730 = vld [vmem:[#allocation3 + $0x170] sm:$0xff]
        %v3731 = vld [vmem:[#allocation3 + $0x178] sm:$0xff]
        %v3732 = vld [vmem:[#allocation3 + $0x180] sm:$0xff]
        %v3733 = vld [vmem:[#allocation3 + $0x188] sm:$0xf]
        %v3734 = vld [vmem:[#allocation3 + $0x18c] sm:$0xff]
        %v3735 = vld [vmem:[#allocation3 + $0x194] sm:$0xff]
        %v3736 = vld [vmem:[#allocation3 + $0x19c] sm:$0xff]
        %v3737 = vld [vmem:[#allocation3 + $0x1a4] sm:$0xff]
        %v3738 = vld [vmem:[#allocation3 + $0x1ac] sm:$0xf]
        %v3739 = vld [vmem:[#allocation3 + $0x1b0] sm:$0xff]
        %v3740 = vld [vmem:[#allocation3 + $0x1b8] sm:$0xff]
        %v3741 = vld [vmem:[#allocation3 + $0x1c0] sm:$0xff]
        %v3742 = vld [vmem:[#allocation3 + $0x1c8] sm:$0xff]
        %v3743 = vld [vmem:[#allocation3 + $0x1d0] sm:$0xf]
        %v3744 = vld [vmem:[#allocation3 + $0x1d4] sm:$0xff]
        %v3745 = vld [vmem:[#allocation3 + $0x1dc] sm:$0xff]
        %v3746 = vld [vmem:[#allocation3 + $0x1e4] sm:$0xff]
        %v3747 = vld [vmem:[#allocation3 + $0x1ec] sm:$0xff]
        %v3748 = vld [vmem:[#allocation3 + $0x1f4] sm:$0xf]
        %v3749 = vld [vmem:[#allocation3 + $0x1f8] sm:$0xff]
        %v3750 = vld [vmem:[#allocation3 + $0x200] sm:$0xff]
        %v3751 = vld [vmem:[#allocation3 + $0x208] sm:$0xff]
        %v3752 = vld [vmem:[#allocation3 + $0x210] sm:$0xff]
        %v3753 = vld [vmem:[#allocation3 + $0x218] sm:$0xf]
        %v3754 = vld [vmem:[#allocation3 + $0x21c] sm:$0xff]
        %v3755 = vld [vmem:[#allocation3 + $0x224] sm:$0xff]
        %v3756 = vld [vmem:[#allocation3 + $0x22c] sm:$0xff]
        %v3757 = vld [vmem:[#allocation3 + $0x234] sm:$0xff]
        %v3758 = vld [vmem:[#allocation3 + $0x23c] sm:$0xf]
        %v3759 = vld [vmem:[#allocation3 + $0x240] sm:$0xff]
        %v3760 = vld [vmem:[#allocation3 + $0x248] sm:$0xff]
        %v3761 = vld [vmem:[#allocation3 + $0x250] sm:$0xff]
        %v3762 = vld [vmem:[#allocation3 + $0x258] sm:$0xff]
        %v3763 = vld [vmem:[#allocation3 + $0x260] sm:$0xf]
        %v3764 = vld [vmem:[#allocation3 + $0x264] sm:$0xff]
        %v3765 = vld [vmem:[#allocation3 + $0x26c] sm:$0xff]
        %v3766 = vld [vmem:[#allocation3 + $0x274] sm:$0xff]
        %v3767 = vld [vmem:[#allocation3 + $0x27c] sm:$0xff]
        %v3768 = vld [vmem:[#allocation3 + $0x284] sm:$0xf]
        %v3769 = vld [vmem:[#allocation3 + $0x288] sm:$0xff]
        %v3770 = vld [vmem:[#allocation3 + $0x290] sm:$0xff]
        %v3771 = vld [vmem:[#allocation3 + $0x298] sm:$0xff]
        %v3772 = vld [vmem:[#allocation3 + $0x2a0] sm:$0xff]
        %v3773 = vld [vmem:[#allocation3 + $0x2a8] sm:$0xf]
        %v3774 = vld [vmem:[#allocation3 + $0x2ac] sm:$0xff]
        %v3775 = vld [vmem:[#allocation3 + $0x2b4] sm:$0xff]
        %v3776 = vld [vmem:[#allocation3 + $0x2bc] sm:$0xff]
        %v3777 = vld [vmem:[#allocation3 + $0x2c4] sm:$0xff]
        %v3778 = vld [vmem:[#allocation3 + $0x2cc] sm:$0xf]
        %v3779 = vld [vmem:[#allocation3 + $0x2d0] sm:$0xff]
        %v3780 = vld [vmem:[#allocation3 + $0x2d8] sm:$0xff]
        %v3781 = vld [vmem:[#allocation3 + $0x2e0] sm:$0xff]
        %v3782 = vld [vmem:[#allocation3 + $0x2e8] sm:$0xff]
        %v3783 = vld [vmem:[#allocation3 + $0x2f0] sm:$0xf]
        %v3784 = vld [vmem:[#allocation3 + $0x2f4] sm:$0xff]
        %v3785 = vld [vmem:[#allocation3 + $0x2fc] sm:$0xff]
        %v3786 = vld [vmem:[#allocation3 + $0x304] sm:$0xff]
        %v3787 = vld [vmem:[#allocation3 + $0x30c] sm:$0xff]
        %v3788 = vld [vmem:[#allocation3 + $0x314] sm:$0xf]
        %v3789 = vld [vmem:[#allocation3 + $0x318] sm:$0xff]
        %v3790 = vld [vmem:[#allocation3 + $0x320] sm:$0xff]
        %v3791 = vld [vmem:[#allocation3 + $0x328] sm:$0xff]
        %v3792 = vld [vmem:[#allocation3 + $0x330] sm:$0xff]
        %v3793 = vld [vmem:[#allocation3 + $0x338] sm:$0xf]
        %v3794 = vld [vmem:[#allocation3 + $0x33c] sm:$0xff]
        %v3795 = vld [vmem:[#allocation3 + $0x344] sm:$0xff]
        %v3796 = vld [vmem:[#allocation3 + $0x34c] sm:$0xff]
        %v3797 = vld [vmem:[#allocation3 + $0x354] sm:$0xff]
        %v3798 = vld [vmem:[#allocation3 + $0x35c] sm:$0xf]
        %v3799 = vld [vmem:[#allocation3 + $0x360] sm:$0xff]
        %v3800 = vld [vmem:[#allocation3 + $0x368] sm:$0xff]
        %v3801 = vld [vmem:[#allocation3 + $0x370] sm:$0xff]
        %v3802 = vld [vmem:[#allocation3 + $0x378] sm:$0xff]
        %v3803 = vld [vmem:[#allocation3 + $0x380] sm:$0xf]
        %v3804 = vld [vmem:[#allocation3 + $0x384] sm:$0xff]
        %v3805 = vld [vmem:[#allocation3 + $0x38c] sm:$0xff]
        %v3806 = vld [vmem:[#allocation3 + $0x394] sm:$0xff]
        %v3807 = vld [vmem:[#allocation3 + $0x39c] sm:$0xff]
        %v3808 = vld [vmem:[#allocation3 + $0x3a4] sm:$0xf]
        %v3809 = vld [vmem:[#allocation3 + $0x3a8] sm:$0xff]
        %v3810 = vld [vmem:[#allocation3 + $0x3b0] sm:$0xff]
        %v3811 = vld [vmem:[#allocation3 + $0x3b8] sm:$0xff]
        %v3812 = vld [vmem:[#allocation3 + $0x3c0] sm:$0xff]
        %v3813 = vld [vmem:[#allocation3 + $0x3c8] sm:$0xf]
        %v3814 = vld [vmem:[#allocation3 + $0x3cc] sm:$0xff]
        %v3815 = vld [vmem:[#allocation3 + $0x3d4] sm:$0xff]
        %v3816 = vld [vmem:[#allocation3 + $0x3dc] sm:$0xff]
        %v3817 = vld [vmem:[#allocation3 + $0x3e4] sm:$0xff]
        %v3818 = vld [vmem:[#allocation3 + $0x3ec] sm:$0xf]
        %v3819 = vld [vmem:[#allocation3 + $0x3f0] sm:$0xff]
        %v3820 = vld [vmem:[#allocation3 + $0x3f8] sm:$0xff]
        %v3821 = vld [vmem:[#allocation3 + $0x400] sm:$0xff]
        %v3822 = vld [vmem:[#allocation3 + $0x408] sm:$0xff]
        %v3823 = vld [vmem:[#allocation3 + $0x410] sm:$0xf]
        %v3824 = vld [vmem:[#allocation3 + $0x414] sm:$0xff]
        %v3825 = vld [vmem:[#allocation3 + $0x41c] sm:$0xff]
        %v3826 = vld [vmem:[#allocation3 + $0x424] sm:$0xff]
        %v3827 = vld [vmem:[#allocation3 + $0x42c] sm:$0xff]
        %v3828 = vld [vmem:[#allocation3 + $0x434] sm:$0xf]
        %v3829 = vld [vmem:[#allocation3 + $0x438] sm:$0xff]
        %v3830 = vld [vmem:[#allocation3 + $0x440] sm:$0xff]
        %v3831 = vld [vmem:[#allocation3 + $0x448] sm:$0xff]
        %v3832 = vld [vmem:[#allocation3 + $0x450] sm:$0xff]
        %v3833 = vld [vmem:[#allocation3 + $0x458] sm:$0xf]
        %v3834 = vld [vmem:[#allocation3 + $0x45c] sm:$0xff]
        %v3835 = vld [vmem:[#allocation3 + $0x464] sm:$0xff]
        %v3836 = vld [vmem:[#allocation3 + $0x46c] sm:$0xff]
        %v3837 = vld [vmem:[#allocation3 + $0x474] sm:$0xff]
        %v3838 = vld [vmem:[#allocation3 + $0x47c] sm:$0xf]
        %v3839 = vld [vmem:[#allocation9] sm:$0xf]
        %v3840 = vld [vmem:[#allocation9 + $0x4] sm:$0xf]
        %v3841 = vld [vmem:[#allocation9 + $0x8] sm:$0xf]
        %v3842 = vld [vmem:[#allocation9 + $0xc] sm:$0xf]
        %v3843 = vld [vmem:[#allocation9 + $0x10] sm:$0xf]
        %v3844 = vld [vmem:[#allocation9 + $0x14] sm:$0xf]
        %v3845 = vld [vmem:[#allocation9 + $0x18] sm:$0xf]
        %v3846 = vld [vmem:[#allocation9 + $0x1c] sm:$0xf]
        %v3847 = vld [vmem:[#allocation9 + $0x20] sm:$0xf]
        %v3848 = vld [vmem:[#allocation9 + $0x24] sm:$0xf]
        %v3849 = vld [vmem:[#allocation9 + $0x28] sm:$0xf]
        %v3850 = vld [vmem:[#allocation9 + $0x2c] sm:$0xf]
        %v3851 = vld [vmem:[#allocation9 + $0x30] sm:$0xf]
        %v3852 = vld [vmem:[#allocation9 + $0x34] sm:$0xf]
        %v3853 = vld [vmem:[#allocation9 + $0x38] sm:$0xf]
        %v3854 = vld [vmem:[#allocation9 + $0x3c] sm:$0xf]
        %v3855 = vld [vmem:[#allocation9 + $0x40] sm:$0xf]
        %v3856 = vld [vmem:[#allocation9 + $0x44] sm:$0xf]
        %v3857 = vld [vmem:[#allocation9 + $0x48] sm:$0xf]
        %v3858 = vld [vmem:[#allocation9 + $0x4c] sm:$0xf]
        %v3859 = vld [vmem:[#allocation9 + $0x50] sm:$0xf]
        %v3860 = vld [vmem:[#allocation9 + $0x54] sm:$0xf]
        %v3861 = vld [vmem:[#allocation9 + $0x58] sm:$0xf]
        %v3862 = vld [vmem:[#allocation9 + $0x5c] sm:$0xf]
        %v3863 = vld [vmem:[#allocation9 + $0x60] sm:$0xf]
        %v3864 = vld [vmem:[#allocation9 + $0x64] sm:$0xf]
        %v3865 = vld [vmem:[#allocation9 + $0x68] sm:$0xf]
        %v3866 = vld [vmem:[#allocation9 + $0x6c] sm:$0xf]
        %v3867 = vld [vmem:[#allocation9 + $0x70] sm:$0xf]
        %v3868 = vld [vmem:[#allocation9 + $0x74] sm:$0xf]
        %v3869 = vld [vmem:[#allocation9 + $0x78] sm:$0xf]
        %v3870 = vld [vmem:[#allocation9 + $0x7c] sm:$0xf]
        %v3871 = vld [vmem:[#allocation9 + $0x80] sm:$0xf]
        %v3872 = vld [vmem:[#allocation9 + $0x84] sm:$0xf]
        %v3873 = vld [vmem:[#allocation9 + $0x88] sm:$0xf]
        %v3874 = vld [vmem:[#allocation9 + $0x8c] sm:$0xf]
        %v3875 = vld [vmem:[#allocation9 + $0x90] sm:$0xf]
        %v3876 = vld [vmem:[#allocation9 + $0x94] sm:$0xf]
        %v3877 = vld [vmem:[#allocation9 + $0x98] sm:$0xf]
        %v3878 = vld [vmem:[#allocation9 + $0x9c] sm:$0xf]
        %v3879 = vld [vmem:[#allocation9 + $0xa0] sm:$0xf]
        %v3880 = vld [vmem:[#allocation9 + $0xa4] sm:$0xf]
        %v3881 = vld [vmem:[#allocation9 + $0xa8] sm:$0xf]
        %v3882 = vld [vmem:[#allocation9 + $0xac] sm:$0xf]
        %v3883 = vld [vmem:[#allocation9 + $0xb0] sm:$0xf]
        %v3884 = vld [vmem:[#allocation9 + $0xb4] sm:$0xf]
        %v3885 = vld [vmem:[#allocation9 + $0xb8] sm:$0xf]
        %v3886 = vld [vmem:[#allocation9 + $0xbc] sm:$0xf]
        %v3887 = vld [vmem:[#allocation9 + $0xc0] sm:$0xf]
        %v3888 = vld [vmem:[#allocation9 + $0xc4] sm:$0xf]
        %v3889 = vld [vmem:[#allocation9 + $0xc8] sm:$0xf]
        %v3890 = vld [vmem:[#allocation9 + $0xcc] sm:$0xf]
        %v3891 = vld [vmem:[#allocation9 + $0xd0] sm:$0xf]
        %v3892 = vld [vmem:[#allocation9 + $0xd4] sm:$0xf]
        %v3893 = vld [vmem:[#allocation9 + $0xd8] sm:$0xf]
        %v3894 = vld [vmem:[#allocation9 + $0xdc] sm:$0xf]
        %v3895 = vld [vmem:[#allocation9 + $0xe0] sm:$0xf]
        %v3896 = vld [vmem:[#allocation9 + $0xe4] sm:$0xf]
        %v3897 = vld [vmem:[#allocation9 + $0xe8] sm:$0xf]
        %v3898 = vld [vmem:[#allocation9 + $0xec] sm:$0xf]
        %v3899 = vld [vmem:[#allocation9 + $0xf0] sm:$0xf]
        %v3900 = vld [vmem:[#allocation9 + $0xf4] sm:$0xf]
        %v3901 = vld [vmem:[#allocation9 + $0xf8] sm:$0xf]
        %v3902 = vld [vmem:[#allocation9 + $0xfc] sm:$0xf]
        %v3903 = vld [vmem:[#allocation9 + $0x100] sm:$0xf]
        %v3904 = vld [vmem:[#allocation9 + $0x104] sm:$0xf]
        %v3905 = vld [vmem:[#allocation9 + $0x108] sm:$0xf]
        %v3906 = vld [vmem:[#allocation9 + $0x10c] sm:$0xf]
        %v3907 = vld [vmem:[#allocation9 + $0x110] sm:$0xf]
        %v3908 = vld [vmem:[#allocation9 + $0x114] sm:$0xf]
        %v3909 = vld [vmem:[#allocation9 + $0x118] sm:$0xf]
        %v3910 = vld [vmem:[#allocation9 + $0x11c] sm:$0xf]
        %v3911 = vld [vmem:[#allocation9 + $0x120] sm:$0xf]
        %v3912 = vld [vmem:[#allocation9 + $0x124] sm:$0xf]
        %v3913 = vld [vmem:[#allocation9 + $0x128] sm:$0xf]
        %v3914 = vld [vmem:[#allocation9 + $0x12c] sm:$0xf]
        %v3915 = vld [vmem:[#allocation9 + $0x130] sm:$0xf]
        %v3916 = vld [vmem:[#allocation9 + $0x134] sm:$0xf]
        %v3917 = vld [vmem:[#allocation9 + $0x138] sm:$0xf]
        %v3918 = vld [vmem:[#allocation9 + $0x13c] sm:$0xf]
        %v3919 = vld [vmem:[#allocation9 + $0x140] sm:$0xf]
        %v3920 = vld [vmem:[#allocation9 + $0x144] sm:$0xf]
        %v3921 = vld [vmem:[#allocation9 + $0x148] sm:$0xf]
        %v3922 = vld [vmem:[#allocation9 + $0x14c] sm:$0xf]
        %v3923 = vld [vmem:[#allocation9 + $0x150] sm:$0xf]
        %v3924 = vld [vmem:[#allocation9 + $0x154] sm:$0xf]
        %v3925 = vld [vmem:[#allocation9 + $0x158] sm:$0xf]
        %v3926 = vld [vmem:[#allocation9 + $0x15c] sm:$0xf]
        %v3927 = vld [vmem:[#allocation9 + $0x160] sm:$0xf]
        %v3928 = vld [vmem:[#allocation9 + $0x164] sm:$0xf]
        %v3929 = vld [vmem:[#allocation9 + $0x168] sm:$0xf]
        %v3930 = vld [vmem:[#allocation9 + $0x16c] sm:$0xf]
        %v3931 = vld [vmem:[#allocation9 + $0x170] sm:$0xf]
        %v3932 = vld [vmem:[#allocation9 + $0x174] sm:$0xf]
        %v3933 = vld [vmem:[#allocation9 + $0x178] sm:$0xf]
        %v3934 = vld [vmem:[#allocation9 + $0x17c] sm:$0xf]
        %v3935 = vld [vmem:[#allocation9 + $0x180] sm:$0xf]
        %v3936 = vld [vmem:[#allocation9 + $0x184] sm:$0xf]
        %v3937 = vld [vmem:[#allocation9 + $0x188] sm:$0xf]
        %v3938 = vld [vmem:[#allocation9 + $0x18c] sm:$0xf]
        %v3939 = vld [vmem:[#allocation9 + $0x190] sm:$0xf]
        %v3940 = vld [vmem:[#allocation9 + $0x194] sm:$0xf]
        %v3941 = vld [vmem:[#allocation9 + $0x198] sm:$0xf]
        %v3942 = vld [vmem:[#allocation9 + $0x19c] sm:$0xf]
        %v3943 = vld [vmem:[#allocation9 + $0x1a0] sm:$0xf]
        %v3944 = vld [vmem:[#allocation9 + $0x1a4] sm:$0xf]
        %v3945 = vld [vmem:[#allocation9 + $0x1a8] sm:$0xf]
        %v3946 = vld [vmem:[#allocation9 + $0x1ac] sm:$0xf]
        %v3947 = vld [vmem:[#allocation9 + $0x1b0] sm:$0xf]
        %v3948 = vld [vmem:[#allocation9 + $0x1b4] sm:$0xf]
        %v3949 = vld [vmem:[#allocation9 + $0x1b8] sm:$0xf]
        %v3950 = vld [vmem:[#allocation9 + $0x1bc] sm:$0xf]
        %v3951 = vld [vmem:[#allocation9 + $0x1c0] sm:$0xf]
        %v3952 = vld [vmem:[#allocation9 + $0x1c4] sm:$0xf]
        %v3953 = vld [vmem:[#allocation9 + $0x1c8] sm:$0xf]
        %v3954 = vld [vmem:[#allocation9 + $0x1cc] sm:$0xf]
        %v3955 = vld [vmem:[#allocation9 + $0x1d0] sm:$0xf]
        %v3956 = vld [vmem:[#allocation9 + $0x1d4] sm:$0xf]
        %v3957 = vld [vmem:[#allocation9 + $0x1d8] sm:$0xf]
        %v3958 = vld [vmem:[#allocation9 + $0x1dc] sm:$0xf]
        %v3959 = vld [vmem:[#allocation9 + $0x1e0] sm:$0xf]
        %v3960 = vld [vmem:[#allocation9 + $0x1e4] sm:$0xf]
        %v3961 = vld [vmem:[#allocation9 + $0x1e8] sm:$0xf]
        %v3962 = vld [vmem:[#allocation9 + $0x1ec] sm:$0xf]
        %v3963 = vld [vmem:[#allocation9 + $0x1f0] sm:$0xf]
        %v3964 = vld [vmem:[#allocation9 + $0x1f4] sm:$0xf]
        %v3965 = vld [vmem:[#allocation9 + $0x1f8] sm:$0xf]
        %v3966 = vld [vmem:[#allocation9 + $0x1fc] sm:$0xf]
        %v3967 = vld [vmem:[#allocation9 + $0x200] sm:$0xf]
        %v3968 = vld [vmem:[#allocation9 + $0x204] sm:$0xf]
        %v3969 = vld [vmem:[#allocation9 + $0x208] sm:$0xf]
        %v3970 = vld [vmem:[#allocation9 + $0x20c] sm:$0xf]
        %v3971 = vld [vmem:[#allocation9 + $0x210] sm:$0xf]
        %v3972 = vld [vmem:[#allocation9 + $0x214] sm:$0xf]
        %v3973 = vld [vmem:[#allocation9 + $0x218] sm:$0xf]
        %v3974 = vld [vmem:[#allocation9 + $0x21c] sm:$0xf]
        %v3975 = vld [vmem:[#allocation9 + $0x220] sm:$0xf]
        %v3976 = vld [vmem:[#allocation9 + $0x224] sm:$0xf]
        %v3977 = vld [vmem:[#allocation9 + $0x228] sm:$0xf]
        %v3978 = vld [vmem:[#allocation9 + $0x22c] sm:$0xf]
        %v3979 = vld [vmem:[#allocation9 + $0x230] sm:$0xf]
        %v3980 = vld [vmem:[#allocation9 + $0x234] sm:$0xf]
        %v3981 = vld [vmem:[#allocation9 + $0x238] sm:$0xf]
        %v3982 = vld [vmem:[#allocation9 + $0x23c] sm:$0xf]
        %v3983 = vld [vmem:[%s4] sm:$0x1]
        %v3985 = vperm.slane %v3983, 0
        %v4147 = vunpack.c.l.b16 %v3679
        %v4148 = vunpack.c.h.b16 %v3679
        %v4149 = vunpack.c.l.b16 %v3680
        %v4150 = vunpack.c.h.b16 %v3680
        %v4151 = vunpack.c.l.b16 %v3681
        %v4152 = vunpack.c.h.b16 %v3681
        %v4153 = vunpack.c.l.b16 %v3682
        %v4154 = vunpack.c.h.b16 %v3682
        %v4155 = vunpack.c.l.b16 %v3683
        %v4156 = vunpack.c.l.b16 %v3684
        %v4157 = vunpack.c.h.b16 %v3684
        %v4158 = vunpack.c.l.b16 %v3685
        %v4159 = vunpack.c.h.b16 %v3685
        %v4160 = vunpack.c.l.b16 %v3686
        %v4161 = vunpack.c.h.b16 %v3686
        %v4162 = vunpack.c.l.b16 %v3687
        %v4163 = vunpack.c.h.b16 %v3687
        %v4164 = vunpack.c.l.b16 %v3688
        %v4165 = vunpack.c.l.b16 %v3689
        %v4166 = vunpack.c.h.b16 %v3689
        %v4167 = vunpack.c.l.b16 %v3690
        %v4168 = vunpack.c.h.b16 %v3690
        %v4169 = vunpack.c.l.b16 %v3691
        %v4170 = vunpack.c.h.b16 %v3691
        %v4171 = vunpack.c.l.b16 %v3692
        %v4172 = vunpack.c.h.b16 %v3692
        %v4173 = vunpack.c.l.b16 %v3693
        %v4174 = vunpack.c.l.b16 %v3694
        %v4175 = vunpack.c.h.b16 %v3694
        %v4176 = vunpack.c.l.b16 %v3695
        %v4177 = vunpack.c.h.b16 %v3695
        %v4178 = vunpack.c.l.b16 %v3696
        %v4179 = vunpack.c.h.b16 %v3696
        %v4180 = vunpack.c.l.b16 %v3697
        %v4181 = vunpack.c.h.b16 %v3697
        %v4182 = vunpack.c.l.b16 %v3698
        %v4183 = vunpack.c.l.b16 %v3699
        %v4184 = vunpack.c.h.b16 %v3699
        %v4185 = vunpack.c.l.b16 %v3700
        %v4186 = vunpack.c.h.b16 %v3700
        %v4187 = vunpack.c.l.b16 %v3701
        %v4188 = vunpack.c.h.b16 %v3701
        %v4189 = vunpack.c.l.b16 %v3702
        %v4190 = vunpack.c.h.b16 %v3702
        %v4191 = vunpack.c.l.b16 %v3703
        %v4192 = vunpack.c.l.b16 %v3704
        %v4193 = vunpack.c.h.b16 %v3704
        %v4194 = vunpack.c.l.b16 %v3705
        %v4195 = vunpack.c.h.b16 %v3705
        %v4196 = vunpack.c.l.b16 %v3706
        %v4197 = vunpack.c.h.b16 %v3706
        %v4198 = vunpack.c.l.b16 %v3707
        %v4199 = vunpack.c.h.b16 %v3707
        %v4200 = vunpack.c.l.b16 %v3708
        %v4201 = vunpack.c.l.b16 %v3709
        %v4202 = vunpack.c.h.b16 %v3709
        %v4203 = vunpack.c.l.b16 %v3710
        %v4204 = vunpack.c.h.b16 %v3710
        %v4205 = vunpack.c.l.b16 %v3711
        %v4206 = vunpack.c.h.b16 %v3711
        %v4207 = vunpack.c.l.b16 %v3712
        %v4208 = vunpack.c.h.b16 %v3712
        %v4209 = vunpack.c.l.b16 %v3713
        %v4210 = vunpack.c.l.b16 %v3714
        %v4211 = vunpack.c.h.b16 %v3714
        %v4212 = vunpack.c.l.b16 %v3715
        %v4213 = vunpack.c.h.b16 %v3715
        %v4214 = vunpack.c.l.b16 %v3716
        %v4215 = vunpack.c.h.b16 %v3716
        %v4216 = vunpack.c.l.b16 %v3717
        %v4217 = vunpack.c.h.b16 %v3717
        %v4218 = vunpack.c.l.b16 %v3718
        %v4219 = vunpack.c.l.b16 %v3719
        %v4220 = vunpack.c.h.b16 %v3719
        %v4221 = vunpack.c.l.b16 %v3720
        %v4222 = vunpack.c.h.b16 %v3720
        %v4223 = vunpack.c.l.b16 %v3721
        %v4224 = vunpack.c.h.b16 %v3721
        %v4225 = vunpack.c.l.b16 %v3722
        %v4226 = vunpack.c.h.b16 %v3722
        %v4227 = vunpack.c.l.b16 %v3723
        %v4228 = vunpack.c.l.b16 %v3724
        %v4229 = vunpack.c.h.b16 %v3724
        %v4230 = vunpack.c.l.b16 %v3725
        %v4231 = vunpack.c.h.b16 %v3725
        %v4232 = vunpack.c.l.b16 %v3726
        %v4233 = vunpack.c.h.b16 %v3726
        %v4234 = vunpack.c.l.b16 %v3727
        %v4235 = vunpack.c.h.b16 %v3727
        %v4236 = vunpack.c.l.b16 %v3728
        %v4237 = vunpack.c.l.b16 %v3729
        %v4238 = vunpack.c.h.b16 %v3729
        %v4239 = vunpack.c.l.b16 %v3730
        %v4240 = vunpack.c.h.b16 %v3730
        %v4241 = vunpack.c.l.b16 %v3731
        %v4242 = vunpack.c.h.b16 %v3731
        %v4243 = vunpack.c.l.b16 %v3732
        %v4244 = vunpack.c.h.b16 %v3732
        %v4245 = vunpack.c.l.b16 %v3733
        %v4246 = vunpack.c.l.b16 %v3734
        %v4247 = vunpack.c.h.b16 %v3734
        %v4248 = vunpack.c.l.b16 %v3735
        %v4249 = vunpack.c.h.b16 %v3735
        %v4250 = vunpack.c.l.b16 %v3736
        %v4251 = vunpack.c.h.b16 %v3736
        %v4252 = vunpack.c.l.b16 %v3737
        %v4253 = vunpack.c.h.b16 %v3737
        %v4254 = vunpack.c.l.b16 %v3738
        %v4255 = vunpack.c.l.b16 %v3739
        %v4256 = vunpack.c.h.b16 %v3739
        %v4257 = vunpack.c.l.b16 %v3740
        %v4258 = vunpack.c.h.b16 %v3740
        %v4259 = vunpack.c.l.b16 %v3741
        %v4260 = vunpack.c.h.b16 %v3741
        %v4261 = vunpack.c.l.b16 %v3742
        %v4262 = vunpack.c.h.b16 %v3742
        %v4263 = vunpack.c.l.b16 %v3743
        %v4264 = vunpack.c.l.b16 %v3744
        %v4265 = vunpack.c.h.b16 %v3744
        %v4266 = vunpack.c.l.b16 %v3745
        %v4267 = vunpack.c.h.b16 %v3745
        %v4268 = vunpack.c.l.b16 %v3746
        %v4269 = vunpack.c.h.b16 %v3746
        %v4270 = vunpack.c.l.b16 %v3747
        %v4271 = vunpack.c.h.b16 %v3747
        %v4272 = vunpack.c.l.b16 %v3748
        %v4273 = vunpack.c.l.b16 %v3749
        %v4274 = vunpack.c.h.b16 %v3749
        %v4275 = vunpack.c.l.b16 %v3750
        %v4276 = vunpack.c.h.b16 %v3750
        %v4277 = vunpack.c.l.b16 %v3751
        %v4278 = vunpack.c.h.b16 %v3751
        %v4279 = vunpack.c.l.b16 %v3752
        %v4280 = vunpack.c.h.b16 %v3752
        %v4281 = vunpack.c.l.b16 %v3753
        %v4282 = vunpack.c.l.b16 %v3754
        %v4283 = vunpack.c.h.b16 %v3754
        %v4284 = vunpack.c.l.b16 %v3755
        %v4285 = vunpack.c.h.b16 %v3755
        %v4286 = vunpack.c.l.b16 %v3756
        %v4287 = vunpack.c.h.b16 %v3756
        %v4288 = vunpack.c.l.b16 %v3757
        %v4289 = vunpack.c.h.b16 %v3757
        %v4290 = vunpack.c.l.b16 %v3758
        %v4291 = vunpack.c.l.b16 %v3759
        %v4292 = vunpack.c.h.b16 %v3759
        %v4293 = vunpack.c.l.b16 %v3760
        %v4294 = vunpack.c.h.b16 %v3760
        %v4295 = vunpack.c.l.b16 %v3761
        %v4296 = vunpack.c.h.b16 %v3761
        %v4297 = vunpack.c.l.b16 %v3762
        %v4298 = vunpack.c.h.b16 %v3762
        %v4299 = vunpack.c.l.b16 %v3763
        %v4300 = vunpack.c.l.b16 %v3764
        %v4301 = vunpack.c.h.b16 %v3764
        %v4302 = vunpack.c.l.b16 %v3765
        %v4303 = vunpack.c.h.b16 %v3765
        %v4304 = vunpack.c.l.b16 %v3766
        %v4305 = vunpack.c.h.b16 %v3766
        %v4306 = vunpack.c.l.b16 %v3767
        %v4307 = vunpack.c.h.b16 %v3767
        %v4308 = vunpack.c.l.b16 %v3768
        %v4309 = vunpack.c.l.b16 %v3769
        %v4310 = vunpack.c.h.b16 %v3769
        %v4311 = vunpack.c.l.b16 %v3770
        %v4312 = vunpack.c.h.b16 %v3770
        %v4313 = vunpack.c.l.b16 %v3771
        %v4314 = vunpack.c.h.b16 %v3771
        %v4315 = vunpack.c.l.b16 %v3772
        %v4316 = vunpack.c.h.b16 %v3772
        %v4317 = vunpack.c.l.b16 %v3773
        %v4318 = vunpack.c.l.b16 %v3774
        %v4319 = vunpack.c.h.b16 %v3774
        %v4320 = vunpack.c.l.b16 %v3775
        %v4321 = vunpack.c.h.b16 %v3775
        %v4322 = vunpack.c.l.b16 %v3776
        %v4323 = vunpack.c.h.b16 %v3776
        %v4324 = vunpack.c.l.b16 %v3777
        %v4325 = vunpack.c.h.b16 %v3777
        %v4326 = vunpack.c.l.b16 %v3778
        %v4327 = vunpack.c.l.b16 %v3779
        %v4328 = vunpack.c.h.b16 %v3779
        %v4329 = vunpack.c.l.b16 %v3780
        %v4330 = vunpack.c.h.b16 %v3780
        %v4331 = vunpack.c.l.b16 %v3781
        %v4332 = vunpack.c.h.b16 %v3781
        %v4333 = vunpack.c.l.b16 %v3782
        %v4334 = vunpack.c.h.b16 %v3782
        %v4335 = vunpack.c.l.b16 %v3783
        %v4336 = vunpack.c.l.b16 %v3784
        %v4337 = vunpack.c.h.b16 %v3784
        %v4338 = vunpack.c.l.b16 %v3785
        %v4339 = vunpack.c.h.b16 %v3785
        %v4340 = vunpack.c.l.b16 %v3786
        %v4341 = vunpack.c.h.b16 %v3786
        %v4342 = vunpack.c.l.b16 %v3787
        %v4343 = vunpack.c.h.b16 %v3787
        %v4344 = vunpack.c.l.b16 %v3788
        %v4345 = vunpack.c.l.b16 %v3789
        %v4346 = vunpack.c.h.b16 %v3789
        %v4347 = vunpack.c.l.b16 %v3790
        %v4348 = vunpack.c.h.b16 %v3790
        %v4349 = vunpack.c.l.b16 %v3791
        %v4350 = vunpack.c.h.b16 %v3791
        %v4351 = vunpack.c.l.b16 %v3792
        %v4352 = vunpack.c.h.b16 %v3792
        %v4353 = vunpack.c.l.b16 %v3793
        %v4354 = vunpack.c.l.b16 %v3794
        %v4355 = vunpack.c.h.b16 %v3794
        %v4356 = vunpack.c.l.b16 %v3795
        %v4357 = vunpack.c.h.b16 %v3795
        %v4358 = vunpack.c.l.b16 %v3796
        %v4359 = vunpack.c.h.b16 %v3796
        %v4360 = vunpack.c.l.b16 %v3797
        %v4361 = vunpack.c.h.b16 %v3797
        %v4362 = vunpack.c.l.b16 %v3798
        %v4363 = vunpack.c.l.b16 %v3799
        %v4364 = vunpack.c.h.b16 %v3799
        %v4365 = vunpack.c.l.b16 %v3800
        %v4366 = vunpack.c.h.b16 %v3800
        %v4367 = vunpack.c.l.b16 %v3801
        %v4368 = vunpack.c.h.b16 %v3801
        %v4369 = vunpack.c.l.b16 %v3802
        %v4370 = vunpack.c.h.b16 %v3802
        %v4371 = vunpack.c.l.b16 %v3803
        %v4372 = vunpack.c.l.b16 %v3804
        %v4373 = vunpack.c.h.b16 %v3804
        %v4374 = vunpack.c.l.b16 %v3805
        %v4375 = vunpack.c.h.b16 %v3805
        %v4376 = vunpack.c.l.b16 %v3806
        %v4377 = vunpack.c.h.b16 %v3806
        %v4378 = vunpack.c.l.b16 %v3807
        %v4379 = vunpack.c.h.b16 %v3807
        %v4380 = vunpack.c.l.b16 %v3808
        %v4381 = vunpack.c.l.b16 %v3809
        %v4382 = vunpack.c.h.b16 %v3809
        %v4383 = vunpack.c.l.b16 %v3810
        %v4384 = vunpack.c.h.b16 %v3810
        %v4385 = vunpack.c.l.b16 %v3811
        %v4386 = vunpack.c.h.b16 %v3811
        %v4387 = vunpack.c.l.b16 %v3812
        %v4388 = vunpack.c.h.b16 %v3812
        %v4389 = vunpack.c.l.b16 %v3813
        %v4390 = vunpack.c.l.b16 %v3814
        %v4391 = vunpack.c.h.b16 %v3814
        %v4392 = vunpack.c.l.b16 %v3815
        %v4393 = vunpack.c.h.b16 %v3815
        %v4394 = vunpack.c.l.b16 %v3816
        %v4395 = vunpack.c.h.b16 %v3816
        %v4396 = vunpack.c.l.b16 %v3817
        %v4397 = vunpack.c.h.b16 %v3817
        %v4398 = vunpack.c.l.b16 %v3818
        %v4399 = vunpack.c.l.b16 %v3819
        %v4400 = vunpack.c.h.b16 %v3819
        %v4401 = vunpack.c.l.b16 %v3820
        %v4402 = vunpack.c.h.b16 %v3820
        %v4403 = vunpack.c.l.b16 %v3821
        %v4404 = vunpack.c.h.b16 %v3821
        %v4405 = vunpack.c.l.b16 %v3822
        %v4406 = vunpack.c.h.b16 %v3822
        %v4407 = vunpack.c.l.b16 %v3823
        %v4408 = vunpack.c.l.b16 %v3824
        %v4409 = vunpack.c.h.b16 %v3824
        %v4410 = vunpack.c.l.b16 %v3825
        %v4411 = vunpack.c.h.b16 %v3825
        %v4412 = vunpack.c.l.b16 %v3826
        %v4413 = vunpack.c.h.b16 %v3826
        %v4414 = vunpack.c.l.b16 %v3827
        %v4415 = vunpack.c.h.b16 %v3827
        %v4416 = vunpack.c.l.b16 %v3828
        %v4417 = vunpack.c.l.b16 %v3829
        %v4418 = vunpack.c.h.b16 %v3829
        %v4419 = vunpack.c.l.b16 %v3830
        %v4420 = vunpack.c.h.b16 %v3830
        %v4421 = vunpack.c.l.b16 %v3831
        %v4422 = vunpack.c.h.b16 %v3831
        %v4423 = vunpack.c.l.b16 %v3832
        %v4424 = vunpack.c.h.b16 %v3832
        %v4425 = vunpack.c.l.b16 %v3833
        %v4426 = vunpack.c.l.b16 %v3834
        %v4427 = vunpack.c.h.b16 %v3834
        %v4428 = vunpack.c.l.b16 %v3835
        %v4429 = vunpack.c.h.b16 %v3835
        %v4430 = vunpack.c.l.b16 %v3836
        %v4431 = vunpack.c.h.b16 %v3836
        %v4432 = vunpack.c.l.b16 %v3837
        %v4433 = vunpack.c.h.b16 %v3837
        %v4434 = vunpack.c.l.b16 %v3838
        %v4435 = vpack.c.b16 %v4156, %v4147
        %v4436 = vpack.c.b16 %v4157, %v4148
        %v4437 = vpack.c.b16 %v4158, %v4149
        %v4438 = vpack.c.b16 %v4159, %v4150
        %v4439 = vpack.c.b16 %v4160, %v4151
        %v4440 = vpack.c.b16 %v4161, %v4152
        %v4441 = vpack.c.b16 %v4162, %v4153
        %v4442 = vpack.c.b16 %v4163, %v4154
        %v4443 = vpack.c.b16 %v4164, %v4155
        %v4444 = vpack.c.b16 %v4174, %v4165
        %v4445 = vpack.c.b16 %v4175, %v4166
        %v4446 = vpack.c.b16 %v4176, %v4167
        %v4447 = vpack.c.b16 %v4177, %v4168
        %v4448 = vpack.c.b16 %v4178, %v4169
        %v4449 = vpack.c.b16 %v4179, %v4170
        %v4450 = vpack.c.b16 %v4180, %v4171
        %v4451 = vpack.c.b16 %v4181, %v4172
        %v4452 = vpack.c.b16 %v4182, %v4173
        %v4453 = vpack.c.b16 %v4192, %v4183
        %v4454 = vpack.c.b16 %v4193, %v4184
        %v4455 = vpack.c.b16 %v4194, %v4185
        %v4456 = vpack.c.b16 %v4195, %v4186
        %v4457 = vpack.c.b16 %v4196, %v4187
        %v4458 = vpack.c.b16 %v4197, %v4188
        %v4459 = vpack.c.b16 %v4198, %v4189
        %v4460 = vpack.c.b16 %v4199, %v4190
        %v4461 = vpack.c.b16 %v4200, %v4191
        %v4462 = vpack.c.b16 %v4210, %v4201
        %v4463 = vpack.c.b16 %v4211, %v4202
        %v4464 = vpack.c.b16 %v4212, %v4203
        %v4465 = vpack.c.b16 %v4213, %v4204
        %v4466 = vpack.c.b16 %v4214, %v4205
        %v4467 = vpack.c.b16 %v4215, %v4206
        %v4468 = vpack.c.b16 %v4216, %v4207
        %v4469 = vpack.c.b16 %v4217, %v4208
        %v4470 = vpack.c.b16 %v4218, %v4209
        %v4471 = vpack.c.b16 %v4228, %v4219
        %v4472 = vpack.c.b16 %v4229, %v4220
        %v4473 = vpack.c.b16 %v4230, %v4221
        %v4474 = vpack.c.b16 %v4231, %v4222
        %v4475 = vpack.c.b16 %v4232, %v4223
        %v4476 = vpack.c.b16 %v4233, %v4224
        %v4477 = vpack.c.b16 %v4234, %v4225
        %v4478 = vpack.c.b16 %v4235, %v4226
        %v4479 = vpack.c.b16 %v4236, %v4227
        %v4480 = vpack.c.b16 %v4246, %v4237
        %v4481 = vpack.c.b16 %v4247, %v4238
        %v4482 = vpack.c.b16 %v4248, %v4239
        %v4483 = vpack.c.b16 %v4249, %v4240
        %v4484 = vpack.c.b16 %v4250, %v4241
        %v4485 = vpack.c.b16 %v4251, %v4242
        %v4486 = vpack.c.b16 %v4252, %v4243
        %v4487 = vpack.c.b16 %v4253, %v4244
        %v4488 = vpack.c.b16 %v4254, %v4245
        %v4489 = vpack.c.b16 %v4264, %v4255
        %v4490 = vpack.c.b16 %v4265, %v4256
        %v4491 = vpack.c.b16 %v4266, %v4257
        %v4492 = vpack.c.b16 %v4267, %v4258
        %v4493 = vpack.c.b16 %v4268, %v4259
        %v4494 = vpack.c.b16 %v4269, %v4260
        %v4495 = vpack.c.b16 %v4270, %v4261
        %v4496 = vpack.c.b16 %v4271, %v4262
        %v4497 = vpack.c.b16 %v4272, %v4263
        %v4498 = vpack.c.b16 %v4282, %v4273
        %v4499 = vpack.c.b16 %v4283, %v4274
        %v4500 = vpack.c.b16 %v4284, %v4275
        %v4501 = vpack.c.b16 %v4285, %v4276
        %v4502 = vpack.c.b16 %v4286, %v4277
        %v4503 = vpack.c.b16 %v4287, %v4278
        %v4504 = vpack.c.b16 %v4288, %v4279
        %v4505 = vpack.c.b16 %v4289, %v4280
        %v4506 = vpack.c.b16 %v4290, %v4281
        %v4507 = vpack.c.b16 %v4300, %v4291
        %v4508 = vpack.c.b16 %v4301, %v4292
        %v4509 = vpack.c.b16 %v4302, %v4293
        %v4510 = vpack.c.b16 %v4303, %v4294
        %v4511 = vpack.c.b16 %v4304, %v4295
        %v4512 = vpack.c.b16 %v4305, %v4296
        %v4513 = vpack.c.b16 %v4306, %v4297
        %v4514 = vpack.c.b16 %v4307, %v4298
        %v4515 = vpack.c.b16 %v4308, %v4299
        %v4516 = vpack.c.b16 %v4318, %v4309
        %v4517 = vpack.c.b16 %v4319, %v4310
        %v4518 = vpack.c.b16 %v4320, %v4311
        %v4519 = vpack.c.b16 %v4321, %v4312
        %v4520 = vpack.c.b16 %v4322, %v4313
        %v4521 = vpack.c.b16 %v4323, %v4314
        %v4522 = vpack.c.b16 %v4324, %v4315
        %v4523 = vpack.c.b16 %v4325, %v4316
        %v4524 = vpack.c.b16 %v4326, %v4317
        %v4525 = vpack.c.b16 %v4336, %v4327
        %v4526 = vpack.c.b16 %v4337, %v4328
        %v4527 = vpack.c.b16 %v4338, %v4329
        %v4528 = vpack.c.b16 %v4339, %v4330
        %v4529 = vpack.c.b16 %v4340, %v4331
        %v4530 = vpack.c.b16 %v4341, %v4332
        %v4531 = vpack.c.b16 %v4342, %v4333
        %v4532 = vpack.c.b16 %v4343, %v4334
        %v4533 = vpack.c.b16 %v4344, %v4335
        %v4534 = vpack.c.b16 %v4354, %v4345
        %v4535 = vpack.c.b16 %v4355, %v4346
        %v4536 = vpack.c.b16 %v4356, %v4347
        %v4537 = vpack.c.b16 %v4357, %v4348
        %v4538 = vpack.c.b16 %v4358, %v4349
        %v4539 = vpack.c.b16 %v4359, %v4350
        %v4540 = vpack.c.b16 %v4360, %v4351
        %v4541 = vpack.c.b16 %v4361, %v4352
        %v4542 = vpack.c.b16 %v4362, %v4353
        %v4543 = vpack.c.b16 %v4372, %v4363
        %v4544 = vpack.c.b16 %v4373, %v4364
        %v4545 = vpack.c.b16 %v4374, %v4365
        %v4546 = vpack.c.b16 %v4375, %v4366
        %v4547 = vpack.c.b16 %v4376, %v4367
        %v4548 = vpack.c.b16 %v4377, %v4368
        %v4549 = vpack.c.b16 %v4378, %v4369
        %v4550 = vpack.c.b16 %v4379, %v4370
        %v4551 = vpack.c.b16 %v4380, %v4371
        %v4552 = vpack.c.b16 %v4390, %v4381
        %v4553 = vpack.c.b16 %v4391, %v4382
        %v4554 = vpack.c.b16 %v4392, %v4383
        %v4555 = vpack.c.b16 %v4393, %v4384
        %v4556 = vpack.c.b16 %v4394, %v4385
        %v4557 = vpack.c.b16 %v4395, %v4386
        %v4558 = vpack.c.b16 %v4396, %v4387
        %v4559 = vpack.c.b16 %v4397, %v4388
        %v4560 = vpack.c.b16 %v4398, %v4389
        %v4561 = vpack.c.b16 %v4408, %v4399
        %v4562 = vpack.c.b16 %v4409, %v4400
        %v4563 = vpack.c.b16 %v4410, %v4401
        %v4564 = vpack.c.b16 %v4411, %v4402
        %v4565 = vpack.c.b16 %v4412, %v4403
        %v4566 = vpack.c.b16 %v4413, %v4404
        %v4567 = vpack.c.b16 %v4414, %v4405
        %v4568 = vpack.c.b16 %v4415, %v4406
        %v4569 = vpack.c.b16 %v4416, %v4407
        %v4570 = vpack.c.b16 %v4426, %v4417
        %v4571 = vpack.c.b16 %v4427, %v4418
        %v4572 = vpack.c.b16 %v4428, %v4419
        %v4573 = vpack.c.b16 %v4429, %v4420
        %v4574 = vpack.c.b16 %v4430, %v4421
        %v4575 = vpack.c.b16 %v4431, %v4422
        %v4576 = vpack.c.b16 %v4432, %v4423
        %v4577 = vpack.c.b16 %v4433, %v4424
        %v4578 = vpack.c.b16 %v4434, %v4425
        %v4867 = vunpack.c.l.b16 %v3839
        %v4868 = vunpack.c.l.b16 %v3840
        %v4869 = vunpack.c.l.b16 %v3841
        %v4870 = vunpack.c.l.b16 %v3842
        %v4871 = vunpack.c.l.b16 %v3843
        %v4872 = vunpack.c.l.b16 %v3844
        %v4873 = vunpack.c.l.b16 %v3845
        %v4874 = vunpack.c.l.b16 %v3846
        %v4875 = vunpack.c.l.b16 %v3847
        %v4876 = vunpack.c.l.b16 %v3848
        %v4877 = vunpack.c.l.b16 %v3849
        %v4878 = vunpack.c.l.b16 %v3850
        %v4879 = vunpack.c.l.b16 %v3851
        %v4880 = vunpack.c.l.b16 %v3852
        %v4881 = vunpack.c.l.b16 %v3853
        %v4882 = vunpack.c.l.b16 %v3854
        %v4883 = vunpack.c.l.b16 %v3855
        %v4884 = vunpack.c.l.b16 %v3856
        %v4885 = vunpack.c.l.b16 %v3857
        %v4886 = vunpack.c.l.b16 %v3858
        %v4887 = vunpack.c.l.b16 %v3859
        %v4888 = vunpack.c.l.b16 %v3860
        %v4889 = vunpack.c.l.b16 %v3861
        %v4890 = vunpack.c.l.b16 %v3862
        %v4891 = vunpack.c.l.b16 %v3863
        %v4892 = vunpack.c.l.b16 %v3864
        %v4893 = vunpack.c.l.b16 %v3865
        %v4894 = vunpack.c.l.b16 %v3866
        %v4895 = vunpack.c.l.b16 %v3867
        %v4896 = vunpack.c.l.b16 %v3868
        %v4897 = vunpack.c.l.b16 %v3869
        %v4898 = vunpack.c.l.b16 %v3870
        %v4899 = vunpack.c.l.b16 %v3871
        %v4900 = vunpack.c.l.b16 %v3872
        %v4901 = vunpack.c.l.b16 %v3873
        %v4902 = vunpack.c.l.b16 %v3874
        %v4903 = vunpack.c.l.b16 %v3875
        %v4904 = vunpack.c.l.b16 %v3876
        %v4905 = vunpack.c.l.b16 %v3877
        %v4906 = vunpack.c.l.b16 %v3878
        %v4907 = vunpack.c.l.b16 %v3879
        %v4908 = vunpack.c.l.b16 %v3880
        %v4909 = vunpack.c.l.b16 %v3881
        %v4910 = vunpack.c.l.b16 %v3882
        %v4911 = vunpack.c.l.b16 %v3883
        %v4912 = vunpack.c.l.b16 %v3884
        %v4913 = vunpack.c.l.b16 %v3885
        %v4914 = vunpack.c.l.b16 %v3886
        %v4915 = vunpack.c.l.b16 %v3887
        %v4916 = vunpack.c.l.b16 %v3888
        %v4917 = vunpack.c.l.b16 %v3889
        %v4918 = vunpack.c.l.b16 %v3890
        %v4919 = vunpack.c.l.b16 %v3891
        %v4920 = vunpack.c.l.b16 %v3892
        %v4921 = vunpack.c.l.b16 %v3893
        %v4922 = vunpack.c.l.b16 %v3894
        %v4923 = vunpack.c.l.b16 %v3895
        %v4924 = vunpack.c.l.b16 %v3896
        %v4925 = vunpack.c.l.b16 %v3897
        %v4926 = vunpack.c.l.b16 %v3898
        %v4927 = vunpack.c.l.b16 %v3899
        %v4928 = vunpack.c.l.b16 %v3900
        %v4929 = vunpack.c.l.b16 %v3901
        %v4930 = vunpack.c.l.b16 %v3902
        %v4931 = vunpack.c.l.b16 %v3903
        %v4932 = vunpack.c.l.b16 %v3904
        %v4933 = vunpack.c.l.b16 %v3905
        %v4934 = vunpack.c.l.b16 %v3906
        %v4935 = vunpack.c.l.b16 %v3907
        %v4936 = vunpack.c.l.b16 %v3908
        %v4937 = vunpack.c.l.b16 %v3909
        %v4938 = vunpack.c.l.b16 %v3910
        %v4939 = vunpack.c.l.b16 %v3911
        %v4940 = vunpack.c.l.b16 %v3912
        %v4941 = vunpack.c.l.b16 %v3913
        %v4942 = vunpack.c.l.b16 %v3914
        %v4943 = vunpack.c.l.b16 %v3915
        %v4944 = vunpack.c.l.b16 %v3916
        %v4945 = vunpack.c.l.b16 %v3917
        %v4946 = vunpack.c.l.b16 %v3918
        %v4947 = vunpack.c.l.b16 %v3919
        %v4948 = vunpack.c.l.b16 %v3920
        %v4949 = vunpack.c.l.b16 %v3921
        %v4950 = vunpack.c.l.b16 %v3922
        %v4951 = vunpack.c.l.b16 %v3923
        %v4952 = vunpack.c.l.b16 %v3924
        %v4953 = vunpack.c.l.b16 %v3925
        %v4954 = vunpack.c.l.b16 %v3926
        %v4955 = vunpack.c.l.b16 %v3927
        %v4956 = vunpack.c.l.b16 %v3928
        %v4957 = vunpack.c.l.b16 %v3929
        %v4958 = vunpack.c.l.b16 %v3930
        %v4959 = vunpack.c.l.b16 %v3931
        %v4960 = vunpack.c.l.b16 %v3932
        %v4961 = vunpack.c.l.b16 %v3933
        %v4962 = vunpack.c.l.b16 %v3934
        %v4963 = vunpack.c.l.b16 %v3935
        %v4964 = vunpack.c.l.b16 %v3936
        %v4965 = vunpack.c.l.b16 %v3937
        %v4966 = vunpack.c.l.b16 %v3938
        %v4967 = vunpack.c.l.b16 %v3939
        %v4968 = vunpack.c.l.b16 %v3940
        %v4969 = vunpack.c.l.b16 %v3941
        %v4970 = vunpack.c.l.b16 %v3942
        %v4971 = vunpack.c.l.b16 %v3943
        %v4972 = vunpack.c.l.b16 %v3944
        %v4973 = vunpack.c.l.b16 %v3945
        %v4974 = vunpack.c.l.b16 %v3946
        %v4975 = vunpack.c.l.b16 %v3947
        %v4976 = vunpack.c.l.b16 %v3948
        %v4977 = vunpack.c.l.b16 %v3949
        %v4978 = vunpack.c.l.b16 %v3950
        %v4979 = vunpack.c.l.b16 %v3951
        %v4980 = vunpack.c.l.b16 %v3952
        %v4981 = vunpack.c.l.b16 %v3953
        %v4982 = vunpack.c.l.b16 %v3954
        %v4983 = vunpack.c.l.b16 %v3955
        %v4984 = vunpack.c.l.b16 %v3956
        %v4985 = vunpack.c.l.b16 %v3957
        %v4986 = vunpack.c.l.b16 %v3958
        %v4987 = vunpack.c.l.b16 %v3959
        %v4988 = vunpack.c.l.b16 %v3960
        %v4989 = vunpack.c.l.b16 %v3961
        %v4990 = vunpack.c.l.b16 %v3962
        %v4991 = vunpack.c.l.b16 %v3963
        %v4992 = vunpack.c.l.b16 %v3964
        %v4993 = vunpack.c.l.b16 %v3965
        %v4994 = vunpack.c.l.b16 %v3966
        %v4995 = vunpack.c.l.b16 %v3967
        %v4996 = vunpack.c.l.b16 %v3968
        %v4997 = vunpack.c.l.b16 %v3969
        %v4998 = vunpack.c.l.b16 %v3970
        %v4999 = vunpack.c.l.b16 %v3971
        %v5000 = vunpack.c.l.b16 %v3972
        %v5001 = vunpack.c.l.b16 %v3973
        %v5002 = vunpack.c.l.b16 %v3974
        %v5003 = vunpack.c.l.b16 %v3975
        %v5004 = vunpack.c.l.b16 %v3976
        %v5005 = vunpack.c.l.b16 %v3977
        %v5006 = vunpack.c.l.b16 %v3978
        %v5007 = vunpack.c.l.b16 %v3979
        %v5008 = vunpack.c.l.b16 %v3980
        %v5009 = vunpack.c.l.b16 %v3981
        %v5010 = vunpack.c.l.b16 %v3982
        %v5011 = vpack.c.b16 %v4868, %v4867
        %v5012 = vpack.c.b16 %v4870, %v4869
        %v5013 = vpack.c.b16 %v4872, %v4871
        %v5014 = vpack.c.b16 %v4874, %v4873
        %v5015 = vpack.c.b16 %v4876, %v4875
        %v5016 = vpack.c.b16 %v4878, %v4877
        %v5017 = vpack.c.b16 %v4880, %v4879
        %v5018 = vpack.c.b16 %v4882, %v4881
        %v5019 = vpack.c.b16 %v4884, %v4883
        %v5020 = vpack.c.b16 %v4886, %v4885
        %v5021 = vpack.c.b16 %v4888, %v4887
        %v5022 = vpack.c.b16 %v4890, %v4889
        %v5023 = vpack.c.b16 %v4892, %v4891
        %v5024 = vpack.c.b16 %v4894, %v4893
        %v5025 = vpack.c.b16 %v4896, %v4895
        %v5026 = vpack.c.b16 %v4898, %v4897
        %v5027 = vpack.c.b16 %v4900, %v4899
        %v5028 = vpack.c.b16 %v4902, %v4901
        %v5029 = vpack.c.b16 %v4904, %v4903
        %v5030 = vpack.c.b16 %v4906, %v4905
        %v5031 = vpack.c.b16 %v4908, %v4907
        %v5032 = vpack.c.b16 %v4910, %v4909
        %v5033 = vpack.c.b16 %v4912, %v4911
        %v5034 = vpack.c.b16 %v4914, %v4913
        %v5035 = vpack.c.b16 %v4916, %v4915
        %v5036 = vpack.c.b16 %v4918, %v4917
        %v5037 = vpack.c.b16 %v4920, %v4919
        %v5038 = vpack.c.b16 %v4922, %v4921
        %v5039 = vpack.c.b16 %v4924, %v4923
        %v5040 = vpack.c.b16 %v4926, %v4925
        %v5041 = vpack.c.b16 %v4928, %v4927
        %v5042 = vpack.c.b16 %v4930, %v4929
        %v5043 = vpack.c.b16 %v4932, %v4931
        %v5044 = vpack.c.b16 %v4934, %v4933
        %v5045 = vpack.c.b16 %v4936, %v4935
        %v5046 = vpack.c.b16 %v4938, %v4937
        %v5047 = vpack.c.b16 %v4940, %v4939
        %v5048 = vpack.c.b16 %v4942, %v4941
        %v5049 = vpack.c.b16 %v4944, %v4943
        %v5050 = vpack.c.b16 %v4946, %v4945
        %v5051 = vpack.c.b16 %v4948, %v4947
        %v5052 = vpack.c.b16 %v4950, %v4949
        %v5053 = vpack.c.b16 %v4952, %v4951
        %v5054 = vpack.c.b16 %v4954, %v4953
        %v5055 = vpack.c.b16 %v4956, %v4955
        %v5056 = vpack.c.b16 %v4958, %v4957
        %v5057 = vpack.c.b16 %v4960, %v4959
        %v5058 = vpack.c.b16 %v4962, %v4961
        %v5059 = vpack.c.b16 %v4964, %v4963
        %v5060 = vpack.c.b16 %v4966, %v4965
        %v5061 = vpack.c.b16 %v4968, %v4967
        %v5062 = vpack.c.b16 %v4970, %v4969
        %v5063 = vpack.c.b16 %v4972, %v4971
        %v5064 = vpack.c.b16 %v4974, %v4973
        %v5065 = vpack.c.b16 %v4976, %v4975
        %v5066 = vpack.c.b16 %v4978, %v4977
        %v5067 = vpack.c.b16 %v4980, %v4979
        %v5068 = vpack.c.b16 %v4982, %v4981
        %v5069 = vpack.c.b16 %v4984, %v4983
        %v5070 = vpack.c.b16 %v4986, %v4985
        %v5071 = vpack.c.b16 %v4988, %v4987
        %v5072 = vpack.c.b16 %v4990, %v4989
        %v5073 = vpack.c.b16 %v4992, %v4991
        %v5074 = vpack.c.b16 %v4994, %v4993
        %v5075 = vpack.c.b16 %v4996, %v4995
        %v5076 = vpack.c.b16 %v4998, %v4997
        %v5077 = vpack.c.b16 %v5000, %v4999
        %v5078 = vpack.c.b16 %v5002, %v5001
        %v5079 = vpack.c.b16 %v5004, %v5003
        %v5080 = vpack.c.b16 %v5006, %v5005
        %v5081 = vpack.c.b16 %v5008, %v5007
        %v5082 = vpack.c.b16 %v5010, %v5009
        %5155 = vmatpush.bf16.msra.mxu0 %v5018
        %5156 = vmatpush.bf16.msra.mxu0 %v5017
        %5157 = vmatpush.bf16.msra.mxu0 %v5016
        %5158 = vmatpush.bf16.msra.mxu0 %v5015
        %5159 = vmatpush.bf16.msra.mxu0 %v5014
        %5160 = vmatpush.bf16.msra.mxu0 %v5013
        %5161 = vmatpush.bf16.msra.mxu0 %v5012
        %5162 = vmatpush.bf16.msra.mxu0 %v5011
        %5163 = vmatmul.bf16.gmra.mxu0 %v4435
        %v5164 = vpop.f32.mrf.mxu0
        %v5165 = vadd.f32 %v3985, %v5164
        %v5166 = vpop.f32.mrf.mxu0
        %v5167 = vadd.f32 %v3985, %v5166
        %5168 = vmatmul.bf16.gmra.mxu0 %v4444
        %v5169 = vpop.f32.mrf.mxu0
        %v5170 = vadd.f32 %v3985, %v5169
        %v5171 = vpop.f32.mrf.mxu0
        %v5172 = vadd.f32 %v3985, %v5171
        %5173 = vmatmul.bf16.gmra.mxu0 %v4453
        %v5174 = vpop.f32.mrf.mxu0
        %v5175 = vadd.f32 %v3985, %v5174
        %v5176 = vpop.f32.mrf.mxu0
        %v5177 = vadd.f32 %v3985, %v5176
        %5178 = vmatmul.bf16.gmra.mxu0 %v4462
        %v5179 = vpop.f32.mrf.mxu0
        %v5180 = vadd.f32 %v3985, %v5179
        %v5181 = vpop.f32.mrf.mxu0
        %v5182 = vadd.f32 %v3985, %v5181
        %5183 = vmatmul.bf16.gmra.mxu0 %v4471
        %v5184 = vpop.f32.mrf.mxu0
        %v5185 = vadd.f32 %v3985, %v5184
        %v5186 = vpop.f32.mrf.mxu0
        %v5187 = vadd.f32 %v3985, %v5186
        %5188 = vmatmul.bf16.gmra.mxu0 %v4480
        %v5189 = vpop.f32.mrf.mxu0
        %v5190 = vadd.f32 %v3985, %v5189
        %v5191 = vpop.f32.mrf.mxu0
        %v5192 = vadd.f32 %v3985, %v5191
        %5193 = vmatmul.bf16.gmra.mxu0 %v4489
        %v5194 = vpop.f32.mrf.mxu0
        %v5195 = vadd.f32 %v3985, %v5194
        %v5196 = vpop.f32.mrf.mxu0
        %v5197 = vadd.f32 %v3985, %v5196
        %5198 = vmatmul.bf16.gmra.mxu0 %v4498
        %v5199 = vpop.f32.mrf.mxu0
        %v5200 = vadd.f32 %v3985, %v5199
        %v5201 = vpop.f32.mrf.mxu0
        %v5202 = vadd.f32 %v3985, %v5201
        %5203 = vmatmul.bf16.gmra.mxu0 %v4507
        %v5204 = vpop.f32.mrf.mxu0
        %v5205 = vadd.f32 %v3985, %v5204
        %v5206 = vpop.f32.mrf.mxu0
        %v5207 = vadd.f32 %v3985, %v5206
        %5208 = vmatmul.bf16.gmra.mxu0 %v4516
        %v5209 = vpop.f32.mrf.mxu0
        %v5210 = vadd.f32 %v3985, %v5209
        %v5211 = vpop.f32.mrf.mxu0
        %v5212 = vadd.f32 %v3985, %v5211
        %5213 = vmatmul.bf16.gmra.mxu0 %v4525
        %v5214 = vpop.f32.mrf.mxu0
        %v5215 = vadd.f32 %v3985, %v5214
        %v5216 = vpop.f32.mrf.mxu0
        %v5217 = vadd.f32 %v3985, %v5216
        %5218 = vmatmul.bf16.gmra.mxu0 %v4534
        %v5219 = vpop.f32.mrf.mxu0
        %v5220 = vadd.f32 %v3985, %v5219
        %v5221 = vpop.f32.mrf.mxu0
        %v5222 = vadd.f32 %v3985, %v5221
        %5223 = vmatmul.bf16.gmra.mxu0 %v4543
        %v5224 = vpop.f32.mrf.mxu0
        %v5225 = vadd.f32 %v3985, %v5224
        %v5226 = vpop.f32.mrf.mxu0
        %v5227 = vadd.f32 %v3985, %v5226
        %5228 = vmatmul.bf16.gmra.mxu0 %v4552
        %v5229 = vpop.f32.mrf.mxu0
        %v5230 = vadd.f32 %v3985, %v5229
        %v5231 = vpop.f32.mrf.mxu0
        %v5232 = vadd.f32 %v3985, %v5231
        %5233 = vmatmul.bf16.gmra.mxu0 %v4561
        %v5234 = vpop.f32.mrf.mxu0
        %v5235 = vadd.f32 %v3985, %v5234
        %v5236 = vpop.f32.mrf.mxu0
        %v5237 = vadd.f32 %v3985, %v5236
        %5238 = vmatmul.bf16.gmra.mxu0 %v4570
        %v5239 = vpop.f32.mrf.mxu0
        %v5240 = vadd.f32 %v3985, %v5239
        %v5241 = vpop.f32.mrf.mxu0
        %v5242 = vadd.f32 %v3985, %v5241
        %5243 = vdwg.mxu0
        %5244 = vmatpush.bf16.msra.mxu0 %v5026
        %5245 = vmatpush.bf16.msra.mxu0 %v5025
        %5246 = vmatpush.bf16.msra.mxu0 %v5024
        %5247 = vmatpush.bf16.msra.mxu0 %v5023
        %5248 = vmatpush.bf16.msra.mxu0 %v5022
        %5249 = vmatpush.bf16.msra.mxu0 %v5021
        %5250 = vmatpush.bf16.msra.mxu0 %v5020
        %5251 = vmatpush.bf16.msra.mxu0 %v5019
        %5252 = vmatmul.bf16.gmra.mxu0 %v4436
        %v5253 = vpop.f32.mrf.mxu0
        %v5254 = vadd.f32 %v5165, %v5253
        %v5255 = vpop.f32.mrf.mxu0
        %v5256 = vadd.f32 %v5167, %v5255
        %5257 = vmatmul.bf16.gmra.mxu0 %v4445
        %v5258 = vpop.f32.mrf.mxu0
        %v5259 = vadd.f32 %v5170, %v5258
        %v5260 = vpop.f32.mrf.mxu0
        %v5261 = vadd.f32 %v5172, %v5260
        %5262 = vmatmul.bf16.gmra.mxu0 %v4454
        %v5263 = vpop.f32.mrf.mxu0
        %v5264 = vadd.f32 %v5175, %v5263
        %v5265 = vpop.f32.mrf.mxu0
        %v5266 = vadd.f32 %v5177, %v5265
        %5267 = vmatmul.bf16.gmra.mxu0 %v4463
        %v5268 = vpop.f32.mrf.mxu0
        %v5269 = vadd.f32 %v5180, %v5268
        %v5270 = vpop.f32.mrf.mxu0
        %v5271 = vadd.f32 %v5182, %v5270
        %5272 = vmatmul.bf16.gmra.mxu0 %v4472
        %v5273 = vpop.f32.mrf.mxu0
        %v5274 = vadd.f32 %v5185, %v5273
        %v5275 = vpop.f32.mrf.mxu0
        %v5276 = vadd.f32 %v5187, %v5275
        %5277 = vmatmul.bf16.gmra.mxu0 %v4481
        %v5278 = vpop.f32.mrf.mxu0
        %v5279 = vadd.f32 %v5190, %v5278
        %v5280 = vpop.f32.mrf.mxu0
        %v5281 = vadd.f32 %v5192, %v5280
        %5282 = vmatmul.bf16.gmra.mxu0 %v4490
        %v5283 = vpop.f32.mrf.mxu0
        %v5284 = vadd.f32 %v5195, %v5283
        %v5285 = vpop.f32.mrf.mxu0
        %v5286 = vadd.f32 %v5197, %v5285
        %5287 = vmatmul.bf16.gmra.mxu0 %v4499
        %v5288 = vpop.f32.mrf.mxu0
        %v5289 = vadd.f32 %v5200, %v5288
        %v5290 = vpop.f32.mrf.mxu0
        %v5291 = vadd.f32 %v5202, %v5290
        %5292 = vmatmul.bf16.gmra.mxu0 %v4508
        %v5293 = vpop.f32.mrf.mxu0
        %v5294 = vadd.f32 %v5205, %v5293
        %v5295 = vpop.f32.mrf.mxu0
        %v5296 = vadd.f32 %v5207, %v5295
        %5297 = vmatmul.bf16.gmra.mxu0 %v4517
        %v5298 = vpop.f32.mrf.mxu0
        %v5299 = vadd.f32 %v5210, %v5298
        %v5300 = vpop.f32.mrf.mxu0
        %v5301 = vadd.f32 %v5212, %v5300
        %5302 = vmatmul.bf16.gmra.mxu0 %v4526
        %v5303 = vpop.f32.mrf.mxu0
        %v5304 = vadd.f32 %v5215, %v5303
        %v5305 = vpop.f32.mrf.mxu0
        %v5306 = vadd.f32 %v5217, %v5305
        %5307 = vmatmul.bf16.gmra.mxu0 %v4535
        %v5308 = vpop.f32.mrf.mxu0
        %v5309 = vadd.f32 %v5220, %v5308
        %v5310 = vpop.f32.mrf.mxu0
        %v5311 = vadd.f32 %v5222, %v5310
        %5312 = vmatmul.bf16.gmra.mxu0 %v4544
        %v5313 = vpop.f32.mrf.mxu0
        %v5314 = vadd.f32 %v5225, %v5313
        %v5315 = vpop.f32.mrf.mxu0
        %v5316 = vadd.f32 %v5227, %v5315
        %5317 = vmatmul.bf16.gmra.mxu0 %v4553
        %v5318 = vpop.f32.mrf.mxu0
        %v5319 = vadd.f32 %v5230, %v5318
        %v5320 = vpop.f32.mrf.mxu0
        %v5321 = vadd.f32 %v5232, %v5320
        %5322 = vmatmul.bf16.gmra.mxu0 %v4562
        %v5323 = vpop.f32.mrf.mxu0
        %v5324 = vadd.f32 %v5235, %v5323
        %v5325 = vpop.f32.mrf.mxu0
        %v5326 = vadd.f32 %v5237, %v5325
        %5327 = vmatmul.bf16.gmra.mxu0 %v4571
        %v5328 = vpop.f32.mrf.mxu0
        %v5329 = vadd.f32 %v5240, %v5328
        %v5330 = vpop.f32.mrf.mxu0
        %v5331 = vadd.f32 %v5242, %v5330
        %5332 = vdwg.mxu0
        %5333 = vmatpush.bf16.msra.mxu0 %v5034
        %5334 = vmatpush.bf16.msra.mxu0 %v5033
        %5335 = vmatpush.bf16.msra.mxu0 %v5032
        %5336 = vmatpush.bf16.msra.mxu0 %v5031
        %5337 = vmatpush.bf16.msra.mxu0 %v5030
        %5338 = vmatpush.bf16.msra.mxu0 %v5029
        %5339 = vmatpush.bf16.msra.mxu0 %v5028
        %5340 = vmatpush.bf16.msra.mxu0 %v5027
        %5341 = vmatmul.bf16.gmra.mxu0 %v4437
        %v5342 = vpop.f32.mrf.mxu0
        %v5343 = vadd.f32 %v5254, %v5342
        %v5344 = vpop.f32.mrf.mxu0
        %v5345 = vadd.f32 %v5256, %v5344
        %5346 = vmatmul.bf16.gmra.mxu0 %v4446
        %v5347 = vpop.f32.mrf.mxu0
        %v5348 = vadd.f32 %v5259, %v5347
        %v5349 = vpop.f32.mrf.mxu0
        %v5350 = vadd.f32 %v5261, %v5349
        %5351 = vmatmul.bf16.gmra.mxu0 %v4455
        %v5352 = vpop.f32.mrf.mxu0
        %v5353 = vadd.f32 %v5264, %v5352
        %v5354 = vpop.f32.mrf.mxu0
        %v5355 = vadd.f32 %v5266, %v5354
        %5356 = vmatmul.bf16.gmra.mxu0 %v4464
        %v5357 = vpop.f32.mrf.mxu0
        %v5358 = vadd.f32 %v5269, %v5357
        %v5359 = vpop.f32.mrf.mxu0
        %v5360 = vadd.f32 %v5271, %v5359
        %5361 = vmatmul.bf16.gmra.mxu0 %v4473
        %v5362 = vpop.f32.mrf.mxu0
        %v5363 = vadd.f32 %v5274, %v5362
        %v5364 = vpop.f32.mrf.mxu0
        %v5365 = vadd.f32 %v5276, %v5364
        %5366 = vmatmul.bf16.gmra.mxu0 %v4482
        %v5367 = vpop.f32.mrf.mxu0
        %v5368 = vadd.f32 %v5279, %v5367
        %v5369 = vpop.f32.mrf.mxu0
        %v5370 = vadd.f32 %v5281, %v5369
        %5371 = vmatmul.bf16.gmra.mxu0 %v4491
        %v5372 = vpop.f32.mrf.mxu0
        %v5373 = vadd.f32 %v5284, %v5372
        %v5374 = vpop.f32.mrf.mxu0
        %v5375 = vadd.f32 %v5286, %v5374
        %5376 = vmatmul.bf16.gmra.mxu0 %v4500
        %v5377 = vpop.f32.mrf.mxu0
        %v5378 = vadd.f32 %v5289, %v5377
        %v5379 = vpop.f32.mrf.mxu0
        %v5380 = vadd.f32 %v5291, %v5379
        %5381 = vmatmul.bf16.gmra.mxu0 %v4509
        %v5382 = vpop.f32.mrf.mxu0
        %v5383 = vadd.f32 %v5294, %v5382
        %v5384 = vpop.f32.mrf.mxu0
        %v5385 = vadd.f32 %v5296, %v5384
        %5386 = vmatmul.bf16.gmra.mxu0 %v4518
        %v5387 = vpop.f32.mrf.mxu0
        %v5388 = vadd.f32 %v5299, %v5387
        %v5389 = vpop.f32.mrf.mxu0
        %v5390 = vadd.f32 %v5301, %v5389
        %5391 = vmatmul.bf16.gmra.mxu0 %v4527
        %v5392 = vpop.f32.mrf.mxu0
        %v5393 = vadd.f32 %v5304, %v5392
        %v5394 = vpop.f32.mrf.mxu0
        %v5395 = vadd.f32 %v5306, %v5394
        %5396 = vmatmul.bf16.gmra.mxu0 %v4536
        %v5397 = vpop.f32.mrf.mxu0
        %v5398 = vadd.f32 %v5309, %v5397
        %v5399 = vpop.f32.mrf.mxu0
        %v5400 = vadd.f32 %v5311, %v5399
        %5401 = vmatmul.bf16.gmra.mxu0 %v4545
        %v5402 = vpop.f32.mrf.mxu0
        %v5403 = vadd.f32 %v5314, %v5402
        %v5404 = vpop.f32.mrf.mxu0
        %v5405 = vadd.f32 %v5316, %v5404
        %5406 = vmatmul.bf16.gmra.mxu0 %v4554
        %v5407 = vpop.f32.mrf.mxu0
        %v5408 = vadd.f32 %v5319, %v5407
        %v5409 = vpop.f32.mrf.mxu0
        %v5410 = vadd.f32 %v5321, %v5409
        %5411 = vmatmul.bf16.gmra.mxu0 %v4563
        %v5412 = vpop.f32.mrf.mxu0
        %v5413 = vadd.f32 %v5324, %v5412
        %v5414 = vpop.f32.mrf.mxu0
        %v5415 = vadd.f32 %v5326, %v5414
        %5416 = vmatmul.bf16.gmra.mxu0 %v4572
        %v5417 = vpop.f32.mrf.mxu0
        %v5418 = vadd.f32 %v5329, %v5417
        %v5419 = vpop.f32.mrf.mxu0
        %v5420 = vadd.f32 %v5331, %v5419
        %5421 = vdwg.mxu0
        %5422 = vmatpush.bf16.msra.mxu0 %v5042
        %5423 = vmatpush.bf16.msra.mxu0 %v5041
        %5424 = vmatpush.bf16.msra.mxu0 %v5040
        %5425 = vmatpush.bf16.msra.mxu0 %v5039
        %5426 = vmatpush.bf16.msra.mxu0 %v5038
        %5427 = vmatpush.bf16.msra.mxu0 %v5037
        %5428 = vmatpush.bf16.msra.mxu0 %v5036
        %5429 = vmatpush.bf16.msra.mxu0 %v5035
        %5430 = vmatmul.bf16.gmra.mxu0 %v4438
        %v5431 = vpop.f32.mrf.mxu0
        %v5432 = vadd.f32 %v5343, %v5431
        %v5433 = vpop.f32.mrf.mxu0
        %v5434 = vadd.f32 %v5345, %v5433
        %5435 = vmatmul.bf16.gmra.mxu0 %v4447
        %v5436 = vpop.f32.mrf.mxu0
        %v5437 = vadd.f32 %v5348, %v5436
        %v5438 = vpop.f32.mrf.mxu0
        %v5439 = vadd.f32 %v5350, %v5438
        %5440 = vmatmul.bf16.gmra.mxu0 %v4456
        %v5441 = vpop.f32.mrf.mxu0
        %v5442 = vadd.f32 %v5353, %v5441
        %v5443 = vpop.f32.mrf.mxu0
        %v5444 = vadd.f32 %v5355, %v5443
        %5445 = vmatmul.bf16.gmra.mxu0 %v4465
        %v5446 = vpop.f32.mrf.mxu0
        %v5447 = vadd.f32 %v5358, %v5446
        %v5448 = vpop.f32.mrf.mxu0
        %v5449 = vadd.f32 %v5360, %v5448
        %5450 = vmatmul.bf16.gmra.mxu0 %v4474
        %v5451 = vpop.f32.mrf.mxu0
        %v5452 = vadd.f32 %v5363, %v5451
        %v5453 = vpop.f32.mrf.mxu0
        %v5454 = vadd.f32 %v5365, %v5453
        %5455 = vmatmul.bf16.gmra.mxu0 %v4483
        %v5456 = vpop.f32.mrf.mxu0
        %v5457 = vadd.f32 %v5368, %v5456
        %v5458 = vpop.f32.mrf.mxu0
        %v5459 = vadd.f32 %v5370, %v5458
        %5460 = vmatmul.bf16.gmra.mxu0 %v4492
        %v5461 = vpop.f32.mrf.mxu0
        %v5462 = vadd.f32 %v5373, %v5461
        %v5463 = vpop.f32.mrf.mxu0
        %v5464 = vadd.f32 %v5375, %v5463
        %5465 = vmatmul.bf16.gmra.mxu0 %v4501
        %v5466 = vpop.f32.mrf.mxu0
        %v5467 = vadd.f32 %v5378, %v5466
        %v5468 = vpop.f32.mrf.mxu0
        %v5469 = vadd.f32 %v5380, %v5468
        %5470 = vmatmul.bf16.gmra.mxu0 %v4510
        %v5471 = vpop.f32.mrf.mxu0
        %v5472 = vadd.f32 %v5383, %v5471
        %v5473 = vpop.f32.mrf.mxu0
        %v5474 = vadd.f32 %v5385, %v5473
        %5475 = vmatmul.bf16.gmra.mxu0 %v4519
        %v5476 = vpop.f32.mrf.mxu0
        %v5477 = vadd.f32 %v5388, %v5476
        %v5478 = vpop.f32.mrf.mxu0
        %v5479 = vadd.f32 %v5390, %v5478
        %5480 = vmatmul.bf16.gmra.mxu0 %v4528
        %v5481 = vpop.f32.mrf.mxu0
        %v5482 = vadd.f32 %v5393, %v5481
        %v5483 = vpop.f32.mrf.mxu0
        %v5484 = vadd.f32 %v5395, %v5483
        %5485 = vmatmul.bf16.gmra.mxu0 %v4537
        %v5486 = vpop.f32.mrf.mxu0
        %v5487 = vadd.f32 %v5398, %v5486
        %v5488 = vpop.f32.mrf.mxu0
        %v5489 = vadd.f32 %v5400, %v5488
        %5490 = vmatmul.bf16.gmra.mxu0 %v4546
        %v5491 = vpop.f32.mrf.mxu0
        %v5492 = vadd.f32 %v5403, %v5491
        %v5493 = vpop.f32.mrf.mxu0
        %v5494 = vadd.f32 %v5405, %v5493
        %5495 = vmatmul.bf16.gmra.mxu0 %v4555
        %v5496 = vpop.f32.mrf.mxu0
        %v5497 = vadd.f32 %v5408, %v5496
        %v5498 = vpop.f32.mrf.mxu0
        %v5499 = vadd.f32 %v5410, %v5498
        %5500 = vmatmul.bf16.gmra.mxu0 %v4564
        %v5501 = vpop.f32.mrf.mxu0
        %v5502 = vadd.f32 %v5413, %v5501
        %v5503 = vpop.f32.mrf.mxu0
        %v5504 = vadd.f32 %v5415, %v5503
        %5505 = vmatmul.bf16.gmra.mxu0 %v4573
        %v5506 = vpop.f32.mrf.mxu0
        %v5507 = vadd.f32 %v5418, %v5506
        %v5508 = vpop.f32.mrf.mxu0
        %v5509 = vadd.f32 %v5420, %v5508
        %5510 = vdwg.mxu0
        %5511 = vmatpush.bf16.msra.mxu0 %v5050
        %5512 = vmatpush.bf16.msra.mxu0 %v5049
        %5513 = vmatpush.bf16.msra.mxu0 %v5048
        %5514 = vmatpush.bf16.msra.mxu0 %v5047
        %5515 = vmatpush.bf16.msra.mxu0 %v5046
        %5516 = vmatpush.bf16.msra.mxu0 %v5045
        %5517 = vmatpush.bf16.msra.mxu0 %v5044
        %5518 = vmatpush.bf16.msra.mxu0 %v5043
        %5519 = vmatmul.bf16.gmra.mxu0 %v4439
        %v5520 = vpop.f32.mrf.mxu0
        %v5521 = vadd.f32 %v5432, %v5520
        %v5522 = vpop.f32.mrf.mxu0
        %v5523 = vadd.f32 %v5434, %v5522
        %5524 = vmatmul.bf16.gmra.mxu0 %v4448
        %v5525 = vpop.f32.mrf.mxu0
        %v5526 = vadd.f32 %v5437, %v5525
        %v5527 = vpop.f32.mrf.mxu0
        %v5528 = vadd.f32 %v5439, %v5527
        %5529 = vmatmul.bf16.gmra.mxu0 %v4457
        %v5530 = vpop.f32.mrf.mxu0
        %v5531 = vadd.f32 %v5442, %v5530
        %v5532 = vpop.f32.mrf.mxu0
        %v5533 = vadd.f32 %v5444, %v5532
        %5534 = vmatmul.bf16.gmra.mxu0 %v4466
        %v5535 = vpop.f32.mrf.mxu0
        %v5536 = vadd.f32 %v5447, %v5535
        %v5537 = vpop.f32.mrf.mxu0
        %v5538 = vadd.f32 %v5449, %v5537
        %5539 = vmatmul.bf16.gmra.mxu0 %v4475
        %v5540 = vpop.f32.mrf.mxu0
        %v5541 = vadd.f32 %v5452, %v5540
        %v5542 = vpop.f32.mrf.mxu0
        %v5543 = vadd.f32 %v5454, %v5542
        %5544 = vmatmul.bf16.gmra.mxu0 %v4484
        %v5545 = vpop.f32.mrf.mxu0
        %v5546 = vadd.f32 %v5457, %v5545
        %v5547 = vpop.f32.mrf.mxu0
        %v5548 = vadd.f32 %v5459, %v5547
        %5549 = vmatmul.bf16.gmra.mxu0 %v4493
        %v5550 = vpop.f32.mrf.mxu0
        %v5551 = vadd.f32 %v5462, %v5550
        %v5552 = vpop.f32.mrf.mxu0
        %v5553 = vadd.f32 %v5464, %v5552
        %5554 = vmatmul.bf16.gmra.mxu0 %v4502
        %v5555 = vpop.f32.mrf.mxu0
        %v5556 = vadd.f32 %v5467, %v5555
        %v5557 = vpop.f32.mrf.mxu0
        %v5558 = vadd.f32 %v5469, %v5557
        %5559 = vmatmul.bf16.gmra.mxu0 %v4511
        %v5560 = vpop.f32.mrf.mxu0
        %v5561 = vadd.f32 %v5472, %v5560
        %v5562 = vpop.f32.mrf.mxu0
        %v5563 = vadd.f32 %v5474, %v5562
        %5564 = vmatmul.bf16.gmra.mxu0 %v4520
        %v5565 = vpop.f32.mrf.mxu0
        %v5566 = vadd.f32 %v5477, %v5565
        %v5567 = vpop.f32.mrf.mxu0
        %v5568 = vadd.f32 %v5479, %v5567
        %5569 = vmatmul.bf16.gmra.mxu0 %v4529
        %v5570 = vpop.f32.mrf.mxu0
        %v5571 = vadd.f32 %v5482, %v5570
        %v5572 = vpop.f32.mrf.mxu0
        %v5573 = vadd.f32 %v5484, %v5572
        %5574 = vmatmul.bf16.gmra.mxu0 %v4538
        %v5575 = vpop.f32.mrf.mxu0
        %v5576 = vadd.f32 %v5487, %v5575
        %v5577 = vpop.f32.mrf.mxu0
        %v5578 = vadd.f32 %v5489, %v5577
        %5579 = vmatmul.bf16.gmra.mxu0 %v4547
        %v5580 = vpop.f32.mrf.mxu0
        %v5581 = vadd.f32 %v5492, %v5580
        %v5582 = vpop.f32.mrf.mxu0
        %v5583 = vadd.f32 %v5494, %v5582
        %5584 = vmatmul.bf16.gmra.mxu0 %v4556
        %v5585 = vpop.f32.mrf.mxu0
        %v5586 = vadd.f32 %v5497, %v5585
        %v5587 = vpop.f32.mrf.mxu0
        %v5588 = vadd.f32 %v5499, %v5587
        %5589 = vmatmul.bf16.gmra.mxu0 %v4565
        %v5590 = vpop.f32.mrf.mxu0
        %v5591 = vadd.f32 %v5502, %v5590
        %v5592 = vpop.f32.mrf.mxu0
        %v5593 = vadd.f32 %v5504, %v5592
        %5594 = vmatmul.bf16.gmra.mxu0 %v4574
        %v5595 = vpop.f32.mrf.mxu0
        %v5596 = vadd.f32 %v5507, %v5595
        %v5597 = vpop.f32.mrf.mxu0
        %v5598 = vadd.f32 %v5509, %v5597
        %5599 = vdwg.mxu0
        %5600 = vmatpush.bf16.msra.mxu0 %v5058
        %5601 = vmatpush.bf16.msra.mxu0 %v5057
        %5602 = vmatpush.bf16.msra.mxu0 %v5056
        %5603 = vmatpush.bf16.msra.mxu0 %v5055
        %5604 = vmatpush.bf16.msra.mxu0 %v5054
        %5605 = vmatpush.bf16.msra.mxu0 %v5053
        %5606 = vmatpush.bf16.msra.mxu0 %v5052
        %5607 = vmatpush.bf16.msra.mxu0 %v5051
        %5608 = vmatmul.bf16.gmra.mxu0 %v4440
        %v5609 = vpop.f32.mrf.mxu0
        %v5610 = vadd.f32 %v5521, %v5609
        %v5611 = vpop.f32.mrf.mxu0
        %v5612 = vadd.f32 %v5523, %v5611
        %5613 = vmatmul.bf16.gmra.mxu0 %v4449
        %v5614 = vpop.f32.mrf.mxu0
        %v5615 = vadd.f32 %v5526, %v5614
        %v5616 = vpop.f32.mrf.mxu0
        %v5617 = vadd.f32 %v5528, %v5616
        %5618 = vmatmul.bf16.gmra.mxu0 %v4458
        %v5619 = vpop.f32.mrf.mxu0
        %v5620 = vadd.f32 %v5531, %v5619
        %v5621 = vpop.f32.mrf.mxu0
        %v5622 = vadd.f32 %v5533, %v5621
        %5623 = vmatmul.bf16.gmra.mxu0 %v4467
        %v5624 = vpop.f32.mrf.mxu0
        %v5625 = vadd.f32 %v5536, %v5624
        %v5626 = vpop.f32.mrf.mxu0
        %v5627 = vadd.f32 %v5538, %v5626
        %5628 = vmatmul.bf16.gmra.mxu0 %v4476
        %v5629 = vpop.f32.mrf.mxu0
        %v5630 = vadd.f32 %v5541, %v5629
        %v5631 = vpop.f32.mrf.mxu0
        %v5632 = vadd.f32 %v5543, %v5631
        %5633 = vmatmul.bf16.gmra.mxu0 %v4485
        %v5634 = vpop.f32.mrf.mxu0
        %v5635 = vadd.f32 %v5546, %v5634
        %v5636 = vpop.f32.mrf.mxu0
        %v5637 = vadd.f32 %v5548, %v5636
        %5638 = vmatmul.bf16.gmra.mxu0 %v4494
        %v5639 = vpop.f32.mrf.mxu0
        %v5640 = vadd.f32 %v5551, %v5639
        %v5641 = vpop.f32.mrf.mxu0
        %v5642 = vadd.f32 %v5553, %v5641
        %5643 = vmatmul.bf16.gmra.mxu0 %v4503
        %v5644 = vpop.f32.mrf.mxu0
        %v5645 = vadd.f32 %v5556, %v5644
        %v5646 = vpop.f32.mrf.mxu0
        %v5647 = vadd.f32 %v5558, %v5646
        %5648 = vmatmul.bf16.gmra.mxu0 %v4512
        %v5649 = vpop.f32.mrf.mxu0
        %v5650 = vadd.f32 %v5561, %v5649
        %v5651 = vpop.f32.mrf.mxu0
        %v5652 = vadd.f32 %v5563, %v5651
        %5653 = vmatmul.bf16.gmra.mxu0 %v4521
        %v5654 = vpop.f32.mrf.mxu0
        %v5655 = vadd.f32 %v5566, %v5654
        %v5656 = vpop.f32.mrf.mxu0
        %v5657 = vadd.f32 %v5568, %v5656
        %5658 = vmatmul.bf16.gmra.mxu0 %v4530
        %v5659 = vpop.f32.mrf.mxu0
        %v5660 = vadd.f32 %v5571, %v5659
        %v5661 = vpop.f32.mrf.mxu0
        %v5662 = vadd.f32 %v5573, %v5661
        %5663 = vmatmul.bf16.gmra.mxu0 %v4539
        %v5664 = vpop.f32.mrf.mxu0
        %v5665 = vadd.f32 %v5576, %v5664
        %v5666 = vpop.f32.mrf.mxu0
        %v5667 = vadd.f32 %v5578, %v5666
        %5668 = vmatmul.bf16.gmra.mxu0 %v4548
        %v5669 = vpop.f32.mrf.mxu0
        %v5670 = vadd.f32 %v5581, %v5669
        %v5671 = vpop.f32.mrf.mxu0
        %v5672 = vadd.f32 %v5583, %v5671
        %5673 = vmatmul.bf16.gmra.mxu0 %v4557
        %v5674 = vpop.f32.mrf.mxu0
        %v5675 = vadd.f32 %v5586, %v5674
        %v5676 = vpop.f32.mrf.mxu0
        %v5677 = vadd.f32 %v5588, %v5676
        %5678 = vmatmul.bf16.gmra.mxu0 %v4566
        %v5679 = vpop.f32.mrf.mxu0
        %v5680 = vadd.f32 %v5591, %v5679
        %v5681 = vpop.f32.mrf.mxu0
        %v5682 = vadd.f32 %v5593, %v5681
        %5683 = vmatmul.bf16.gmra.mxu0 %v4575
        %v5684 = vpop.f32.mrf.mxu0
        %v5685 = vadd.f32 %v5596, %v5684
        %v5686 = vpop.f32.mrf.mxu0
        %v5687 = vadd.f32 %v5598, %v5686
        %5688 = vdwg.mxu0
        %5689 = vmatpush.bf16.msra.mxu0 %v5066
        %5690 = vmatpush.bf16.msra.mxu0 %v5065
        %5691 = vmatpush.bf16.msra.mxu0 %v5064
        %5692 = vmatpush.bf16.msra.mxu0 %v5063
        %5693 = vmatpush.bf16.msra.mxu0 %v5062
        %5694 = vmatpush.bf16.msra.mxu0 %v5061
        %5695 = vmatpush.bf16.msra.mxu0 %v5060
        %5696 = vmatpush.bf16.msra.mxu0 %v5059
        %5697 = vmatmul.bf16.gmra.mxu0 %v4441
        %v5698 = vpop.f32.mrf.mxu0
        %v5699 = vadd.f32 %v5610, %v5698
        %v5700 = vpop.f32.mrf.mxu0
        %v5701 = vadd.f32 %v5612, %v5700
        %5702 = vmatmul.bf16.gmra.mxu0 %v4450
        %v5703 = vpop.f32.mrf.mxu0
        %v5704 = vadd.f32 %v5615, %v5703
        %v5705 = vpop.f32.mrf.mxu0
        %v5706 = vadd.f32 %v5617, %v5705
        %5707 = vmatmul.bf16.gmra.mxu0 %v4459
        %v5708 = vpop.f32.mrf.mxu0
        %v5709 = vadd.f32 %v5620, %v5708
        %v5710 = vpop.f32.mrf.mxu0
        %v5711 = vadd.f32 %v5622, %v5710
        %5712 = vmatmul.bf16.gmra.mxu0 %v4468
        %v5713 = vpop.f32.mrf.mxu0
        %v5714 = vadd.f32 %v5625, %v5713
        %v5715 = vpop.f32.mrf.mxu0
        %v5716 = vadd.f32 %v5627, %v5715
        %5717 = vmatmul.bf16.gmra.mxu0 %v4477
        %v5718 = vpop.f32.mrf.mxu0
        %v5719 = vadd.f32 %v5630, %v5718
        %v5720 = vpop.f32.mrf.mxu0
        %v5721 = vadd.f32 %v5632, %v5720
        %5722 = vmatmul.bf16.gmra.mxu0 %v4486
        %v5723 = vpop.f32.mrf.mxu0
        %v5724 = vadd.f32 %v5635, %v5723
        %v5725 = vpop.f32.mrf.mxu0
        %v5726 = vadd.f32 %v5637, %v5725
        %5727 = vmatmul.bf16.gmra.mxu0 %v4495
        %v5728 = vpop.f32.mrf.mxu0
        %v5729 = vadd.f32 %v5640, %v5728
        %v5730 = vpop.f32.mrf.mxu0
        %v5731 = vadd.f32 %v5642, %v5730
        %5732 = vmatmul.bf16.gmra.mxu0 %v4504
        %v5733 = vpop.f32.mrf.mxu0
        %v5734 = vadd.f32 %v5645, %v5733
        %v5735 = vpop.f32.mrf.mxu0
        %v5736 = vadd.f32 %v5647, %v5735
        %5737 = vmatmul.bf16.gmra.mxu0 %v4513
        %v5738 = vpop.f32.mrf.mxu0
        %v5739 = vadd.f32 %v5650, %v5738
        %v5740 = vpop.f32.mrf.mxu0
        %v5741 = vadd.f32 %v5652, %v5740
        %5742 = vmatmul.bf16.gmra.mxu0 %v4522
        %v5743 = vpop.f32.mrf.mxu0
        %v5744 = vadd.f32 %v5655, %v5743
        %v5745 = vpop.f32.mrf.mxu0
        %v5746 = vadd.f32 %v5657, %v5745
        %5747 = vmatmul.bf16.gmra.mxu0 %v4531
        %v5748 = vpop.f32.mrf.mxu0
        %v5749 = vadd.f32 %v5660, %v5748
        %v5750 = vpop.f32.mrf.mxu0
        %v5751 = vadd.f32 %v5662, %v5750
        %5752 = vmatmul.bf16.gmra.mxu0 %v4540
        %v5753 = vpop.f32.mrf.mxu0
        %v5754 = vadd.f32 %v5665, %v5753
        %v5755 = vpop.f32.mrf.mxu0
        %v5756 = vadd.f32 %v5667, %v5755
        %5757 = vmatmul.bf16.gmra.mxu0 %v4549
        %v5758 = vpop.f32.mrf.mxu0
        %v5759 = vadd.f32 %v5670, %v5758
        %v5760 = vpop.f32.mrf.mxu0
        %v5761 = vadd.f32 %v5672, %v5760
        %5762 = vmatmul.bf16.gmra.mxu0 %v4558
        %v5763 = vpop.f32.mrf.mxu0
        %v5764 = vadd.f32 %v5675, %v5763
        %v5765 = vpop.f32.mrf.mxu0
        %v5766 = vadd.f32 %v5677, %v5765
        %5767 = vmatmul.bf16.gmra.mxu0 %v4567
        %v5768 = vpop.f32.mrf.mxu0
        %v5769 = vadd.f32 %v5680, %v5768
        %v5770 = vpop.f32.mrf.mxu0
        %v5771 = vadd.f32 %v5682, %v5770
        %5772 = vmatmul.bf16.gmra.mxu0 %v4576
        %v5773 = vpop.f32.mrf.mxu0
        %v5774 = vadd.f32 %v5685, %v5773
        %v5775 = vpop.f32.mrf.mxu0
        %v5776 = vadd.f32 %v5687, %v5775
        %5777 = vdwg.mxu0
        %5778 = vmatpush.bf16.msra.mxu0 %v5074
        %5779 = vmatpush.bf16.msra.mxu0 %v5073
        %5780 = vmatpush.bf16.msra.mxu0 %v5072
        %5781 = vmatpush.bf16.msra.mxu0 %v5071
        %5782 = vmatpush.bf16.msra.mxu0 %v5070
        %5783 = vmatpush.bf16.msra.mxu0 %v5069
        %5784 = vmatpush.bf16.msra.mxu0 %v5068
        %5785 = vmatpush.bf16.msra.mxu0 %v5067
        %5786 = vmatmul.bf16.gmra.mxu0 %v4442
        %v5787 = vpop.f32.mrf.mxu0
        %v5788 = vadd.f32 %v5699, %v5787
        %v5789 = vpop.f32.mrf.mxu0
        %v5790 = vadd.f32 %v5701, %v5789
        %5791 = vmatmul.bf16.gmra.mxu0 %v4451
        %v5792 = vpop.f32.mrf.mxu0
        %v5793 = vadd.f32 %v5704, %v5792
        %v5794 = vpop.f32.mrf.mxu0
        %v5795 = vadd.f32 %v5706, %v5794
        %5796 = vmatmul.bf16.gmra.mxu0 %v4460
        %v5797 = vpop.f32.mrf.mxu0
        %v5798 = vadd.f32 %v5709, %v5797
        %v5799 = vpop.f32.mrf.mxu0
        %v5800 = vadd.f32 %v5711, %v5799
        %5801 = vmatmul.bf16.gmra.mxu0 %v4469
        %v5802 = vpop.f32.mrf.mxu0
        %v5803 = vadd.f32 %v5714, %v5802
        %v5804 = vpop.f32.mrf.mxu0
        %v5805 = vadd.f32 %v5716, %v5804
        %5806 = vmatmul.bf16.gmra.mxu0 %v4478
        %v5807 = vpop.f32.mrf.mxu0
        %v5808 = vadd.f32 %v5719, %v5807
        %v5809 = vpop.f32.mrf.mxu0
        %v5810 = vadd.f32 %v5721, %v5809
        %5811 = vmatmul.bf16.gmra.mxu0 %v4487
        %v5812 = vpop.f32.mrf.mxu0
        %v5813 = vadd.f32 %v5724, %v5812
        %v5814 = vpop.f32.mrf.mxu0
        %v5815 = vadd.f32 %v5726, %v5814
        %5816 = vmatmul.bf16.gmra.mxu0 %v4496
        %v5817 = vpop.f32.mrf.mxu0
        %v5818 = vadd.f32 %v5729, %v5817
        %v5819 = vpop.f32.mrf.mxu0
        %v5820 = vadd.f32 %v5731, %v5819
        %5821 = vmatmul.bf16.gmra.mxu0 %v4505
        %v5822 = vpop.f32.mrf.mxu0
        %v5823 = vadd.f32 %v5734, %v5822
        %v5824 = vpop.f32.mrf.mxu0
        %v5825 = vadd.f32 %v5736, %v5824
        %5826 = vmatmul.bf16.gmra.mxu0 %v4514
        %v5827 = vpop.f32.mrf.mxu0
        %v5828 = vadd.f32 %v5739, %v5827
        %v5829 = vpop.f32.mrf.mxu0
        %v5830 = vadd.f32 %v5741, %v5829
        %5831 = vmatmul.bf16.gmra.mxu0 %v4523
        %v5832 = vpop.f32.mrf.mxu0
        %v5833 = vadd.f32 %v5744, %v5832
        %v5834 = vpop.f32.mrf.mxu0
        %v5835 = vadd.f32 %v5746, %v5834
        %5836 = vmatmul.bf16.gmra.mxu0 %v4532
        %v5837 = vpop.f32.mrf.mxu0
        %v5838 = vadd.f32 %v5749, %v5837
        %v5839 = vpop.f32.mrf.mxu0
        %v5840 = vadd.f32 %v5751, %v5839
        %5841 = vmatmul.bf16.gmra.mxu0 %v4541
        %v5842 = vpop.f32.mrf.mxu0
        %v5843 = vadd.f32 %v5754, %v5842
        %v5844 = vpop.f32.mrf.mxu0
        %v5845 = vadd.f32 %v5756, %v5844
        %5846 = vmatmul.bf16.gmra.mxu0 %v4550
        %v5847 = vpop.f32.mrf.mxu0
        %v5848 = vadd.f32 %v5759, %v5847
        %v5849 = vpop.f32.mrf.mxu0
        %v5850 = vadd.f32 %v5761, %v5849
        %5851 = vmatmul.bf16.gmra.mxu0 %v4559
        %v5852 = vpop.f32.mrf.mxu0
        %v5853 = vadd.f32 %v5764, %v5852
        %v5854 = vpop.f32.mrf.mxu0
        %v5855 = vadd.f32 %v5766, %v5854
        %5856 = vmatmul.bf16.gmra.mxu0 %v4568
        %v5857 = vpop.f32.mrf.mxu0
        %v5858 = vadd.f32 %v5769, %v5857
        %v5859 = vpop.f32.mrf.mxu0
        %v5860 = vadd.f32 %v5771, %v5859
        %5861 = vmatmul.bf16.gmra.mxu0 %v4577
        %v5862 = vpop.f32.mrf.mxu0
        %v5863 = vadd.f32 %v5774, %v5862
        %v5864 = vpop.f32.mrf.mxu0
        %v5865 = vadd.f32 %v5776, %v5864
        %5866 = vdwg.mxu0
        %5867 = vmatpush.bf16.msra.mxu0 %v5082
        %5868 = vmatpush.bf16.msra.mxu0 %v5081
        %5869 = vmatpush.bf16.msra.mxu0 %v5080
        %5870 = vmatpush.bf16.msra.mxu0 %v5079
        %5871 = vmatpush.bf16.msra.mxu0 %v5078
        %5872 = vmatpush.bf16.msra.mxu0 %v5077
        %5873 = vmatpush.bf16.msra.mxu0 %v5076
        %5874 = vmatpush.bf16.msra.mxu0 %v5075
        %5875 = vmatmul.bf16.gmra.mxu0 %v4443
        %v5876 = vpop.f32.mrf.mxu0
        %v5877 = vadd.f32 %v5788, %v5876
        %v5878 = vpop.f32.mrf.mxu0
        %v5879 = vadd.f32 %v5790, %v5878
        %5880 = vmatmul.bf16.gmra.mxu0 %v4452
        %v5881 = vpop.f32.mrf.mxu0
        %v5882 = vadd.f32 %v5793, %v5881
        %v5883 = vpop.f32.mrf.mxu0
        %v5884 = vadd.f32 %v5795, %v5883
        %5885 = vmatmul.bf16.gmra.mxu0 %v4461
        %v5886 = vpop.f32.mrf.mxu0
        %v5887 = vadd.f32 %v5798, %v5886
        %v5888 = vpop.f32.mrf.mxu0
        %v5889 = vadd.f32 %v5800, %v5888
        %5890 = vmatmul.bf16.gmra.mxu0 %v4470
        %v5891 = vpop.f32.mrf.mxu0
        %v5892 = vadd.f32 %v5803, %v5891
        %v5893 = vpop.f32.mrf.mxu0
        %v5894 = vadd.f32 %v5805, %v5893
        %5895 = vmatmul.bf16.gmra.mxu0 %v4479
        %v5896 = vpop.f32.mrf.mxu0
        %v5897 = vadd.f32 %v5808, %v5896
        %v5898 = vpop.f32.mrf.mxu0
        %v5899 = vadd.f32 %v5810, %v5898
        %5900 = vmatmul.bf16.gmra.mxu0 %v4488
        %v5901 = vpop.f32.mrf.mxu0
        %v5902 = vadd.f32 %v5813, %v5901
        %v5903 = vpop.f32.mrf.mxu0
        %v5904 = vadd.f32 %v5815, %v5903
        %5905 = vmatmul.bf16.gmra.mxu0 %v4497
        %v5906 = vpop.f32.mrf.mxu0
        %v5907 = vadd.f32 %v5818, %v5906
        %v5908 = vpop.f32.mrf.mxu0
        %v5909 = vadd.f32 %v5820, %v5908
        %5910 = vmatmul.bf16.gmra.mxu0 %v4506
        %v5911 = vpop.f32.mrf.mxu0
        %v5912 = vadd.f32 %v5823, %v5911
        %v5913 = vpop.f32.mrf.mxu0
        %v5914 = vadd.f32 %v5825, %v5913
        %5915 = vmatmul.bf16.gmra.mxu0 %v4515
        %v5916 = vpop.f32.mrf.mxu0
        %v5917 = vadd.f32 %v5828, %v5916
        %v5918 = vpop.f32.mrf.mxu0
        %v5919 = vadd.f32 %v5830, %v5918
        %5920 = vmatmul.bf16.gmra.mxu0 %v4524
        %v5921 = vpop.f32.mrf.mxu0
        %v5922 = vadd.f32 %v5833, %v5921
        %v5923 = vpop.f32.mrf.mxu0
        %v5924 = vadd.f32 %v5835, %v5923
        %5925 = vmatmul.bf16.gmra.mxu0 %v4533
        %v5926 = vpop.f32.mrf.mxu0
        %v5927 = vadd.f32 %v5838, %v5926
        %v5928 = vpop.f32.mrf.mxu0
        %v5929 = vadd.f32 %v5840, %v5928
        %5930 = vmatmul.bf16.gmra.mxu0 %v4542
        %v5931 = vpop.f32.mrf.mxu0
        %v5932 = vadd.f32 %v5843, %v5931
        %v5933 = vpop.f32.mrf.mxu0
        %v5934 = vadd.f32 %v5845, %v5933
        %5935 = vmatmul.bf16.gmra.mxu0 %v4551
        %v5936 = vpop.f32.mrf.mxu0
        %v5937 = vadd.f32 %v5848, %v5936
        %v5938 = vpop.f32.mrf.mxu0
        %v5939 = vadd.f32 %v5850, %v5938
        %5940 = vmatmul.bf16.gmra.mxu0 %v4560
        %v5941 = vpop.f32.mrf.mxu0
        %v5942 = vadd.f32 %v5853, %v5941
        %v5943 = vpop.f32.mrf.mxu0
        %v5944 = vadd.f32 %v5855, %v5943
        %5945 = vmatmul.bf16.gmra.mxu0 %v4569
        %v5946 = vpop.f32.mrf.mxu0
        %v5947 = vadd.f32 %v5858, %v5946
        %v5948 = vpop.f32.mrf.mxu0
        %v5949 = vadd.f32 %v5860, %v5948
        %5950 = vmatmul.bf16.gmra.mxu0 %v4578
        %v5951 = vpop.f32.mrf.mxu0
        %v5952 = vadd.f32 %v5863, %v5951
        %v5953 = vpop.f32.mrf.mxu0
        %v5954 = vadd.f32 %v5865, %v5953
        %5955 = vdwg.mxu0
        %v5956 = vmax.f32 %v5877, 0.0
        %v5957 = vmax.f32 %v5879, 0.0
        %v5958 = vmax.f32 %v5882, 0.0
        %v5959 = vmax.f32 %v5884, 0.0
        %v5960 = vmax.f32 %v5887, 0.0
        %v5961 = vmax.f32 %v5889, 0.0
        %v5962 = vmax.f32 %v5892, 0.0
        %v5963 = vmax.f32 %v5894, 0.0
        %v5964 = vmax.f32 %v5897, 0.0
        %v5965 = vmax.f32 %v5899, 0.0
        %v5966 = vmax.f32 %v5902, 0.0
        %v5967 = vmax.f32 %v5904, 0.0
        %v5968 = vmax.f32 %v5907, 0.0
        %v5969 = vmax.f32 %v5909, 0.0
        %v5970 = vmax.f32 %v5912, 0.0
        %v5971 = vmax.f32 %v5914, 0.0
        %v5972 = vmax.f32 %v5917, 0.0
        %v5973 = vmax.f32 %v5919, 0.0
        %v5974 = vmax.f32 %v5922, 0.0
        %v5975 = vmax.f32 %v5924, 0.0
        %v5976 = vmax.f32 %v5927, 0.0
        %v5977 = vmax.f32 %v5929, 0.0
        %v5978 = vmax.f32 %v5932, 0.0
        %v5979 = vmax.f32 %v5934, 0.0
        %v5980 = vmax.f32 %v5937, 0.0
        %v5981 = vmax.f32 %v5939, 0.0
        %v5982 = vmax.f32 %v5942, 0.0
        %v5983 = vmax.f32 %v5944, 0.0
        %v5984 = vmax.f32 %v5947, 0.0
        %v5985 = vmax.f32 %v5949, 0.0
        %v5986 = vmax.f32 %v5952, 0.0
        %v5987 = vmax.f32 %v5954, 0.0
        %v5988 = vpack.c.bf16 %v5957, %v5956
        %v5989 = vpack.c.bf16 %v5959, %v5958
        %v5990 = vpack.c.bf16 %v5961, %v5960
        %v5991 = vpack.c.bf16 %v5963, %v5962
        %v5992 = vpack.c.bf16 %v5965, %v5964
        %v5993 = vpack.c.bf16 %v5967, %v5966
        %v5994 = vpack.c.bf16 %v5969, %v5968
        %v5995 = vpack.c.bf16 %v5971, %v5970
        %v5996 = vpack.c.bf16 %v5973, %v5972
        %v5997 = vpack.c.bf16 %v5975, %v5974
        %v5998 = vpack.c.bf16 %v5977, %v5976
        %v5999 = vpack.c.bf16 %v5979, %v5978
        %v6000 = vpack.c.bf16 %v5981, %v5980
        %v6001 = vpack.c.bf16 %v5983, %v5982
        %v6002 = vpack.c.bf16 %v5985, %v5984
        %v6003 = vpack.c.bf16 %v5987, %v5986
        %v6004 = vld [vmem:[#allocation10] sm:$0xf]
        %v6005 = vld [vmem:[#allocation10 + $0x4] sm:$0xf]
        %v6006 = vld [vmem:[#allocation10 + $0x8] sm:$0xf]
        %v6007 = vld [vmem:[#allocation10 + $0xc] sm:$0xf]
        %v6008 = vld [vmem:[#allocation10 + $0x10] sm:$0xf]
        %v6009 = vld [vmem:[#allocation10 + $0x14] sm:$0xf]
        %v6010 = vld [vmem:[#allocation10 + $0x18] sm:$0xf]
        %v6011 = vld [vmem:[#allocation10 + $0x1c] sm:$0xf]
        %v6012 = vld [vmem:[#allocation10 + $0x20] sm:$0xf]
        %v6013 = vld [vmem:[#allocation10 + $0x24] sm:$0xf]
        %v6014 = vld [vmem:[#allocation10 + $0x28] sm:$0xf]
        %v6015 = vld [vmem:[#allocation10 + $0x2c] sm:$0xf]
        %v6016 = vld [vmem:[#allocation10 + $0x30] sm:$0xf]
        %v6017 = vld [vmem:[#allocation10 + $0x34] sm:$0xf]
        %v6018 = vld [vmem:[#allocation10 + $0x38] sm:$0xf]
        %v6019 = vld [vmem:[#allocation10 + $0x3c] sm:$0xf]
        %v6020 = vld [vmem:[%s6] sm:$0x1]
        %v6022 = vperm.slane %v6020, 0
        %v6040 = vunpack.c.l.b16 %v6004
        %v6041 = vunpack.c.l.b16 %v6005
        %v6042 = vunpack.c.l.b16 %v6006
        %v6043 = vunpack.c.l.b16 %v6007
        %v6044 = vunpack.c.l.b16 %v6008
        %v6045 = vunpack.c.l.b16 %v6009
        %v6046 = vunpack.c.l.b16 %v6010
        %v6047 = vunpack.c.l.b16 %v6011
        %v6048 = vunpack.c.l.b16 %v6012
        %v6049 = vunpack.c.l.b16 %v6013
        %v6050 = vunpack.c.l.b16 %v6014
        %v6051 = vunpack.c.l.b16 %v6015
        %v6052 = vunpack.c.l.b16 %v6016
        %v6053 = vunpack.c.l.b16 %v6017
        %v6054 = vunpack.c.l.b16 %v6018
        %v6055 = vunpack.c.l.b16 %v6019
        %v6056 = vpack.c.b16 %v6041, %v6040
        %v6057 = vpack.c.b16 %v6043, %v6042
        %v6058 = vpack.c.b16 %v6045, %v6044
        %v6059 = vpack.c.b16 %v6047, %v6046
        %v6060 = vpack.c.b16 %v6049, %v6048
        %v6061 = vpack.c.b16 %v6051, %v6050
        %v6062 = vpack.c.b16 %v6053, %v6052
        %v6063 = vpack.c.b16 %v6055, %v6054
        %6072 = vmatpush.bf16.msra.mxu0 %v6063
        %6073 = vmatpush.bf16.msra.mxu0 %v6062
        %6074 = vmatpush.bf16.msra.mxu0 %v6061
        %6075 = vmatpush.bf16.msra.mxu0 %v6060
        %6076 = vmatpush.bf16.msra.mxu0 %v6059
        %6077 = vmatpush.bf16.msra.mxu0 %v6058
        %6078 = vmatpush.bf16.msra.mxu0 %v6057
        %6079 = vmatpush.bf16.msra.mxu0 %v6056
        %6080 = vmatmul.bf16.gmra.mxu0 %v5988
        %v6081 = vpop.f32.mrf.mxu0
        %v6082 = vadd.f32 %v6022, %v6081
        %v6083 = vpop.f32.mrf.mxu0
        %v6084 = vadd.f32 %v6022, %v6083
        %6085 = vmatmul.bf16.gmra.mxu0 %v5989
        %v6086 = vpop.f32.mrf.mxu0
        %v6087 = vadd.f32 %v6022, %v6086
        %v6088 = vpop.f32.mrf.mxu0
        %v6089 = vadd.f32 %v6022, %v6088
        %6090 = vmatmul.bf16.gmra.mxu0 %v5990
        %v6091 = vpop.f32.mrf.mxu0
        %v6092 = vadd.f32 %v6022, %v6091
        %v6093 = vpop.f32.mrf.mxu0
        %v6094 = vadd.f32 %v6022, %v6093
        %6095 = vmatmul.bf16.gmra.mxu0 %v5991
        %v6096 = vpop.f32.mrf.mxu0
        %v6097 = vadd.f32 %v6022, %v6096
        %v6098 = vpop.f32.mrf.mxu0
        %v6099 = vadd.f32 %v6022, %v6098
        %6100 = vmatmul.bf16.gmra.mxu0 %v5992
        %v6101 = vpop.f32.mrf.mxu0
        %v6102 = vadd.f32 %v6022, %v6101
        %v6103 = vpop.f32.mrf.mxu0
        %v6104 = vadd.f32 %v6022, %v6103
        %6105 = vmatmul.bf16.gmra.mxu0 %v5993
        %v6106 = vpop.f32.mrf.mxu0
        %v6107 = vadd.f32 %v6022, %v6106
        %v6108 = vpop.f32.mrf.mxu0
        %v6109 = vadd.f32 %v6022, %v6108
        %6110 = vmatmul.bf16.gmra.mxu0 %v5994
        %v6111 = vpop.f32.mrf.mxu0
        %v6112 = vadd.f32 %v6022, %v6111
        %v6113 = vpop.f32.mrf.mxu0
        %v6114 = vadd.f32 %v6022, %v6113
        %6115 = vmatmul.bf16.gmra.mxu0 %v5995
        %v6116 = vpop.f32.mrf.mxu0
        %v6117 = vadd.f32 %v6022, %v6116
        %v6118 = vpop.f32.mrf.mxu0
        %v6119 = vadd.f32 %v6022, %v6118
        %6120 = vmatmul.bf16.gmra.mxu0 %v5996
        %v6121 = vpop.f32.mrf.mxu0
        %v6122 = vadd.f32 %v6022, %v6121
        %v6123 = vpop.f32.mrf.mxu0
        %v6124 = vadd.f32 %v6022, %v6123
        %6125 = vmatmul.bf16.gmra.mxu0 %v5997
        %v6126 = vpop.f32.mrf.mxu0
        %v6127 = vadd.f32 %v6022, %v6126
        %v6128 = vpop.f32.mrf.mxu0
        %v6129 = vadd.f32 %v6022, %v6128
        %6130 = vmatmul.bf16.gmra.mxu0 %v5998
        %v6131 = vpop.f32.mrf.mxu0
        %v6132 = vadd.f32 %v6022, %v6131
        %v6133 = vpop.f32.mrf.mxu0
        %v6134 = vadd.f32 %v6022, %v6133
        %6135 = vmatmul.bf16.gmra.mxu0 %v5999
        %v6136 = vpop.f32.mrf.mxu0
        %v6137 = vadd.f32 %v6022, %v6136
        %v6138 = vpop.f32.mrf.mxu0
        %v6139 = vadd.f32 %v6022, %v6138
        %6140 = vmatmul.bf16.gmra.mxu0 %v6000
        %v6141 = vpop.f32.mrf.mxu0
        %v6142 = vadd.f32 %v6022, %v6141
        %v6143 = vpop.f32.mrf.mxu0
        %v6144 = vadd.f32 %v6022, %v6143
        %6145 = vmatmul.bf16.gmra.mxu0 %v6001
        %v6146 = vpop.f32.mrf.mxu0
        %v6147 = vadd.f32 %v6022, %v6146
        %v6148 = vpop.f32.mrf.mxu0
        %v6149 = vadd.f32 %v6022, %v6148
        %6150 = vmatmul.bf16.gmra.mxu0 %v6002
        %v6151 = vpop.f32.mrf.mxu0
        %v6152 = vadd.f32 %v6022, %v6151
        %v6153 = vpop.f32.mrf.mxu0
        %v6154 = vadd.f32 %v6022, %v6153
        %6155 = vmatmul.bf16.gmra.mxu0 %v6003
        %v6156 = vpop.f32.mrf.mxu0
        %v6157 = vadd.f32 %v6022, %v6156
        %v6158 = vpop.f32.mrf.mxu0
        %v6159 = vadd.f32 %v6022, %v6158
        %6160 = vdwg.mxu0
        %v6161 = vadd.f32 %v6082, %v350
        %v6162 = vadd.f32 %v6084, %v351
        %v6163 = vadd.f32 %v6087, %v352
        %v6164 = vadd.f32 %v6089, %v353
        %v6165 = vadd.f32 %v6092, %v354
        %v6166 = vadd.f32 %v6094, %v355
        %v6167 = vadd.f32 %v6097, %v356
        %v6168 = vadd.f32 %v6099, %v357
        %v6169 = vadd.f32 %v6102, %v358
        %v6170 = vadd.f32 %v6104, %v359
        %v6171 = vadd.f32 %v6107, %v360
        %v6172 = vadd.f32 %v6109, %v361
        %v6173 = vadd.f32 %v6112, %v362
        %v6174 = vadd.f32 %v6114, %v363
        %v6175 = vadd.f32 %v6117, %v364
        %v6176 = vadd.f32 %v6119, %v365
        %v6177 = vadd.f32 %v6122, %v366
        %v6178 = vadd.f32 %v6124, %v367
        %v6179 = vadd.f32 %v6127, %v368
        %v6180 = vadd.f32 %v6129, %v369
        %v6181 = vadd.f32 %v6132, %v370
        %v6182 = vadd.f32 %v6134, %v371
        %v6183 = vadd.f32 %v6137, %v372
        %v6184 = vadd.f32 %v6139, %v373
        %v6185 = vadd.f32 %v6142, %v374
        %v6186 = vadd.f32 %v6144, %v375
        %v6187 = vadd.f32 %v6147, %v376
        %v6188 = vadd.f32 %v6149, %v377
        %v6189 = vadd.f32 %v6152, %v378
        %v6190 = vadd.f32 %v6154, %v379
        %v6191 = vadd.f32 %v6157, %v380
        %v6192 = vadd.f32 %v6159, %v381
        %v6193 = vmax.f32 %v6161, 0.0
        %v6194 = vmax.f32 %v6162, 0.0
        %v6195 = vmax.f32 %v6163, 0.0
        %v6196 = vmax.f32 %v6164, 0.0
        %v6197 = vmax.f32 %v6165, 0.0
        %v6198 = vmax.f32 %v6166, 0.0
        %v6199 = vmax.f32 %v6167, 0.0
        %v6200 = vmax.f32 %v6168, 0.0
        %v6201 = vmax.f32 %v6169, 0.0
        %v6202 = vmax.f32 %v6170, 0.0
        %v6203 = vmax.f32 %v6171, 0.0
        %v6204 = vmax.f32 %v6172, 0.0
        %v6205 = vmax.f32 %v6173, 0.0
        %v6206 = vmax.f32 %v6174, 0.0
        %v6207 = vmax.f32 %v6175, 0.0
        %v6208 = vmax.f32 %v6176, 0.0
        %v6209 = vmax.f32 %v6177, 0.0
        %v6210 = vmax.f32 %v6178, 0.0
        %v6211 = vmax.f32 %v6179, 0.0
        %v6212 = vmax.f32 %v6180, 0.0
        %v6213 = vmax.f32 %v6181, 0.0
        %v6214 = vmax.f32 %v6182, 0.0
        %v6215 = vmax.f32 %v6183, 0.0
        %v6216 = vmax.f32 %v6184, 0.0
        %v6217 = vmax.f32 %v6185, 0.0
        %v6218 = vmax.f32 %v6186, 0.0
        %v6219 = vmax.f32 %v6187, 0.0
        %v6220 = vmax.f32 %v6188, 0.0
        %v6221 = vmax.f32 %v6189, 0.0
        %v6222 = vmax.f32 %v6190, 0.0
        %v6223 = vmax.f32 %v6191, 0.0
        %v6224 = vmax.f32 %v6192, 0.0
        %6225 = vst [vmem:[%s348] sm:$0xff] %v6193
        %6226 = vst [vmem:[%s348 + $0x8] sm:$0xff] %v6194
        %6227 = vst [vmem:[%s348 + $0x10] sm:$0xff] %v6195
        %6228 = vst [vmem:[%s348 + $0x18] sm:$0xff] %v6196
        %6229 = vst [vmem:[%s348 + $0x20] sm:$0xff] %v6197
        %6230 = vst [vmem:[%s348 + $0x28] sm:$0xff] %v6198
        %6231 = vst [vmem:[%s348 + $0x30] sm:$0xff] %v6199
        %6232 = vst [vmem:[%s348 + $0x38] sm:$0xff] %v6200
        %6233 = vst [vmem:[%s348 + $0x40] sm:$0xff] %v6201
        %6234 = vst [vmem:[%s348 + $0x48] sm:$0xff] %v6202
        %6235 = vst [vmem:[%s348 + $0x50] sm:$0xff] %v6203
        %6236 = vst [vmem:[%s348 + $0x58] sm:$0xff] %v6204
        %6237 = vst [vmem:[%s348 + $0x60] sm:$0xff] %v6205
        %6238 = vst [vmem:[%s348 + $0x68] sm:$0xff] %v6206
        %6239 = vst [vmem:[%s348 + $0x70] sm:$0xff] %v6207
        %6240 = vst [vmem:[%s348 + $0x78] sm:$0xff] %v6208
        %6241 = vst [vmem:[%s348 + $0x80] sm:$0xff] %v6209
        %6242 = vst [vmem:[%s348 + $0x88] sm:$0xff] %v6210
        %6243 = vst [vmem:[%s348 + $0x90] sm:$0xff] %v6211
        %6244 = vst [vmem:[%s348 + $0x98] sm:$0xff] %v6212
        %6245 = vst [vmem:[%s348 + $0xa0] sm:$0xff] %v6213
        %6246 = vst [vmem:[%s348 + $0xa8] sm:$0xff] %v6214
        %6247 = vst [vmem:[%s348 + $0xb0] sm:$0xff] %v6215
        %6248 = vst [vmem:[%s348 + $0xb8] sm:$0xff] %v6216
        %6249 = vst [vmem:[%s348 + $0xc0] sm:$0xff] %v6217
        %6250 = vst [vmem:[%s348 + $0xc8] sm:$0xff] %v6218
        %6251 = vst [vmem:[%s348 + $0xd0] sm:$0xff] %v6219
        %6252 = vst [vmem:[%s348 + $0xd8] sm:$0xff] %v6220
        %6253 = vst [vmem:[%s348 + $0xe0] sm:$0xff] %v6221
        %6254 = vst [vmem:[%s348 + $0xe8] sm:$0xff] %v6222
        %6255 = vst [vmem:[%s348 + $0xf0] sm:$0xff] %v6223
        %6256 = vst [vmem:[%s348 + $0xf8] sm:$0xff] %v6224
        %s6257 = sand.u32 %s186, 1
        %s6258 = scalar_lea.sflag [#allocation6], %s6257
        %s6259 = sand.u32 %s186, 1
        %s6260 = smul.addr %s6259, 256
        %s6261 = scalar_lea.vmem [#allocation12], %s6260
        // Predicated region
        $region65: #{tpu_custom_call.1} parent=47 // pred_check
          %p6262 = pneg %p196
        $region66: #{tpu_custom_call.1} parent=47 // pred_check_branch
          %6264 = sbr.rel (%p6262) target = $region68
        $region67: #{tpu_custom_call.1} parent=47 // pred_region
          %6266 = vsyncadd %s6258, 0
          %s6267 = smul.addr %s26, 32
          %s6268 = smul.addr %s6267, 8
          %s6269 = scalar_lea.hbm %s7, %s6268
          %s6270 = sshll.u32 %s6261, 4
          %s6271 = int_to_ptr.vmem [resolvable:$true] %s6270
          %s6272 = sshll.u32 %s6269, 4
          %s6273 = int_to_ptr.hbm [resolvable:$true] %s6272
          %6278 = dma.vmem_to_hbm [thread:$0]  %s6271, 4096, %s6273, %s6258, 128, 128, 8
        $region68: #{tpu_custom_call.1} parent=47 // pred_fallthru
          _
      $region48: #{tpu_custom_call.1} parent=5 // pred_fallthru
        _
      %p6279 = scmp.le.s32.totalorder 2, %s21
      // Predicated region
      $region69: #{tpu_custom_call.1} parent=5 // pred_check
        %p6280 = pneg %p6279
      $region70: #{tpu_custom_call.1} parent=5 // pred_check_branch
        %6282 = sbr.rel (%p6280) target = $region72
      $region71: #{tpu_custom_call.1} parent=5 // pred_region
        %s6283 = ssub.s32 %s21, 2
        // Predicated region
        $region73: #{tpu_custom_call.1} parent=71 // pred_check
          %p6284 = pneg %p202
        $region74: #{tpu_custom_call.1} parent=71 // pred_check_branch
          %6286 = sbr.rel (%p6284) target = $region76
        $region75: #{tpu_custom_call.1} parent=71 // pred_region
          %s6287 = sand.u32 %s187, 1
          %s6288 = scalar_lea.sflag [#allocation6], %s6287
          %s6289 = sand.u32 %s187, 1
          %s6290 = smul.addr %s6289, 256
          %s6291 = scalar_lea.vmem [#allocation12], %s6290
          %6293 = dma.done %s6288, 4096
        $region76: #{tpu_custom_call.1} parent=71 // pred_fallthru
          _
      $region72: #{tpu_custom_call.1} parent=5 // pred_fallthru
        _
    $region6: #{tpu_custom_call.1} parent=1 // loop_footer
      %s25 = sadd.s32 1, %s21
    $region7: #{tpu_custom_call.1} parent=1 // loop_footer_branch
      %20 = sbr.rel target = $region3
    $region8: #{tpu_custom_call.1} parent=1 // loop_exit
      _
    %6294 = vsyncpa [#allocation5], 1
    %s6295 = scalar_lea.sflag [#allocation5], 1
    %6296 = vsyncpa %s6295, 1
    %6297 = vsyncpa [#allocation8], 1
    %6298 = vsyncpa [#allocation11], 1
    %6299 = vsyncpa [#allocation6], 1
    %s6300 = scalar_lea.sflag [#allocation6], 1
    %6301 = vsyncpa %s6300, 1

</llo_original>
